<compile_context>
chip_gen: v7x
topology: tpu7x:2x2x1
jax: 0.10.0
libtpu: 0.0.40
codegen_flags: <defaults>
</compile_context>

<pallas_src>
import functools

import jax
import jax.numpy as jnp
from jax import lax
from jax.experimental import pallas as pl
from jax.experimental.pallas import tpu as pltpu


def _round_up(x, m):
    return ((x + m - 1) // m) * m


def _face_attention_kernel(x_ref, m_ref, w1_ref, b1_ref, w2_ref, b2_ref,
                           w3_ref, b3_ref, o_ref, xpad_ref,
                           *, H, W, C0, C1, IMG):
    """One batch element per grid step; all activations stay in VMEM.

    x_ref   : (1, C0, H*W)   flattened NCHW input tile
    m_ref   : (2, H*W)       column keep-masks for dx=0 / dx=2 taps
    wk_ref  : (9, Cout, Cin) per-tap weights, tap index t = dy*3 + dx
    bk_ref  : (Cout, 1)      biases
    o_ref   : (1, 1, H*W)    final sigmoid attention map (flattened)
    xpad_ref: (max(C0,C1), LPAD) f32 halo scratch; the image interior starts
              at lane IMG (128-aligned store), surrounded by zero lanes that
              implement the 'same' zero padding.
    """
    HW = H * W
    f32 = jnp.float32

    # Zero the halo scratch: the zero border lanes ARE the 'same' padding.
    xpad_ref[...] = jnp.zeros_like(xpad_ref)
    # Place the layer-1 input in the interior (lane-aligned, unmasked store).
    xpad_ref[pl.ds(0, C0), pl.ds(IMG, HW)] = x_ref[0].astype(f32)

    m_left = m_ref[0:1, :]    # keep-mask for dx == 0 taps (kills w == 0 wrap)
    m_right = m_ref[1:2, :]   # keep-mask for dx == 2 taps (kills w == W-1 wrap)

    def conv3x3(w_ref, b_ref, cin, cout):
        acc = jnp.zeros((cout, HW), f32)
        for dy in range(3):
            for dx in range(3):
                start = IMG + (dy - 1) * W + (dx - 1)        # static offset
                tap = xpad_ref[pl.ds(0, cin), pl.ds(start, HW)]
                if dx == 0:
                    tap = tap * m_left
                elif dx == 2:
                    tap = tap * m_right
                acc = acc + jnp.dot(w_ref[dy * 3 + dx], tap,
                                    preferred_element_type=f32)
        return acc + b_ref[...]                               # (cout,1) bcast

    a = jnp.maximum(conv3x3(w1_ref, b1_ref, C0, C1), 0.0)     # conv1 + relu
    xpad_ref[pl.ds(0, C1), pl.ds(IMG, HW)] = a
    a = jnp.maximum(conv3x3(w2_ref, b2_ref, C1, C1), 0.0)     # conv2 + relu
    xpad_ref[pl.ds(0, C1), pl.ds(IMG, HW)] = a
    a = conv3x3(w3_ref, b3_ref, C1, 1)                        # conv3
    o_ref[0] = jax.nn.sigmoid(a).astype(o_ref.dtype)


def face_attention_forward(x_nchw, params):
    """Fused Pallas forward pass. x_nchw: (N, Cin, H, W) float32."""
    N, C0, H, W = x_nchw.shape
    C1 = params["w1"].shape[-1]
    HW = H * W
    IMG = _round_up(W + 1, 128)               # image start lane in the scratch
    LPAD = _round_up(IMG + HW + W + 2, 128)   # scratch lane extent (with halo)
    # NOTE: for large images, tile H across a second ("parallel") grid axis to
    # bound the per-step scratch and give v7x's two TensorCores several steps;
    # at the shapes here everything fits in a few KiB of VMEM per step.

    # Free reshape (trailing dims contiguous): spatial goes onto the lane axis.
    x_flat = x_nchw.reshape(N, C0, HW)

    # Column masks cancelling the horizontal wrap of the +/-1 dx taps.
    col = jnp.arange(HW, dtype=jnp.int32) % W
    masks = jnp.stack([(col > 0), (col < W - 1)]).astype(jnp.float32)  # (2,HW)

    def pack_w(w):   # (3,3,Cin,Cout) HWIO -> (9, Cout, Cin), tap t = dy*3+dx
        cin, cout = w.shape[2], w.shape[3]
        return jnp.transpose(w, (0, 1, 3, 2)).reshape(9, cout, cin)

    w1, b1 = pack_w(params["w1"]), params["b1"].reshape(C1, 1)
    w2, b2 = pack_w(params["w2"]), params["b2"].reshape(C1, 1)
    w3, b3 = pack_w(params["w3"]), params["b3"].reshape(1, 1)

    kernel = functools.partial(_face_attention_kernel,
                               H=H, W=W, C0=C0, C1=C1, IMG=IMG)

    out_flat = pl.pallas_call(
        kernel,
        out_shape=jax.ShapeDtypeStruct((N, 1, HW), x_nchw.dtype),
        grid_spec=pltpu.PrefetchScalarGridSpec(
            num_scalar_prefetch=0,
            grid=(N,),
            in_specs=[
                pl.BlockSpec((1, C0, HW), lambda n: (n, 0, 0)),
                pl.BlockSpec((2, HW), lambda n: (0, 0)),
                pl.BlockSpec((9, C1, C0), lambda n: (0, 0, 0)),
                pl.BlockSpec((C1, 1), lambda n: (0, 0)),
                pl.BlockSpec((9, C1, C1), lambda n: (0, 0, 0)),
                pl.BlockSpec((C1, 1), lambda n: (0, 0)),
                pl.BlockSpec((9, 1, C1), lambda n: (0, 0, 0)),
                pl.BlockSpec((1, 1), lambda n: (0, 0)),
            ],
            out_specs=pl.BlockSpec((1, 1, HW), lambda n: (n, 0, 0)),
            scratch_shapes=[pltpu.VMEM((max(C0, C1), LPAD), jnp.float32)],
        ),
        compiler_params=pltpu.CompilerParams(
            dimension_semantics=("parallel",)),
    )(x_flat, masks, w1, b1, w2, b2, w3, b3)

    return out_flat.reshape(N, 1, H, W)


def init_params(key, in_chans, out_chans):
    ks = jax.random.split(key, 6)
    def w(k, cin, cout):
        fan_in = cin * 9
        return (jax.random.normal(k, (3, 3, cin, cout), jnp.float32)
                * (1.0 / jnp.sqrt(fan_in)))
    def b(k, cout):
        return jax.random.normal(k, (cout,), jnp.float32) * 0.01
    return {
        "w1": w(ks[0], in_chans, out_chans), "b1": b(ks[1], out_chans),
        "w2": w(ks[2], out_chans, out_chans), "b2": b(ks[3], out_chans),
        "w3": w(ks[4], out_chans, 1),        "b3": b(ks[5], 1),
    }


def _ref_forward(x_nchw, params):
    """Pure-JAX reference (NCHW, like PyTorch) for the correctness check."""
    def conv(x, w, b):
        w_oihw = jnp.transpose(w, (3, 2, 0, 1))       # HWIO -> OIHW
        y = lax.conv_general_dilated(
            x, w_oihw, window_strides=(1, 1), padding="SAME",
            dimension_numbers=("NCHW", "OIHW", "NCHW"))
        return y + b[None, :, None, None]
    x = jnp.maximum(conv(x_nchw, params["w1"], params["b1"]), 0.0)
    x = jnp.maximum(conv(x, params["w2"], params["b2"]), 0.0)
    x = conv(x, params["w3"], params["b3"])
    return jax.nn.sigmoid(x)


if __name__ == "__main__":
    key = jax.random.PRNGKey(0)
    k_x, k_p = jax.random.split(key)

    N, Cin, Cout, H, W = 2, 4, 8, 16, 16
    x = jax.random.normal(k_x, (N, Cin, H, W), jnp.float32)
    params = init_params(k_p, Cin, Cout)

    out = jax.block_until_ready(face_attention_forward(x, params))
    ref = jax.block_until_ready(_ref_forward(x, params))

    assert out.shape == (N, 1, H, W), out.shape
    assert jnp.allclose(out, ref, rtol=2e-3, atol=2e-3), "mismatch vs reference"

    print("KERNEL_OK")
</pallas_src>

<mosaic_0001>
module attributes {stable_mosaic.version = 11 : i64} {
  func.func @_face_attention_kernel(%arg0: i32, %arg1: memref<1x4x256xf32, #tpu.memory_space<vmem>>, %arg2: memref<2x256xf32, #tpu.memory_space<vmem>>, %arg3: memref<9x8x4xf32, #tpu.memory_space<vmem>>, %arg4: memref<8x1xf32, #tpu.memory_space<vmem>>, %arg5: memref<9x8x8xf32, #tpu.memory_space<vmem>>, %arg6: memref<8x1xf32, #tpu.memory_space<vmem>>, %arg7: memref<9x1x8xf32, #tpu.memory_space<vmem>>, %arg8: memref<1x1xf32, #tpu.memory_space<vmem>>, %arg9: memref<1x1x256xf32, #tpu.memory_space<vmem>>, %arg10: memref<8x512xf32, #tpu.memory_space<vmem>>) attributes {dimension_semantics = [#tpu.dimension_semantics<parallel>], iteration_bounds = array<i64: 2>, scalar_prefetch = 0 : i64, scratch_operands = 1 : i64, tpu.core_type = #tpu.core_type<tc>, window_params = [{transform_indices = @transform_0, window_bounds = array<i64: 1, 4, 256>}, {pipeline_mode = #tpu.pipeline_mode<synchronous>, transform_indices = @transform_1, window_bounds = array<i64: 2, 256>}, {pipeline_mode = #tpu.pipeline_mode<synchronous>, transform_indices = @transform_2, window_bounds = array<i64: 9, 8, 4>}, {pipeline_mode = #tpu.pipeline_mode<synchronous>, transform_indices = @transform_3, window_bounds = array<i64: 8, 1>}, {pipeline_mode = #tpu.pipeline_mode<synchronous>, transform_indices = @transform_4, window_bounds = array<i64: 9, 8, 8>}, {pipeline_mode = #tpu.pipeline_mode<synchronous>, transform_indices = @transform_5, window_bounds = array<i64: 8, 1>}, {pipeline_mode = #tpu.pipeline_mode<synchronous>, transform_indices = @transform_6, window_bounds = array<i64: 9, 1, 8>}, {pipeline_mode = #tpu.pipeline_mode<synchronous>, transform_indices = @transform_7, window_bounds = array<i64: 1, 1>}, {transform_indices = @transform_8, window_bounds = array<i64: 1, 1, 256>}]} {
    %cst = arith.constant 0.000000e+00 : f32
    %0 = vector.broadcast %cst : f32 to vector<8x512xf32>
    %c0 = arith.constant 0 : index
    %c0_0 = arith.constant 0 : index
    %1 = vector.load %arg10[%c0, %c0_0] : memref<8x512xf32, #tpu.memory_space<vmem>>, vector<8x512xf32>
    tpu.vector_store %arg10[%c0, %c0_0], %0 {strides = array<i32>} : memref<8x512xf32, #tpu.memory_space<vmem>>, vector<8x512xf32>,
    %c0_1 = arith.constant 0 : index
    %c0_2 = arith.constant 0 : index
    %c0_3 = arith.constant 0 : index
    %2 = vector.load %arg1[%c0_1, %c0_2, %c0_3] : memref<1x4x256xf32, #tpu.memory_space<vmem>>, vector<1x4x256xf32>
    %3 = vector.shape_cast %2 : vector<1x4x256xf32> to vector<4x256xf32>
    %c0_4 = arith.constant 0 : index
    %c128 = arith.constant 128 : index
    %4 = vector.load %arg10[%c0_4, %c128] : memref<8x512xf32, #tpu.memory_space<vmem>>, vector<4x256xf32>
    tpu.vector_store %arg10[%c0_4, %c128], %3 {strides = array<i32>} : memref<8x512xf32, #tpu.memory_space<vmem>>, vector<4x256xf32>,
    %c0_5 = arith.constant 0 : index
    %c0_6 = arith.constant 0 : index
    %5 = vector.load %arg2[%c0_5, %c0_6] : memref<2x256xf32, #tpu.memory_space<vmem>>, vector<1x256xf32>
    %c1 = arith.constant 1 : index
    %c0_7 = arith.constant 0 : index
    %6 = vector.load %arg2[%c1, %c0_7] : memref<2x256xf32, #tpu.memory_space<vmem>>, vector<1x256xf32>
    %cst_8 = arith.constant 0.000000e+00 : f32
    %7 = vector.broadcast %cst_8 : f32 to vector<8x256xf32>
    %c0_9 = arith.constant 0 : index
    %c111 = arith.constant 111 : index
    %8 = vector.load %arg10[%c0_9, %c111] : memref<8x512xf32, #tpu.memory_space<vmem>>, vector<4x256xf32>
    %9 = vector.broadcast %5 : vector<1x256xf32> to vector<4x256xf32>
    %10 = arith.mulf %8, %9 : vector<4x256xf32>
    %c0_10 = arith.constant 0 : index
    %c0_11 = arith.constant 0 : index
    %c0_12 = arith.constant 0 : index
    %11 = vector.load %arg3[%c0_10, %c0_11, %c0_12] : memref<9x8x4xf32, #tpu.memory_space<vmem>>, vector<1x8x4xf32>
    %12 = vector.shape_cast %11 : vector<1x8x4xf32> to vector<8x4xf32>
    %cst_13 = arith.constant dense<0.000000e+00> : vector<8x256xf32>
    %13 = tpu.matmul %12, %10, %cst_13 {dimension_numbers = #tpu.dot_dimension_numbers<[1], [0], [0], [1], [0, 0, 1, 1], [], []>} : vector<8x4xf32>, vector<4x256xf32>, vector<8x256xf32> -> vector<8x256xf32>
    %14 = arith.addf %7, %13 : vector<8x256xf32>
    %c0_14 = arith.constant 0 : index
    %c112 = arith.constant 112 : index
    %15 = vector.load %arg10[%c0_14, %c112] : memref<8x512xf32, #tpu.memory_space<vmem>>, vector<4x256xf32>
    %c1_15 = arith.constant 1 : index
    %c0_16 = arith.constant 0 : index
    %c0_17 = arith.constant 0 : index
    %16 = vector.load %arg3[%c1_15, %c0_16, %c0_17] : memref<9x8x4xf32, #tpu.memory_space<vmem>>, vector<1x8x4xf32>
    %17 = vector.shape_cast %16 : vector<1x8x4xf32> to vector<8x4xf32>
    %cst_18 = arith.constant dense<0.000000e+00> : vector<8x256xf32>
    %18 = tpu.matmul %17, %15, %cst_18 {dimension_numbers = #tpu.dot_dimension_numbers<[1], [0], [0], [1], [0, 0, 1, 1], [], []>} : vector<8x4xf32>, vector<4x256xf32>, vector<8x256xf32> -> vector<8x256xf32>
    %19 = arith.addf %14, %18 : vector<8x256xf32>
    %c0_19 = arith.constant 0 : index
    %c113 = arith.constant 113 : index
    %20 = vector.load %arg10[%c0_19, %c113] : memref<8x512xf32, #tpu.memory_space<vmem>>, vector<4x256xf32>
    %21 = vector.broadcast %6 : vector<1x256xf32> to vector<4x256xf32>
    %22 = arith.mulf %20, %21 : vector<4x256xf32>
    %c2 = arith.constant 2 : index
    %c0_20 = arith.constant 0 : index
    %c0_21 = arith.constant 0 : index
    %23 = vector.load %arg3[%c2, %c0_20, %c0_21] : memref<9x8x4xf32, #tpu.memory_space<vmem>>, vector<1x8x4xf32>
    %24 = vector.shape_cast %23 : vector<1x8x4xf32> to vector<8x4xf32>
    %cst_22 = arith.constant dense<0.000000e+00> : vector<8x256xf32>
    %25 = tpu.matmul %24, %22, %cst_22 {dimension_numbers = #tpu.dot_dimension_numbers<[1], [0], [0], [1], [0, 0, 1, 1], [], []>} : vector<8x4xf32>, vector<4x256xf32>, vector<8x256xf32> -> vector<8x256xf32>
    %26 = arith.addf %19, %25 : vector<8x256xf32>
    %c0_23 = arith.constant 0 : index
    %c127 = arith.constant 127 : index
    %27 = vector.load %arg10[%c0_23, %c127] : memref<8x512xf32, #tpu.memory_space<vmem>>, vector<4x256xf32>
    %28 = vector.broadcast %5 : vector<1x256xf32> to vector<4x256xf32>
    %29 = arith.mulf %27, %28 : vector<4x256xf32>
    %c3 = arith.constant 3 : index
    %c0_24 = arith.constant 0 : index
    %c0_25 = arith.constant 0 : index
    %30 = vector.load %arg3[%c3, %c0_24, %c0_25] : memref<9x8x4xf32, #tpu.memory_space<vmem>>, vector<1x8x4xf32>
    %31 = vector.shape_cast %30 : vector<1x8x4xf32> to vector<8x4xf32>
    %cst_26 = arith.constant dense<0.000000e+00> : vector<8x256xf32>
    %32 = tpu.matmul %31, %29, %cst_26 {dimension_numbers = #tpu.dot_dimension_numbers<[1], [0], [0], [1], [0, 0, 1, 1], [], []>} : vector<8x4xf32>, vector<4x256xf32>, vector<8x256xf32> -> vector<8x256xf32>
    %33 = arith.addf %26, %32 : vector<8x256xf32>
    %c0_27 = arith.constant 0 : index
    %c128_28 = arith.constant 128 : index
    %34 = vector.load %arg10[%c0_27, %c128_28] : memref<8x512xf32, #tpu.memory_space<vmem>>, vector<4x256xf32>
    %c4 = arith.constant 4 : index
    %c0_29 = arith.constant 0 : index
    %c0_30 = arith.constant 0 : index
    %35 = vector.load %arg3[%c4, %c0_29, %c0_30] : memref<9x8x4xf32, #tpu.memory_space<vmem>>, vector<1x8x4xf32>
    %36 = vector.shape_cast %35 : vector<1x8x4xf32> to vector<8x4xf32>
    %cst_31 = arith.constant dense<0.000000e+00> : vector<8x256xf32>
    %37 = tpu.matmul %36, %34, %cst_31 {dimension_numbers = #tpu.dot_dimension_numbers<[1], [0], [0], [1], [0, 0, 1, 1], [], []>} : vector<8x4xf32>, vector<4x256xf32>, vector<8x256xf32> -> vector<8x256xf32>
    %38 = arith.addf %33, %37 : vector<8x256xf32>
    %c0_32 = arith.constant 0 : index
    %c129 = arith.constant 129 : index
    %39 = vector.load %arg10[%c0_32, %c129] : memref<8x512xf32, #tpu.memory_space<vmem>>, vector<4x256xf32>
    %40 = vector.broadcast %6 : vector<1x256xf32> to vector<4x256xf32>
    %41 = arith.mulf %39, %40 : vector<4x256xf32>
    %c5 = arith.constant 5 : index
    %c0_33 = arith.constant 0 : index
    %c0_34 = arith.constant 0 : index
    %42 = vector.load %arg3[%c5, %c0_33, %c0_34] : memref<9x8x4xf32, #tpu.memory_space<vmem>>, vector<1x8x4xf32>
    %43 = vector.shape_cast %42 : vector<1x8x4xf32> to vector<8x4xf32>
    %cst_35 = arith.constant dense<0.000000e+00> : vector<8x256xf32>
    %44 = tpu.matmul %43, %41, %cst_35 {dimension_numbers = #tpu.dot_dimension_numbers<[1], [0], [0], [1], [0, 0, 1, 1], [], []>} : vector<8x4xf32>, vector<4x256xf32>, vector<8x256xf32> -> vector<8x256xf32>
    %45 = arith.addf %38, %44 : vector<8x256xf32>
    %c0_36 = arith.constant 0 : index
    %c143 = arith.constant 143 : index
    %46 = vector.load %arg10[%c0_36, %c143] : memref<8x512xf32, #tpu.memory_space<vmem>>, vector<4x256xf32>
    %47 = vector.broadcast %5 : vector<1x256xf32> to vector<4x256xf32>
    %48 = arith.mulf %46, %47 : vector<4x256xf32>
    %c6 = arith.constant 6 : index
    %c0_37 = arith.constant 0 : index
    %c0_38 = arith.constant 0 : index
    %49 = vector.load %arg3[%c6, %c0_37, %c0_38] : memref<9x8x4xf32, #tpu.memory_space<vmem>>, vector<1x8x4xf32>
    %50 = vector.shape_cast %49 : vector<1x8x4xf32> to vector<8x4xf32>
    %cst_39 = arith.constant dense<0.000000e+00> : vector<8x256xf32>
    %51 = tpu.matmul %50, %48, %cst_39 {dimension_numbers = #tpu.dot_dimension_numbers<[1], [0], [0], [1], [0, 0, 1, 1], [], []>} : vector<8x4xf32>, vector<4x256xf32>, vector<8x256xf32> -> vector<8x256xf32>
    %52 = arith.addf %45, %51 : vector<8x256xf32>
    %c0_40 = arith.constant 0 : index
    %c144 = arith.constant 144 : index
    %53 = vector.load %arg10[%c0_40, %c144] : memref<8x512xf32, #tpu.memory_space<vmem>>, vector<4x256xf32>
    %c7 = arith.constant 7 : index
    %c0_41 = arith.constant 0 : index
    %c0_42 = arith.constant 0 : index
    %54 = vector.load %arg3[%c7, %c0_41, %c0_42] : memref<9x8x4xf32, #tpu.memory_space<vmem>>, vector<1x8x4xf32>
    %55 = vector.shape_cast %54 : vector<1x8x4xf32> to vector<8x4xf32>
    %cst_43 = arith.constant dense<0.000000e+00> : vector<8x256xf32>
    %56 = tpu.matmul %55, %53, %cst_43 {dimension_numbers = #tpu.dot_dimension_numbers<[1], [0], [0], [1], [0, 0, 1, 1], [], []>} : vector<8x4xf32>, vector<4x256xf32>, vector<8x256xf32> -> vector<8x256xf32>
    %57 = arith.addf %52, %56 : vector<8x256xf32>
    %c0_44 = arith.constant 0 : index
    %c145 = arith.constant 145 : index
    %58 = vector.load %arg10[%c0_44, %c145] : memref<8x512xf32, #tpu.memory_space<vmem>>, vector<4x256xf32>
    %59 = vector.broadcast %6 : vector<1x256xf32> to vector<4x256xf32>
    %60 = arith.mulf %58, %59 : vector<4x256xf32>
    %c8 = arith.constant 8 : index
    %c0_45 = arith.constant 0 : index
    %c0_46 = arith.constant 0 : index
    %61 = vector.load %arg3[%c8, %c0_45, %c0_46] : memref<9x8x4xf32, #tpu.memory_space<vmem>>, vector<1x8x4xf32>
    %62 = vector.shape_cast %61 : vector<1x8x4xf32> to vector<8x4xf32>
    %cst_47 = arith.constant dense<0.000000e+00> : vector<8x256xf32>
    %63 = tpu.matmul %62, %60, %cst_47 {dimension_numbers = #tpu.dot_dimension_numbers<[1], [0], [0], [1], [0, 0, 1, 1], [], []>} : vector<8x4xf32>, vector<4x256xf32>, vector<8x256xf32> -> vector<8x256xf32>
    %64 = arith.addf %57, %63 : vector<8x256xf32>
    %c0_48 = arith.constant 0 : index
    %c0_49 = arith.constant 0 : index
    %65 = vector.load %arg4[%c0_48, %c0_49] : memref<8x1xf32, #tpu.memory_space<vmem>>, vector<8x1xf32>
    %66 = vector.broadcast %65 : vector<8x1xf32> to vector<8x256xf32>
    %67 = arith.addf %64, %66 : vector<8x256xf32>
    %cst_50 = arith.constant 0.000000e+00 : f32
    %68 = vector.broadcast %cst_50 : f32 to vector<8x256xf32>
    %69 = arith.maximumf %67, %68 : vector<8x256xf32>
    %c0_51 = arith.constant 0 : index
    %c128_52 = arith.constant 128 : index
    %70 = vector.load %arg10[%c0_51, %c128_52] : memref<8x512xf32, #tpu.memory_space<vmem>>, vector<8x256xf32>
    tpu.vector_store %arg10[%c0_51, %c128_52], %69 {strides = array<i32>} : memref<8x512xf32, #tpu.memory_space<vmem>>, vector<8x256xf32>,
    %cst_53 = arith.constant 0.000000e+00 : f32
    %71 = vector.broadcast %cst_53 : f32 to vector<8x256xf32>
    %c0_54 = arith.constant 0 : index
    %c111_55 = arith.constant 111 : index
    %72 = vector.load %arg10[%c0_54, %c111_55] : memref<8x512xf32, #tpu.memory_space<vmem>>, vector<8x256xf32>
    %73 = vector.broadcast %5 : vector<1x256xf32> to vector<8x256xf32>
    %74 = arith.mulf %72, %73 : vector<8x256xf32>
    %c0_56 = arith.constant 0 : index
    %c0_57 = arith.constant 0 : index
    %c0_58 = arith.constant 0 : index
    %75 = vector.load %arg5[%c0_56, %c0_57, %c0_58] : memref<9x8x8xf32, #tpu.memory_space<vmem>>, vector<1x8x8xf32>
    %76 = vector.shape_cast %75 : vector<1x8x8xf32> to vector<8x8xf32>
    %cst_59 = arith.constant dense<0.000000e+00> : vector<8x256xf32>
    %77 = tpu.matmul %76, %74, %cst_59 {dimension_numbers = #tpu.dot_dimension_numbers<[1], [0], [0], [1], [0, 0, 1, 1], [], []>} : vector<8x8xf32>, vector<8x256xf32>, vector<8x256xf32> -> vector<8x256xf32>
    %78 = arith.addf %71, %77 : vector<8x256xf32>
    %c0_60 = arith.constant 0 : index
    %c112_61 = arith.constant 112 : index
    %79 = vector.load %arg10[%c0_60, %c112_61] : memref<8x512xf32, #tpu.memory_space<vmem>>, vector<8x256xf32>
    %c1_62 = arith.constant 1 : index
    %c0_63 = arith.constant 0 : index
    %c0_64 = arith.constant 0 : index
    %80 = vector.load %arg5[%c1_62, %c0_63, %c0_64] : memref<9x8x8xf32, #tpu.memory_space<vmem>>, vector<1x8x8xf32>
    %81 = vector.shape_cast %80 : vector<1x8x8xf32> to vector<8x8xf32>
    %cst_65 = arith.constant dense<0.000000e+00> : vector<8x256xf32>
    %82 = tpu.matmul %81, %79, %cst_65 {dimension_numbers = #tpu.dot_dimension_numbers<[1], [0], [0], [1], [0, 0, 1, 1], [], []>} : vector<8x8xf32>, vector<8x256xf32>, vector<8x256xf32> -> vector<8x256xf32>
    %83 = arith.addf %78, %82 : vector<8x256xf32>
    %c0_66 = arith.constant 0 : index
    %c113_67 = arith.constant 113 : index
    %84 = vector.load %arg10[%c0_66, %c113_67] : memref<8x512xf32, #tpu.memory_space<vmem>>, vector<8x256xf32>
    %85 = vector.broadcast %6 : vector<1x256xf32> to vector<8x256xf32>
    %86 = arith.mulf %84, %85 : vector<8x256xf32>
    %c2_68 = arith.constant 2 : index
    %c0_69 = arith.constant 0 : index
    %c0_70 = arith.constant 0 : index
    %87 = vector.load %arg5[%c2_68, %c0_69, %c0_70] : memref<9x8x8xf32, #tpu.memory_space<vmem>>, vector<1x8x8xf32>
    %88 = vector.shape_cast %87 : vector<1x8x8xf32> to vector<8x8xf32>
    %cst_71 = arith.constant dense<0.000000e+00> : vector<8x256xf32>
    %89 = tpu.matmul %88, %86, %cst_71 {dimension_numbers = #tpu.dot_dimension_numbers<[1], [0], [0], [1], [0, 0, 1, 1], [], []>} : vector<8x8xf32>, vector<8x256xf32>, vector<8x256xf32> -> vector<8x256xf32>
    %90 = arith.addf %83, %89 : vector<8x256xf32>
    %c0_72 = arith.constant 0 : index
    %c127_73 = arith.constant 127 : index
    %91 = vector.load %arg10[%c0_72, %c127_73] : memref<8x512xf32, #tpu.memory_space<vmem>>, vector<8x256xf32>
    %92 = vector.broadcast %5 : vector<1x256xf32> to vector<8x256xf32>
    %93 = arith.mulf %91, %92 : vector<8x256xf32>
    %c3_74 = arith.constant 3 : index
    %c0_75 = arith.constant 0 : index
    %c0_76 = arith.constant 0 : index
    %94 = vector.load %arg5[%c3_74, %c0_75, %c0_76] : memref<9x8x8xf32, #tpu.memory_space<vmem>>, vector<1x8x8xf32>
    %95 = vector.shape_cast %94 : vector<1x8x8xf32> to vector<8x8xf32>
    %cst_77 = arith.constant dense<0.000000e+00> : vector<8x256xf32>
    %96 = tpu.matmul %95, %93, %cst_77 {dimension_numbers = #tpu.dot_dimension_numbers<[1], [0], [0], [1], [0, 0, 1, 1], [], []>} : vector<8x8xf32>, vector<8x256xf32>, vector<8x256xf32> -> vector<8x256xf32>
    %97 = arith.addf %90, %96 : vector<8x256xf32>
    %c0_78 = arith.constant 0 : index
    %c128_79 = arith.constant 128 : index
    %98 = vector.load %arg10[%c0_78, %c128_79] : memref<8x512xf32, #tpu.memory_space<vmem>>, vector<8x256xf32>
    %c4_80 = arith.constant 4 : index
    %c0_81 = arith.constant 0 : index
    %c0_82 = arith.constant 0 : index
    %99 = vector.load %arg5[%c4_80, %c0_81, %c0_82] : memref<9x8x8xf32, #tpu.memory_space<vmem>>, vector<1x8x8xf32>
    %100 = vector.shape_cast %99 : vector<1x8x8xf32> to vector<8x8xf32>
    %cst_83 = arith.constant dense<0.000000e+00> : vector<8x256xf32>
    %101 = tpu.matmul %100, %98, %cst_83 {dimension_numbers = #tpu.dot_dimension_numbers<[1], [0], [0], [1], [0, 0, 1, 1], [], []>} : vector<8x8xf32>, vector<8x256xf32>, vector<8x256xf32> -> vector<8x256xf32>
    %102 = arith.addf %97, %101 : vector<8x256xf32>
    %c0_84 = arith.constant 0 : index
    %c129_85 = arith.constant 129 : index
    %103 = vector.load %arg10[%c0_84, %c129_85] : memref<8x512xf32, #tpu.memory_space<vmem>>, vector<8x256xf32>
    %104 = vector.broadcast %6 : vector<1x256xf32> to vector<8x256xf32>
    %105 = arith.mulf %103, %104 : vector<8x256xf32>
    %c5_86 = arith.constant 5 : index
    %c0_87 = arith.constant 0 : index
    %c0_88 = arith.constant 0 : index
    %106 = vector.load %arg5[%c5_86, %c0_87, %c0_88] : memref<9x8x8xf32, #tpu.memory_space<vmem>>, vector<1x8x8xf32>
    %107 = vector.shape_cast %106 : vector<1x8x8xf32> to vector<8x8xf32>
    %cst_89 = arith.constant dense<0.000000e+00> : vector<8x256xf32>
    %108 = tpu.matmul %107, %105, %cst_89 {dimension_numbers = #tpu.dot_dimension_numbers<[1], [0], [0], [1], [0, 0, 1, 1], [], []>} : vector<8x8xf32>, vector<8x256xf32>, vector<8x256xf32> -> vector<8x256xf32>
    %109 = arith.addf %102, %108 : vector<8x256xf32>
    %c0_90 = arith.constant 0 : index
    %c143_91 = arith.constant 143 : index
    %110 = vector.load %arg10[%c0_90, %c143_91] : memref<8x512xf32, #tpu.memory_space<vmem>>, vector<8x256xf32>
    %111 = vector.broadcast %5 : vector<1x256xf32> to vector<8x256xf32>
    %112 = arith.mulf %110, %111 : vector<8x256xf32>
    %c6_92 = arith.constant 6 : index
    %c0_93 = arith.constant 0 : index
    %c0_94 = arith.constant 0 : index
    %113 = vector.load %arg5[%c6_92, %c0_93, %c0_94] : memref<9x8x8xf32, #tpu.memory_space<vmem>>, vector<1x8x8xf32>
    %114 = vector.shape_cast %113 : vector<1x8x8xf32> to vector<8x8xf32>
    %cst_95 = arith.constant dense<0.000000e+00> : vector<8x256xf32>
    %115 = tpu.matmul %114, %112, %cst_95 {dimension_numbers = #tpu.dot_dimension_numbers<[1], [0], [0], [1], [0, 0, 1, 1], [], []>} : vector<8x8xf32>, vector<8x256xf32>, vector<8x256xf32> -> vector<8x256xf32>
    %116 = arith.addf %109, %115 : vector<8x256xf32>
    %c0_96 = arith.constant 0 : index
    %c144_97 = arith.constant 144 : index
    %117 = vector.load %arg10[%c0_96, %c144_97] : memref<8x512xf32, #tpu.memory_space<vmem>>, vector<8x256xf32>
    %c7_98 = arith.constant 7 : index
    %c0_99 = arith.constant 0 : index
    %c0_100 = arith.constant 0 : index
    %118 = vector.load %arg5[%c7_98, %c0_99, %c0_100] : memref<9x8x8xf32, #tpu.memory_space<vmem>>, vector<1x8x8xf32>
    %119 = vector.shape_cast %118 : vector<1x8x8xf32> to vector<8x8xf32>
    %cst_101 = arith.constant dense<0.000000e+00> : vector<8x256xf32>
    %120 = tpu.matmul %119, %117, %cst_101 {dimension_numbers = #tpu.dot_dimension_numbers<[1], [0], [0], [1], [0, 0, 1, 1], [], []>} : vector<8x8xf32>, vector<8x256xf32>, vector<8x256xf32> -> vector<8x256xf32>
    %121 = arith.addf %116, %120 : vector<8x256xf32>
    %c0_102 = arith.constant 0 : index
    %c145_103 = arith.constant 145 : index
    %122 = vector.load %arg10[%c0_102, %c145_103] : memref<8x512xf32, #tpu.memory_space<vmem>>, vector<8x256xf32>
    %123 = vector.broadcast %6 : vector<1x256xf32> to vector<8x256xf32>
    %124 = arith.mulf %122, %123 : vector<8x256xf32>
    %c8_104 = arith.constant 8 : index
    %c0_105 = arith.constant 0 : index
    %c0_106 = arith.constant 0 : index
    %125 = vector.load %arg5[%c8_104, %c0_105, %c0_106] : memref<9x8x8xf32, #tpu.memory_space<vmem>>, vector<1x8x8xf32>
    %126 = vector.shape_cast %125 : vector<1x8x8xf32> to vector<8x8xf32>
    %cst_107 = arith.constant dense<0.000000e+00> : vector<8x256xf32>
    %127 = tpu.matmul %126, %124, %cst_107 {dimension_numbers = #tpu.dot_dimension_numbers<[1], [0], [0], [1], [0, 0, 1, 1], [], []>} : vector<8x8xf32>, vector<8x256xf32>, vector<8x256xf32> -> vector<8x256xf32>
    %128 = arith.addf %121, %127 : vector<8x256xf32>
    %c0_108 = arith.constant 0 : index
    %c0_109 = arith.constant 0 : index
    %129 = vector.load %arg6[%c0_108, %c0_109] : memref<8x1xf32, #tpu.memory_space<vmem>>, vector<8x1xf32>
    %130 = vector.broadcast %129 : vector<8x1xf32> to vector<8x256xf32>
    %131 = arith.addf %128, %130 : vector<8x256xf32>
    %cst_110 = arith.constant 0.000000e+00 : f32
    %132 = vector.broadcast %cst_110 : f32 to vector<8x256xf32>
    %133 = arith.maximumf %131, %132 : vector<8x256xf32>
    %c0_111 = arith.constant 0 : index
    %c128_112 = arith.constant 128 : index
    %134 = vector.load %arg10[%c0_111, %c128_112] : memref<8x512xf32, #tpu.memory_space<vmem>>, vector<8x256xf32>
    tpu.vector_store %arg10[%c0_111, %c128_112], %133 {strides = array<i32>} : memref<8x512xf32, #tpu.memory_space<vmem>>, vector<8x256xf32>,
    %cst_113 = arith.constant 0.000000e+00 : f32
    %135 = vector.broadcast %cst_113 : f32 to vector<1x256xf32>
    %c0_114 = arith.constant 0 : index
    %c111_115 = arith.constant 111 : index
    %136 = vector.load %arg10[%c0_114, %c111_115] : memref<8x512xf32, #tpu.memory_space<vmem>>, vector<8x256xf32>
    %137 = vector.broadcast %5 : vector<1x256xf32> to vector<8x256xf32>
    %138 = arith.mulf %136, %137 : vector<8x256xf32>
    %c0_116 = arith.constant 0 : index
    %c0_117 = arith.constant 0 : index
    %c0_118 = arith.constant 0 : index
    %139 = vector.load %arg7[%c0_116, %c0_117, %c0_118] : memref<9x1x8xf32, #tpu.memory_space<vmem>>, vector<1x1x8xf32>
    %140 = vector.shape_cast %139 : vector<1x1x8xf32> to vector<1x8xf32>
    %cst_119 = arith.constant dense<0.000000e+00> : vector<1x256xf32>
    %141 = tpu.matmul %140, %138, %cst_119 {dimension_numbers = #tpu.dot_dimension_numbers<[1], [0], [0], [1], [0, 0, 1, 1], [], []>} : vector<1x8xf32>, vector<8x256xf32>, vector<1x256xf32> -> vector<1x256xf32>
    %142 = arith.addf %135, %141 : vector<1x256xf32>
    %c0_120 = arith.constant 0 : index
    %c112_121 = arith.constant 112 : index
    %143 = vector.load %arg10[%c0_120, %c112_121] : memref<8x512xf32, #tpu.memory_space<vmem>>, vector<8x256xf32>
    %c1_122 = arith.constant 1 : index
    %c0_123 = arith.constant 0 : index
    %c0_124 = arith.constant 0 : index
    %144 = vector.load %arg7[%c1_122, %c0_123, %c0_124] : memref<9x1x8xf32, #tpu.memory_space<vmem>>, vector<1x1x8xf32>
    %145 = vector.shape_cast %144 : vector<1x1x8xf32> to vector<1x8xf32>
    %cst_125 = arith.constant dense<0.000000e+00> : vector<1x256xf32>
    %146 = tpu.matmul %145, %143, %cst_125 {dimension_numbers = #tpu.dot_dimension_numbers<[1], [0], [0], [1], [0, 0, 1, 1], [], []>} : vector<1x8xf32>, vector<8x256xf32>, vector<1x256xf32> -> vector<1x256xf32>
    %147 = arith.addf %142, %146 : vector<1x256xf32>
    %c0_126 = arith.constant 0 : index
    %c113_127 = arith.constant 113 : index
    %148 = vector.load %arg10[%c0_126, %c113_127] : memref<8x512xf32, #tpu.memory_space<vmem>>, vector<8x256xf32>
    %149 = vector.broadcast %6 : vector<1x256xf32> to vector<8x256xf32>
    %150 = arith.mulf %148, %149 : vector<8x256xf32>
    %c2_128 = arith.constant 2 : index
    %c0_129 = arith.constant 0 : index
    %c0_130 = arith.constant 0 : index
    %151 = vector.load %arg7[%c2_128, %c0_129, %c0_130] : memref<9x1x8xf32, #tpu.memory_space<vmem>>, vector<1x1x8xf32>
    %152 = vector.shape_cast %151 : vector<1x1x8xf32> to vector<1x8xf32>
    %cst_131 = arith.constant dense<0.000000e+00> : vector<1x256xf32>
    %153 = tpu.matmul %152, %150, %cst_131 {dimension_numbers = #tpu.dot_dimension_numbers<[1], [0], [0], [1], [0, 0, 1, 1], [], []>} : vector<1x8xf32>, vector<8x256xf32>, vector<1x256xf32> -> vector<1x256xf32>
    %154 = arith.addf %147, %153 : vector<1x256xf32>
    %c0_132 = arith.constant 0 : index
    %c127_133 = arith.constant 127 : index
    %155 = vector.load %arg10[%c0_132, %c127_133] : memref<8x512xf32, #tpu.memory_space<vmem>>, vector<8x256xf32>
    %156 = vector.broadcast %5 : vector<1x256xf32> to vector<8x256xf32>
    %157 = arith.mulf %155, %156 : vector<8x256xf32>
    %c3_134 = arith.constant 3 : index
    %c0_135 = arith.constant 0 : index
    %c0_136 = arith.constant 0 : index
    %158 = vector.load %arg7[%c3_134, %c0_135, %c0_136] : memref<9x1x8xf32, #tpu.memory_space<vmem>>, vector<1x1x8xf32>
    %159 = vector.shape_cast %158 : vector<1x1x8xf32> to vector<1x8xf32>
    %cst_137 = arith.constant dense<0.000000e+00> : vector<1x256xf32>
    %160 = tpu.matmul %159, %157, %cst_137 {dimension_numbers = #tpu.dot_dimension_numbers<[1], [0], [0], [1], [0, 0, 1, 1], [], []>} : vector<1x8xf32>, vector<8x256xf32>, vector<1x256xf32> -> vector<1x256xf32>
    %161 = arith.addf %154, %160 : vector<1x256xf32>
    %c0_138 = arith.constant 0 : index
    %c128_139 = arith.constant 128 : index
    %162 = vector.load %arg10[%c0_138, %c128_139] : memref<8x512xf32, #tpu.memory_space<vmem>>, vector<8x256xf32>
    %c4_140 = arith.constant 4 : index
    %c0_141 = arith.constant 0 : index
    %c0_142 = arith.constant 0 : index
    %163 = vector.load %arg7[%c4_140, %c0_141, %c0_142] : memref<9x1x8xf32, #tpu.memory_space<vmem>>, vector<1x1x8xf32>
    %164 = vector.shape_cast %163 : vector<1x1x8xf32> to vector<1x8xf32>
    %cst_143 = arith.constant dense<0.000000e+00> : vector<1x256xf32>
    %165 = tpu.matmul %164, %162, %cst_143 {dimension_numbers = #tpu.dot_dimension_numbers<[1], [0], [0], [1], [0, 0, 1, 1], [], []>} : vector<1x8xf32>, vector<8x256xf32>, vector<1x256xf32> -> vector<1x256xf32>
    %166 = arith.addf %161, %165 : vector<1x256xf32>
    %c0_144 = arith.constant 0 : index
    %c129_145 = arith.constant 129 : index
    %167 = vector.load %arg10[%c0_144, %c129_145] : memref<8x512xf32, #tpu.memory_space<vmem>>, vector<8x256xf32>
    %168 = vector.broadcast %6 : vector<1x256xf32> to vector<8x256xf32>
    %169 = arith.mulf %167, %168 : vector<8x256xf32>
    %c5_146 = arith.constant 5 : index
    %c0_147 = arith.constant 0 : index
    %c0_148 = arith.constant 0 : index
    %170 = vector.load %arg7[%c5_146, %c0_147, %c0_148] : memref<9x1x8xf32, #tpu.memory_space<vmem>>, vector<1x1x8xf32>
    %171 = vector.shape_cast %170 : vector<1x1x8xf32> to vector<1x8xf32>
    %cst_149 = arith.constant dense<0.000000e+00> : vector<1x256xf32>
    %172 = tpu.matmul %171, %169, %cst_149 {dimension_numbers = #tpu.dot_dimension_numbers<[1], [0], [0], [1], [0, 0, 1, 1], [], []>} : vector<1x8xf32>, vector<8x256xf32>, vector<1x256xf32> -> vector<1x256xf32>
    %173 = arith.addf %166, %172 : vector<1x256xf32>
    %c0_150 = arith.constant 0 : index
    %c143_151 = arith.constant 143 : index
    %174 = vector.load %arg10[%c0_150, %c143_151] : memref<8x512xf32, #tpu.memory_space<vmem>>, vector<8x256xf32>
    %175 = vector.broadcast %5 : vector<1x256xf32> to vector<8x256xf32>
    %176 = arith.mulf %174, %175 : vector<8x256xf32>
    %c6_152 = arith.constant 6 : index
    %c0_153 = arith.constant 0 : index
    %c0_154 = arith.constant 0 : index
    %177 = vector.load %arg7[%c6_152, %c0_153, %c0_154] : memref<9x1x8xf32, #tpu.memory_space<vmem>>, vector<1x1x8xf32>
    %178 = vector.shape_cast %177 : vector<1x1x8xf32> to vector<1x8xf32>
    %cst_155 = arith.constant dense<0.000000e+00> : vector<1x256xf32>
    %179 = tpu.matmul %178, %176, %cst_155 {dimension_numbers = #tpu.dot_dimension_numbers<[1], [0], [0], [1], [0, 0, 1, 1], [], []>} : vector<1x8xf32>, vector<8x256xf32>, vector<1x256xf32> -> vector<1x256xf32>
    %180 = arith.addf %173, %179 : vector<1x256xf32>
    %c0_156 = arith.constant 0 : index
    %c144_157 = arith.constant 144 : index
    %181 = vector.load %arg10[%c0_156, %c144_157] : memref<8x512xf32, #tpu.memory_space<vmem>>, vector<8x256xf32>
    %c7_158 = arith.constant 7 : index
    %c0_159 = arith.constant 0 : index
    %c0_160 = arith.constant 0 : index
    %182 = vector.load %arg7[%c7_158, %c0_159, %c0_160] : memref<9x1x8xf32, #tpu.memory_space<vmem>>, vector<1x1x8xf32>
    %183 = vector.shape_cast %182 : vector<1x1x8xf32> to vector<1x8xf32>
    %cst_161 = arith.constant dense<0.000000e+00> : vector<1x256xf32>
    %184 = tpu.matmul %183, %181, %cst_161 {dimension_numbers = #tpu.dot_dimension_numbers<[1], [0], [0], [1], [0, 0, 1, 1], [], []>} : vector<1x8xf32>, vector<8x256xf32>, vector<1x256xf32> -> vector<1x256xf32>
    %185 = arith.addf %180, %184 : vector<1x256xf32>
    %c0_162 = arith.constant 0 : index
    %c145_163 = arith.constant 145 : index
    %186 = vector.load %arg10[%c0_162, %c145_163] : memref<8x512xf32, #tpu.memory_space<vmem>>, vector<8x256xf32>
    %187 = vector.broadcast %6 : vector<1x256xf32> to vector<8x256xf32>
    %188 = arith.mulf %186, %187 : vector<8x256xf32>
    %c8_164 = arith.constant 8 : index
    %c0_165 = arith.constant 0 : index
    %c0_166 = arith.constant 0 : index
    %189 = vector.load %arg7[%c8_164, %c0_165, %c0_166] : memref<9x1x8xf32, #tpu.memory_space<vmem>>, vector<1x1x8xf32>
    %190 = vector.shape_cast %189 : vector<1x1x8xf32> to vector<1x8xf32>
    %cst_167 = arith.constant dense<0.000000e+00> : vector<1x256xf32>
    %191 = tpu.matmul %190, %188, %cst_167 {dimension_numbers = #tpu.dot_dimension_numbers<[1], [0], [0], [1], [0, 0, 1, 1], [], []>} : vector<1x8xf32>, vector<8x256xf32>, vector<1x256xf32> -> vector<1x256xf32>
    %192 = arith.addf %185, %191 : vector<1x256xf32>
    %c0_168 = arith.constant 0 : index
    %c0_169 = arith.constant 0 : index
    %193 = vector.load %arg8[%c0_168, %c0_169] : memref<1x1xf32, #tpu.memory_space<vmem>>, vector<1x1xf32>
    %194 = vector.broadcast %193 : vector<1x1xf32> to vector<1x256xf32>
    %195 = arith.addf %192, %194 : vector<1x256xf32>
    %196 = arith.negf %195 : vector<1x256xf32>
    %197 = math.exp %196 : vector<1x256xf32>
    %cst_170 = arith.constant 1.000000e+00 : f32
    %198 = vector.broadcast %cst_170 : f32 to vector<1x256xf32>
    %199 = arith.addf %198, %197 : vector<1x256xf32>
    %200 = arith.divf %198, %199 : vector<1x256xf32>
    %c0_171 = arith.constant 0 : index
    %c0_172 = arith.constant 0 : index
    %c0_173 = arith.constant 0 : index
    %201 = vector.load %arg9[%c0_171, %c0_172, %c0_173] : memref<1x1x256xf32, #tpu.memory_space<vmem>>, vector<1x1x256xf32>
    %202 = vector.shape_cast %201 : vector<1x1x256xf32> to vector<1x256xf32>
    %203 = vector.shape_cast %200 : vector<1x256xf32> to vector<1x1x256xf32>
    tpu.vector_store %arg9[%c0_171, %c0_172, %c0_173], %203 {strides = array<i32>} : memref<1x1x256xf32, #tpu.memory_space<vmem>>, vector<1x1x256xf32>,
    return
  }
  func.func @transform_0(%arg0: i32) -> (i32, i32, i32) {
    %c0_i32 = arith.constant 0 : i32
    %c0_i32_0 = arith.constant 0 : i32
    %c0_i32_1 = arith.constant 0 : i32
    return %arg0, %c0_i32, %c0_i32_0 : i32, i32, i32
  }
  func.func @transform_1(%arg0: i32) -> (i32, i32) {
    %c0_i32 = arith.constant 0 : i32
    %c0_i32_0 = arith.constant 0 : i32
    %c0_i32_1 = arith.constant 0 : i32
    return %c0_i32, %c0_i32_0 : i32, i32
  }
  func.func @transform_2(%arg0: i32) -> (i32, i32, i32) {
    %c0_i32 = arith.constant 0 : i32
    %c0_i32_0 = arith.constant 0 : i32
    %c0_i32_1 = arith.constant 0 : i32
    %c0_i32_2 = arith.constant 0 : i32
    return %c0_i32, %c0_i32_0, %c0_i32_1 : i32, i32, i32
  }
  func.func @transform_3(%arg0: i32) -> (i32, i32) {
    %c0_i32 = arith.constant 0 : i32
    %c0_i32_0 = arith.constant 0 : i32
    %c0_i32_1 = arith.constant 0 : i32
    return %c0_i32, %c0_i32_0 : i32, i32
  }
  func.func @transform_4(%arg0: i32) -> (i32, i32, i32) {
    %c0_i32 = arith.constant 0 : i32
    %c0_i32_0 = arith.constant 0 : i32
    %c0_i32_1 = arith.constant 0 : i32
    %c0_i32_2 = arith.constant 0 : i32
    return %c0_i32, %c0_i32_0, %c0_i32_1 : i32, i32, i32
  }
  func.func @transform_5(%arg0: i32) -> (i32, i32) {
    %c0_i32 = arith.constant 0 : i32
    %c0_i32_0 = arith.constant 0 : i32
    %c0_i32_1 = arith.constant 0 : i32
    return %c0_i32, %c0_i32_0 : i32, i32
  }
  func.func @transform_6(%arg0: i32) -> (i32, i32, i32) {
    %c0_i32 = arith.constant 0 : i32
    %c0_i32_0 = arith.constant 0 : i32
    %c0_i32_1 = arith.constant 0 : i32
    %c0_i32_2 = arith.constant 0 : i32
    return %c0_i32, %c0_i32_0, %c0_i32_1 : i32, i32, i32
  }
  func.func @transform_7(%arg0: i32) -> (i32, i32) {
    %c0_i32 = arith.constant 0 : i32
    %c0_i32_0 = arith.constant 0 : i32
    %c0_i32_1 = arith.constant 0 : i32
    return %c0_i32, %c0_i32_0 : i32, i32
  }
  func.func @transform_8(%arg0: i32) -> (i32, i32, i32) {
    %c0_i32 = arith.constant 0 : i32
    %c0_i32_0 = arith.constant 0 : i32
    %c0_i32_1 = arith.constant 0 : i32
    return %arg0, %c0_i32, %c0_i32_0 : i32, i32, i32
  }
}

</mosaic_0001>

<llo_original>
// kernel: tpu_custom_call.1
$region0: #{tpu_custom_call.1}
  #allocation0 [shape = 'u32[]', space=smem, size = 0x4, offset = 0x4, fixed_abs, tag = 'smem constant byte address 0x4 - core index']
  #allocation1 [shape = 'u32[144,128]{1,0:T(1,128)}', space=vmem, size = 0x12000, scoped, tag = 'internal scratch']
  #allocation2 [shape = 'f32[8,512]{1,0:T(8,128)}', space=vmem, size = 0x4000, scoped, tag = 'scratch operand']
  #allocation3 [shape = 'f32[1,1]{1,0:T(1,128)S(1)}', space=vmem, size = 0x200, scoped, tag = 'scoped memory for tpu_custom_call.1']
  %s0 = inlined_call_operand.vmem [shape: f32[2,4,256], index: 0, kind: input, shape index: {}]
  %s1 = inlined_call_operand.vmem [shape: f32[2,256], index: 1, kind: input, shape index: {}]
  %s2 = inlined_call_operand.vmem [shape: f32[9,8,4], index: 2, kind: input, shape index: {}]
  %s3 = inlined_call_operand.vmem [shape: f32[8,1], index: 3, kind: input, shape index: {}]
  %s4 = inlined_call_operand.vmem [shape: f32[9,8,8], index: 4, kind: input, shape index: {}]
  %s5 = inlined_call_operand.vmem [shape: f32[8,1], index: 5, kind: input, shape index: {}]
  %s6 = inlined_call_operand.vmem [shape: f32[9,1,8], index: 6, kind: input, shape index: {}]
  %s7 = inlined_call_operand.<no memory space> [shape: f32[1,1], index: 7, kind: input, shape index: {}]
  %s8 = inlined_call_operand.hbm [shape: f32[2,1,256], index: 8, kind: output, shape index: {}]
  %s9 = sld [smem:[#allocation0]]
  $region65: #{tpu_custom_call.1} parent=0
    _
  %s11 = ssub.s32 1, %s9
  %s12 = scalar_select 0, %s11, %s9
  %v13 = vstv %s7
  %14 = vst [vmem:[#allocation3] sm:$0x1] %v13
  $region1: #{tpu_custom_call.1} parent=0
    #allocation4 [shape = 'u8[2048]{0}', space=vmem, size = 0x800, scoped, tag = 'output window, operand 0']
    #allocation5 [shape = 's32[2]{0}', space=sflag, size = 0x8, scoped, tag = 'scoped memory for tpu_custom_call.1']
    %15 = vsyncpa [#allocation5], 0
    %s16 = scalar_lea.sflag [#allocation5], 1
    %17 = vsyncpa %s16, 0
    loop: start=0, step=1, limit=4
    $region2: #{tpu_custom_call.1} parent=1 // loop_pre_header
      _
    $region3: #{tpu_custom_call.1} parent=1 // loop_header
      %s19 = sphi 0, %s23
      %p20 = scmp.ge.s32.totalorder %s19, 4
      %s29 = sphi 0, %s31
      %s32 = sphi 0, %s29
      %s33 = sphi 0, %s32
      %s49 = sphi 0, %s33
      %s53 = sphi 0, %s53
      %s55 = sphi 0, %s53
      %s56 = sphi 0, %s55
      %s70 = sphi 0, %s56
      %s74 = sphi 0, %s74
      %s76 = sphi 0, %s74
      %s77 = sphi 0, %s76
      %s91 = sphi 0, %s77
      %s95 = sphi 0, %s95
      %s97 = sphi 0, %s95
      %s98 = sphi 0, %s97
      %s112 = sphi 0, %s98
      %s116 = sphi 0, %s116
      %s118 = sphi 0, %s116
      %s119 = sphi 0, %s118
      %s133 = sphi 0, %s119
      %s137 = sphi 0, %s137
      %s139 = sphi 0, %s137
      %s140 = sphi 0, %s139
      %s154 = sphi 0, %s140
      %s158 = sphi 0, %s158
      %s160 = sphi 0, %s158
      %s161 = sphi 0, %s160
      %s175 = sphi 0, %s161
      %s179 = sphi 0, %s179
      %s181 = sphi 0, %s179
      %s182 = sphi 0, %s181
      %s196 = sphi 0, %s182
      %s202 = sphi 0, %s204
      %s205 = sphi 0, %s202
      %s206 = sphi 0, %s205
      %s222 = sphi 0, %s206
    $region4: #{tpu_custom_call.1} parent=1 // loop_header_branch
      %22 = sbr.rel (%p20) target = $region8
    $region5: #{tpu_custom_call.1} parent=1 // loop_body
      %s24 = ssub.s32 %s19, 1
      %s25 = ssub.s32 %s19, 2
      %s26 = sadd.s32 %s19, 1
      %s27 = ssub.s32 %s19, %s26
      %p28 = scmp.eq.s32.totalorder %s27, 0
      %s30 = sadd.s32 %s29, 1
      %s31 = scalar_select %p28, %s29, %s30
      %p34 = pneg %p28
      %p35 = scmp.eq.s32.totalorder %s19, 1
      %p36 = por %p34, %p35
      %p37 = scmp.ne.s32.totalorder %s29, %s32
      %p38 = scmp.eq.s32.totalorder %s19, 0
      %p39 = por %p37, %p38
      %p40 = scmp.ne.s32.totalorder %s29, %s32
      %p41 = scmp.eq.s32.totalorder %s24, 1
      %p42 = por %p40, %p41
      %p43 = scmp.ne.s32.totalorder %s32, %s33
      %p44 = scmp.eq.s32.totalorder %s24, 0
      %p45 = por %p43, %p44
      %p46 = scmp.ne.s32.totalorder %s32, %s33
      %p47 = scmp.eq.s32.totalorder %s25, 1
      %p48 = por %p46, %p47
      %p50 = scmp.ne.s32.totalorder %s33, %s49
      %p51 = scmp.eq.s32.totalorder %s25, 0
      %p52 = por %p50, %p51
      %s54 = sadd.s32 %s53, 1
      %p57 = scmp.eq.s32.totalorder %s19, 1
      %p58 = scmp.ne.s32.totalorder %s53, %s55
      %p59 = scmp.eq.s32.totalorder %s19, 0
      %p60 = por %p58, %p59
      %p61 = scmp.ne.s32.totalorder %s53, %s55
      %p62 = scmp.eq.s32.totalorder %s24, 1
      %p63 = por %p61, %p62
      %p64 = scmp.ne.s32.totalorder %s55, %s56
      %p65 = scmp.eq.s32.totalorder %s24, 0
      %p66 = por %p64, %p65
      %p67 = scmp.ne.s32.totalorder %s55, %s56
      %p68 = scmp.eq.s32.totalorder %s25, 1
      %p69 = por %p67, %p68
      %p71 = scmp.ne.s32.totalorder %s56, %s70
      %p72 = scmp.eq.s32.totalorder %s25, 0
      %p73 = por %p71, %p72
      %s75 = sadd.s32 %s74, 1
      %p78 = scmp.eq.s32.totalorder %s19, 1
      %p79 = scmp.ne.s32.totalorder %s74, %s76
      %p80 = scmp.eq.s32.totalorder %s19, 0
      %p81 = por %p79, %p80
      %p82 = scmp.ne.s32.totalorder %s74, %s76
      %p83 = scmp.eq.s32.totalorder %s24, 1
      %p84 = por %p82, %p83
      %p85 = scmp.ne.s32.totalorder %s76, %s77
      %p86 = scmp.eq.s32.totalorder %s24, 0
      %p87 = por %p85, %p86
      %p88 = scmp.ne.s32.totalorder %s76, %s77
      %p89 = scmp.eq.s32.totalorder %s25, 1
      %p90 = por %p88, %p89
      %p92 = scmp.ne.s32.totalorder %s77, %s91
      %p93 = scmp.eq.s32.totalorder %s25, 0
      %p94 = por %p92, %p93
      %s96 = sadd.s32 %s95, 1
      %p99 = scmp.eq.s32.totalorder %s19, 1
      %p100 = scmp.ne.s32.totalorder %s95, %s97
      %p101 = scmp.eq.s32.totalorder %s19, 0
      %p102 = por %p100, %p101
      %p103 = scmp.ne.s32.totalorder %s95, %s97
      %p104 = scmp.eq.s32.totalorder %s24, 1
      %p105 = por %p103, %p104
      %p106 = scmp.ne.s32.totalorder %s97, %s98
      %p107 = scmp.eq.s32.totalorder %s24, 0
      %p108 = por %p106, %p107
      %p109 = scmp.ne.s32.totalorder %s97, %s98
      %p110 = scmp.eq.s32.totalorder %s25, 1
      %p111 = por %p109, %p110
      %p113 = scmp.ne.s32.totalorder %s98, %s112
      %p114 = scmp.eq.s32.totalorder %s25, 0
      %p115 = por %p113, %p114
      %s117 = sadd.s32 %s116, 1
      %p120 = scmp.eq.s32.totalorder %s19, 1
      %p121 = scmp.ne.s32.totalorder %s116, %s118
      %p122 = scmp.eq.s32.totalorder %s19, 0
      %p123 = por %p121, %p122
      %p124 = scmp.ne.s32.totalorder %s116, %s118
      %p125 = scmp.eq.s32.totalorder %s24, 1
      %p126 = por %p124, %p125
      %p127 = scmp.ne.s32.totalorder %s118, %s119
      %p128 = scmp.eq.s32.totalorder %s24, 0
      %p129 = por %p127, %p128
      %p130 = scmp.ne.s32.totalorder %s118, %s119
      %p131 = scmp.eq.s32.totalorder %s25, 1
      %p132 = por %p130, %p131
      %p134 = scmp.ne.s32.totalorder %s119, %s133
      %p135 = scmp.eq.s32.totalorder %s25, 0
      %p136 = por %p134, %p135
      %s138 = sadd.s32 %s137, 1
      %p141 = scmp.eq.s32.totalorder %s19, 1
      %p142 = scmp.ne.s32.totalorder %s137, %s139
      %p143 = scmp.eq.s32.totalorder %s19, 0
      %p144 = por %p142, %p143
      %p145 = scmp.ne.s32.totalorder %s137, %s139
      %p146 = scmp.eq.s32.totalorder %s24, 1
      %p147 = por %p145, %p146
      %p148 = scmp.ne.s32.totalorder %s139, %s140
      %p149 = scmp.eq.s32.totalorder %s24, 0
      %p150 = por %p148, %p149
      %p151 = scmp.ne.s32.totalorder %s139, %s140
      %p152 = scmp.eq.s32.totalorder %s25, 1
      %p153 = por %p151, %p152
      %p155 = scmp.ne.s32.totalorder %s140, %s154
      %p156 = scmp.eq.s32.totalorder %s25, 0
      %p157 = por %p155, %p156
      %s159 = sadd.s32 %s158, 1
      %p162 = scmp.eq.s32.totalorder %s19, 1
      %p163 = scmp.ne.s32.totalorder %s158, %s160
      %p164 = scmp.eq.s32.totalorder %s19, 0
      %p165 = por %p163, %p164
      %p166 = scmp.ne.s32.totalorder %s158, %s160
      %p167 = scmp.eq.s32.totalorder %s24, 1
      %p168 = por %p166, %p167
      %p169 = scmp.ne.s32.totalorder %s160, %s161
      %p170 = scmp.eq.s32.totalorder %s24, 0
      %p171 = por %p169, %p170
      %p172 = scmp.ne.s32.totalorder %s160, %s161
      %p173 = scmp.eq.s32.totalorder %s25, 1
      %p174 = por %p172, %p173
      %p176 = scmp.ne.s32.totalorder %s161, %s175
      %p177 = scmp.eq.s32.totalorder %s25, 0
      %p178 = por %p176, %p177
      %s180 = sadd.s32 %s179, 1
      %p183 = scmp.eq.s32.totalorder %s19, 1
      %p184 = scmp.ne.s32.totalorder %s179, %s181
      %p185 = scmp.eq.s32.totalorder %s19, 0
      %p186 = por %p184, %p185
      %p187 = scmp.ne.s32.totalorder %s179, %s181
      %p188 = scmp.eq.s32.totalorder %s24, 1
      %p189 = por %p187, %p188
      %p190 = scmp.ne.s32.totalorder %s181, %s182
      %p191 = scmp.eq.s32.totalorder %s24, 0
      %p192 = por %p190, %p191
      %p193 = scmp.ne.s32.totalorder %s181, %s182
      %p194 = scmp.eq.s32.totalorder %s25, 1
      %p195 = por %p193, %p194
      %p197 = scmp.ne.s32.totalorder %s182, %s196
      %p198 = scmp.eq.s32.totalorder %s25, 0
      %p199 = por %p197, %p198
      %s200 = ssub.s32 %s19, %s26
      %p201 = scmp.eq.s32.totalorder %s200, 0
      %s203 = sadd.s32 %s202, 1
      %s204 = scalar_select %p201, %s202, %s203
      %p207 = pneg %p201
      %p208 = scmp.eq.s32.totalorder %s19, 1
      %p209 = por %p207, %p208
      %p210 = scmp.ne.s32.totalorder %s202, %s205
      %p211 = scmp.eq.s32.totalorder %s19, 0
      %p212 = por %p210, %p211
      %p213 = scmp.ne.s32.totalorder %s202, %s205
      %p214 = scmp.eq.s32.totalorder %s24, 1
      %p215 = por %p213, %p214
      %p216 = scmp.ne.s32.totalorder %s205, %s206
      %p217 = scmp.eq.s32.totalorder %s24, 0
      %p218 = por %p216, %p217
      %p219 = scmp.ne.s32.totalorder %s205, %s206
      %p220 = scmp.eq.s32.totalorder %s25, 1
      %p221 = por %p219, %p220
      %p223 = scmp.ne.s32.totalorder %s206, %s222
      %p224 = scmp.eq.s32.totalorder %s25, 0
      %p225 = por %p223, %p224
      %p226 = scmp.le.s32.totalorder 1, %s19
      %p227 = scmp.lt.s32.totalorder %s19, 3
      %p228 = pnand %p226, %p227
      %p229 = pneg %p228
      // Predicated region
      $region9: #{tpu_custom_call.1} parent=5 // pred_check
        _
      $region10: #{tpu_custom_call.1} parent=5 // pred_check_branch
        %231 = sbr.rel (%p228) target = $region12
      $region11: #{tpu_custom_call.1} parent=5 // pred_region
        %s232 = ssub.s32 %s19, 1
        // Predicated region
        $region13: #{tpu_custom_call.1} parent=11 // pred_check
          %p233 = pneg %p66
        $region14: #{tpu_custom_call.1} parent=11 // pred_check_branch
          %235 = sbr.rel (%p233) target = $region16
        $region15: #{tpu_custom_call.1} parent=11 // pred_region
          _
        $region16: #{tpu_custom_call.1} parent=11 // pred_fallthru
          _
        // Predicated region
        $region17: #{tpu_custom_call.1} parent=11 // pred_check
          %p236 = pneg %p87
        $region18: #{tpu_custom_call.1} parent=11 // pred_check_branch
          %238 = sbr.rel (%p236) target = $region20
        $region19: #{tpu_custom_call.1} parent=11 // pred_region
          _
        $region20: #{tpu_custom_call.1} parent=11 // pred_fallthru
          _
        // Predicated region
        $region21: #{tpu_custom_call.1} parent=11 // pred_check
          %p239 = pneg %p108
        $region22: #{tpu_custom_call.1} parent=11 // pred_check_branch
          %241 = sbr.rel (%p239) target = $region24
        $region23: #{tpu_custom_call.1} parent=11 // pred_region
          _
        $region24: #{tpu_custom_call.1} parent=11 // pred_fallthru
          _
        // Predicated region
        $region25: #{tpu_custom_call.1} parent=11 // pred_check
          %p242 = pneg %p129
        $region26: #{tpu_custom_call.1} parent=11 // pred_check_branch
          %244 = sbr.rel (%p242) target = $region28
        $region27: #{tpu_custom_call.1} parent=11 // pred_region
          _
        $region28: #{tpu_custom_call.1} parent=11 // pred_fallthru
          _
        // Predicated region
        $region29: #{tpu_custom_call.1} parent=11 // pred_check
          %p245 = pneg %p150
        $region30: #{tpu_custom_call.1} parent=11 // pred_check_branch
          %247 = sbr.rel (%p245) target = $region32
        $region31: #{tpu_custom_call.1} parent=11 // pred_region
          _
        $region32: #{tpu_custom_call.1} parent=11 // pred_fallthru
          _
        // Predicated region
        $region33: #{tpu_custom_call.1} parent=11 // pred_check
          %p248 = pneg %p171
        $region34: #{tpu_custom_call.1} parent=11 // pred_check_branch
          %250 = sbr.rel (%p248) target = $region36
        $region35: #{tpu_custom_call.1} parent=11 // pred_region
          _
        $region36: #{tpu_custom_call.1} parent=11 // pred_fallthru
          _
        // Predicated region
        $region37: #{tpu_custom_call.1} parent=11 // pred_check
          %p251 = pneg %p192
        $region38: #{tpu_custom_call.1} parent=11 // pred_check_branch
          %253 = sbr.rel (%p251) target = $region40
        $region39: #{tpu_custom_call.1} parent=11 // pred_region
          _
        $region40: #{tpu_custom_call.1} parent=11 // pred_fallthru
          _
      $region12: #{tpu_custom_call.1} parent=5 // pred_fallthru
        _
      %p254 = scmp.lt.s32.totalorder %s19, 2
      // Predicated region
      $region41: #{tpu_custom_call.1} parent=5 // pred_check
        %p255 = pneg %p254
      $region42: #{tpu_custom_call.1} parent=5 // pred_check_branch
        %257 = sbr.rel (%p255) target = $region44
      $region43: #{tpu_custom_call.1} parent=5 // pred_region
        // Predicated region
        $region45: #{tpu_custom_call.1} parent=43 // pred_check
          %p258 = pneg %p39
        $region46: #{tpu_custom_call.1} parent=43 // pred_check_branch
          %260 = sbr.rel (%p258) target = $region48
        $region47: #{tpu_custom_call.1} parent=43 // pred_region
          %p261 = scmp.lt.s32.totalorder %s19, 1
          %s262 = scalar_select %p261, %s19, 1
          %s263 = smul.addr %s262, 2
          %s264 = smul.addr %s263, 4
          %s265 = scalar_lea.vmem %s0, %s264
        $region48: #{tpu_custom_call.1} parent=43 // pred_fallthru
          _
      $region44: #{tpu_custom_call.1} parent=5 // pred_fallthru
        _
      %p266 = scmp.le.s32.totalorder 1, %s19
      %p267 = scmp.lt.s32.totalorder %s19, 3
      %p268 = pnand %p266, %p267
      %p269 = pneg %p268
      // Predicated region
      $region49: #{tpu_custom_call.1} parent=5 // pred_check
        _
      $region50: #{tpu_custom_call.1} parent=5 // pred_check_branch
        %271 = sbr.rel (%p268) target = $region52
      $region51: #{tpu_custom_call.1} parent=5 // pred_region
        %s272 = ssub.s32 %s19, 1
        %p273 = scmp.lt.s32.totalorder %s24, 1
        %s274 = scalar_select %p273, %s24, 1
        %s275 = smul.addr %s274, 2
        %s276 = smul.addr %s275, 4
        %s277 = scalar_lea.vmem %s0, %s276
        %p278 = pneg %p45
        %p279 = pneg %p42
        %p280 = pneg %p66
        %p281 = pneg %p63
        %p282 = pneg %p87
        %p283 = pneg %p84
        %p284 = pneg %p108
        %p285 = pneg %p105
        %p286 = pneg %p129
        %p287 = pneg %p126
        %p288 = pneg %p150
        %p289 = pneg %p147
        %p290 = pneg %p171
        %p291 = pneg %p168
        %p292 = pneg %p192
        %p293 = pneg %p189
        %p294 = pneg %p218
        %p295 = pneg %p215
        %s296 = sand.u32 %s205, 1
        %s297 = scalar_lea.sflag [#allocation5], %s296
        %s298 = sand.u32 %s205, 1
        %s299 = smul.addr %s298, 2
        %s300 = scalar_lea.vmem [#allocation4], %s299
        %p301 = scmp.lt.s32.totalorder %s24, 1
        %s302 = scalar_select %p301, %s24, 1
        %s303 = smul.addr %s302, 2
        %s304 = smul.addr %s303, 4
        %s305 = scalar_lea.vmem %s0, %s304
        %306 = vst [vmem:[#allocation2] sm:$0xff] 0.0
        %307 = vst [vmem:[#allocation2 + $0x8] sm:$0xff] 0.0
        %308 = vst [vmem:[#allocation2 + $0x10] sm:$0xff] 0.0
        %309 = vst [vmem:[#allocation2 + $0x18] sm:$0xff] 0.0
        %v310 = vld [vmem:[%s305] sm:$0xff]
        %v312 = vcombine.high %v310, %v310
        %314 = vst [vmem:[#allocation2 + $0x8] sm:$0xf] %v310
        %315 = vst [vmem:[#allocation2 + $0x10] sm:$0xf] %v312
        %v316 = vld [vmem:[%s1] ss:$2 sm:$0x3]
        %s317 = scalar_lea.vmem %s1, 1
        %v318 = vld [vmem:[%s317] ss:$2 sm:$0x3]
        %v319 = vld [vmem:[#allocation2] sm:$0xf]
        %v320 = vld [vmem:[#allocation2 + $0x8] sm:$0xf]
        %v321 = vld [vmem:[#allocation2 + $0x10] sm:$0xf]
        %v323 = vlaneseq
        %v324 = vshrl.u32 %v323, 7
        %v325 = vsub.s32 0, %v324
        %v326 = vrot.slane %v316, %v325
        %v327 = vlaneseq
        %v328 = vshrl.u32 %v327, 7
        %v329 = vsub.s32 1, %v328
        %v330 = vrot.slane %v316, %v329
        %331 = vrot.lane.b32.xlu0 %v326, 111
        %v332 = vpop.permute.xlu0 %331
        %333 = vrot.lane.b32.xlu0 %v330, 111
        %v334 = vpop.permute.xlu0 %333
        %vm335 = vcmask 908288
        %v336 = vsel %vm335, %v332, %v334
        %v340 = vmul.f32 %v319, %v332
        %v341 = vmul.f32 %v320, %v336
        %v342 = vmul.f32 %v321, %v334
        %v343 = vld [vmem:[%s2] sm:$0xff]
        %s344 = scalar_lea.vmem %s2, 8
        %v345 = vld [vmem:[%s344] sm:$0xff]
        %349 = vrot.lane.b32.xlu0 %v319, 16
        %v350 = vpop.permute.xlu0 %349
        %351 = vrot.lane.b32.xlu0 %v320, 16
        %v352 = vpop.permute.xlu0 %351
        %353 = vrot.lane.b32.xlu0 %v321, 16
        %v354 = vpop.permute.xlu0 %353
        %vm355 = vcmask 130048
        %v356 = vsel %vm355, %v350, %v352
        %v357 = vsel %vm355, %v352, %v354
        %vm358 = vcmask 31744
        %v360 = vsel %vm358, %v345, 0
        %vm362 = vcmask 1043456
        %v363 = vsel %vm362, %v356, 0
        %v365 = vsel %vm362, %v357, 0
        %367 = vmatprep.subr.mxu0 %v365
        %368 = vmatpush1.msra.mxu0 %v363
        %369 = vmatprep.subr.mxu0 0.0
        %370 = vmatpush1.msra.mxu0 0.0
        %371 = vmatprep.subr.mxu0 0.0
        %372 = vmatpush1.msra.mxu0 0.0
        %373 = vmatprep.subr.mxu0 0.0
        %374 = vmatpush1.msra.mxu0 0.0
        %375 = vmatprep.subr.mxu0 0.0
        %376 = vmatpush1.msra.mxu0 0.0
        %377 = vmatprep.subr.mxu0 0.0
        %378 = vmatpush1.msra.mxu0 0.0
        %379 = vmatprep.subr.mxu0 0.0
        %380 = vmatpush1.msra.mxu0 0.0
        %381 = vmatprep.subr.mxu0 0.0
        %382 = vmatpush1.msra.mxu0 0.0
        %383 = vmatprep.subr.mxu0 0.0
        %384 = vmatpush1.msra.mxu0 0.0
        %385 = vmatprep.subr.mxu0 0.0
        %386 = vmatpush1.msra.mxu0 0.0
        %387 = vmatprep.subr.mxu0 0.0
        %388 = vmatpush1.msra.mxu0 0.0
        %389 = vmatprep.subr.mxu0 0.0
        %390 = vmatpush1.msra.mxu0 0.0
        %391 = vmatprep.subr.mxu0 0.0
        %392 = vmatpush1.msra.mxu0 0.0
        %393 = vmatprep.subr.mxu0 0.0
        %394 = vmatpush1.msra.mxu0 0.0
        %395 = vmatprep.subr.mxu0 0.0
        %396 = vmatpush1.msra.mxu0 0.0
        %397 = vmatprep.subr.mxu0 0.0
        %398 = vmatpush1.msra.mxu0 0.0
        %399 = vmatprep.subr.mxu0 0.0
        %400 = vmatpush1.msra.mxu0 0.0
        %401 = vmatprep.subr.mxu0 0.0
        %402 = vmatpush1.msra.mxu0 0.0
        %403 = vmatprep.subr.mxu0 0.0
        %404 = vmatpush1.msra.mxu0 0.0
        %405 = vmatprep.subr.mxu0 0.0
        %406 = vmatpush1.msra.mxu0 0.0
        %407 = vmatprep.subr.mxu0 0.0
        %408 = vmatpush1.msra.mxu0 0.0
        %409 = vmatprep.subr.mxu0 0.0
        %410 = vmatpush1.msra.mxu0 0.0
        %411 = vmatprep.subr.mxu0 0.0
        %412 = vmatpush1.msra.mxu0 0.0
        %413 = vmatprep.subr.mxu0 0.0
        %414 = vmatpush1.msra.mxu0 0.0
        %415 = vmatprep.subr.mxu0 0.0
        %416 = vmatpush1.msra.mxu0 0.0
        %417 = vmatprep.subr.mxu0 0.0
        %418 = vmatpush1.msra.mxu0 0.0
        %419 = vmatprep.subr.mxu0 0.0
        %420 = vmatpush1.msra.mxu0 0.0
        %421 = vmatprep.subr.mxu0 0.0
        %422 = vmatpush1.msra.mxu0 0.0
        %423 = vmatprep.subr.mxu0 0.0
        %424 = vmatpush1.msra.mxu0 0.0
        %425 = vmatprep.subr.mxu0 0.0
        %426 = vmatpush1.msra.mxu0 0.0
        %427 = vmatprep.subr.mxu0 0.0
        %428 = vmatpush1.msra.mxu0 0.0
        %429 = vmatprep.subr.mxu0 0.0
        %430 = vmatpush1.msra.mxu0 0.0
        %431 = vmatprep.mubr.f32.mxu0 0.0
        %432 = vmatmul.mubr.f32.gmra.mrb[0].mxu0 %v360
        %v433 = vpop.f32.mrb[0].mxu0
        %v434 = vadd.f32 0.0, %v433
        %v435 = vpop.f32.mrb[0].mxu0
        %v436 = vadd.f32 0.0, %v435
        %437 = vdwg.mxu0
        %441 = vrot.lane.b32.xlu0 %v340, 17
        %v442 = vpop.permute.xlu0 %441
        %443 = vrot.lane.b32.xlu0 %v341, 17
        %v444 = vpop.permute.xlu0 %443
        %445 = vrot.lane.b32.xlu0 %v342, 17
        %v446 = vpop.permute.xlu0 %445
        %vm447 = vcmask 138240
        %v448 = vsel %vm447, %v442, %v444
        %v449 = vsel %vm447, %v444, %v446
        %v451 = vsel %vm358, %v343, 0
        %v453 = vsel %vm362, %v448, 0
        %v455 = vsel %vm362, %v449, 0
        %457 = vmatprep.subr.mxu0 %v455
        %458 = vmatpush1.msra.mxu0 %v453
        %459 = vmatprep.subr.mxu0 0.0
        %460 = vmatpush1.msra.mxu0 0.0
        %461 = vmatprep.subr.mxu0 0.0
        %462 = vmatpush1.msra.mxu0 0.0
        %463 = vmatprep.subr.mxu0 0.0
        %464 = vmatpush1.msra.mxu0 0.0
        %465 = vmatprep.subr.mxu0 0.0
        %466 = vmatpush1.msra.mxu0 0.0
        %467 = vmatprep.subr.mxu0 0.0
        %468 = vmatpush1.msra.mxu0 0.0
        %469 = vmatprep.subr.mxu0 0.0
        %470 = vmatpush1.msra.mxu0 0.0
        %471 = vmatprep.subr.mxu0 0.0
        %472 = vmatpush1.msra.mxu0 0.0
        %473 = vmatprep.subr.mxu0 0.0
        %474 = vmatpush1.msra.mxu0 0.0
        %475 = vmatprep.subr.mxu0 0.0
        %476 = vmatpush1.msra.mxu0 0.0
        %477 = vmatprep.subr.mxu0 0.0
        %478 = vmatpush1.msra.mxu0 0.0
        %479 = vmatprep.subr.mxu0 0.0
        %480 = vmatpush1.msra.mxu0 0.0
        %481 = vmatprep.subr.mxu0 0.0
        %482 = vmatpush1.msra.mxu0 0.0
        %483 = vmatprep.subr.mxu0 0.0
        %484 = vmatpush1.msra.mxu0 0.0
        %485 = vmatprep.subr.mxu0 0.0
        %486 = vmatpush1.msra.mxu0 0.0
        %487 = vmatprep.subr.mxu0 0.0
        %488 = vmatpush1.msra.mxu0 0.0
        %489 = vmatprep.subr.mxu0 0.0
        %490 = vmatpush1.msra.mxu0 0.0
        %491 = vmatprep.subr.mxu0 0.0
        %492 = vmatpush1.msra.mxu0 0.0
        %493 = vmatprep.subr.mxu0 0.0
        %494 = vmatpush1.msra.mxu0 0.0
        %495 = vmatprep.subr.mxu0 0.0
        %496 = vmatpush1.msra.mxu0 0.0
        %497 = vmatprep.subr.mxu0 0.0
        %498 = vmatpush1.msra.mxu0 0.0
        %499 = vmatprep.subr.mxu0 0.0
        %500 = vmatpush1.msra.mxu0 0.0
        %501 = vmatprep.subr.mxu0 0.0
        %502 = vmatpush1.msra.mxu0 0.0
        %503 = vmatprep.subr.mxu0 0.0
        %504 = vmatpush1.msra.mxu0 0.0
        %505 = vmatprep.subr.mxu0 0.0
        %506 = vmatpush1.msra.mxu0 0.0
        %507 = vmatprep.subr.mxu0 0.0
        %508 = vmatpush1.msra.mxu0 0.0
        %509 = vmatprep.subr.mxu0 0.0
        %510 = vmatpush1.msra.mxu0 0.0
        %511 = vmatprep.subr.mxu0 0.0
        %512 = vmatpush1.msra.mxu0 0.0
        %513 = vmatprep.subr.mxu0 0.0
        %514 = vmatpush1.msra.mxu0 0.0
        %515 = vmatprep.subr.mxu0 0.0
        %516 = vmatpush1.msra.mxu0 0.0
        %517 = vmatprep.subr.mxu0 0.0
        %518 = vmatpush1.msra.mxu0 0.0
        %519 = vmatprep.subr.mxu0 0.0
        %520 = vmatpush1.msra.mxu0 0.0
        %521 = vmatprep.mubr.f32.mxu0 0.0
        %522 = vmatmul.mubr.f32.gmra.mrb[0].mxu0 %v451
        %v523 = vpop.f32.mrb[0].mxu0
        %v524 = vadd.f32 %v434, %v523
        %v525 = vpop.f32.mrb[0].mxu0
        %v526 = vadd.f32 %v436, %v525
        %527 = vdwg.mxu0
        %v529 = vlaneseq
        %v530 = vshrl.u32 %v529, 7
        %v531 = vsub.s32 0, %v530
        %v532 = vrot.slane %v318, %v531
        %v533 = vlaneseq
        %v534 = vshrl.u32 %v533, 7
        %v535 = vsub.s32 1, %v534
        %v536 = vrot.slane %v318, %v535
        %537 = vrot.lane.b32.xlu0 %v532, 113
        %v538 = vpop.permute.xlu0 %537
        %539 = vrot.lane.b32.xlu0 %v536, 113
        %v540 = vpop.permute.xlu0 %539
        %vm541 = vcmask 924672
        %v542 = vsel %vm541, %v538, %v540
        %v546 = vmul.f32 %v319, %v538
        %v547 = vmul.f32 %v320, %v542
        %v548 = vmul.f32 %v321, %v540
        %s549 = scalar_lea.vmem %s2, 16
        %v550 = vld [vmem:[%s549] sm:$0xff]
        %554 = vrot.lane.b32.xlu0 %v546, 15
        %v555 = vpop.permute.xlu0 %554
        %556 = vrot.lane.b32.xlu0 %v547, 15
        %v557 = vpop.permute.xlu0 %556
        %558 = vrot.lane.b32.xlu0 %v548, 15
        %v559 = vpop.permute.xlu0 %558
        %vm560 = vcmask 121856
        %v561 = vsel %vm560, %v555, %v557
        %v562 = vsel %vm560, %v557, %v559
        %v564 = vsel %vm358, %v550, 0
        %v566 = vsel %vm362, %v561, 0
        %v568 = vsel %vm362, %v562, 0
        %570 = vmatprep.subr.mxu0 %v568
        %571 = vmatpush1.msra.mxu0 %v566
        %572 = vmatprep.subr.mxu0 0.0
        %573 = vmatpush1.msra.mxu0 0.0
        %574 = vmatprep.subr.mxu0 0.0
        %575 = vmatpush1.msra.mxu0 0.0
        %576 = vmatprep.subr.mxu0 0.0
        %577 = vmatpush1.msra.mxu0 0.0
        %578 = vmatprep.subr.mxu0 0.0
        %579 = vmatpush1.msra.mxu0 0.0
        %580 = vmatprep.subr.mxu0 0.0
        %581 = vmatpush1.msra.mxu0 0.0
        %582 = vmatprep.subr.mxu0 0.0
        %583 = vmatpush1.msra.mxu0 0.0
        %584 = vmatprep.subr.mxu0 0.0
        %585 = vmatpush1.msra.mxu0 0.0
        %586 = vmatprep.subr.mxu0 0.0
        %587 = vmatpush1.msra.mxu0 0.0
        %588 = vmatprep.subr.mxu0 0.0
        %589 = vmatpush1.msra.mxu0 0.0
        %590 = vmatprep.subr.mxu0 0.0
        %591 = vmatpush1.msra.mxu0 0.0
        %592 = vmatprep.subr.mxu0 0.0
        %593 = vmatpush1.msra.mxu0 0.0
        %594 = vmatprep.subr.mxu0 0.0
        %595 = vmatpush1.msra.mxu0 0.0
        %596 = vmatprep.subr.mxu0 0.0
        %597 = vmatpush1.msra.mxu0 0.0
        %598 = vmatprep.subr.mxu0 0.0
        %599 = vmatpush1.msra.mxu0 0.0
        %600 = vmatprep.subr.mxu0 0.0
        %601 = vmatpush1.msra.mxu0 0.0
        %602 = vmatprep.subr.mxu0 0.0
        %603 = vmatpush1.msra.mxu0 0.0
        %604 = vmatprep.subr.mxu0 0.0
        %605 = vmatpush1.msra.mxu0 0.0
        %606 = vmatprep.subr.mxu0 0.0
        %607 = vmatpush1.msra.mxu0 0.0
        %608 = vmatprep.subr.mxu0 0.0
        %609 = vmatpush1.msra.mxu0 0.0
        %610 = vmatprep.subr.mxu0 0.0
        %611 = vmatpush1.msra.mxu0 0.0
        %612 = vmatprep.subr.mxu0 0.0
        %613 = vmatpush1.msra.mxu0 0.0
        %614 = vmatprep.subr.mxu0 0.0
        %615 = vmatpush1.msra.mxu0 0.0
        %616 = vmatprep.subr.mxu0 0.0
        %617 = vmatpush1.msra.mxu0 0.0
        %618 = vmatprep.subr.mxu0 0.0
        %619 = vmatpush1.msra.mxu0 0.0
        %620 = vmatprep.subr.mxu0 0.0
        %621 = vmatpush1.msra.mxu0 0.0
        %622 = vmatprep.subr.mxu0 0.0
        %623 = vmatpush1.msra.mxu0 0.0
        %624 = vmatprep.subr.mxu0 0.0
        %625 = vmatpush1.msra.mxu0 0.0
        %626 = vmatprep.subr.mxu0 0.0
        %627 = vmatpush1.msra.mxu0 0.0
        %628 = vmatprep.subr.mxu0 0.0
        %629 = vmatpush1.msra.mxu0 0.0
        %630 = vmatprep.subr.mxu0 0.0
        %631 = vmatpush1.msra.mxu0 0.0
        %632 = vmatprep.subr.mxu0 0.0
        %633 = vmatpush1.msra.mxu0 0.0
        %634 = vmatprep.mubr.f32.mxu0 0.0
        %635 = vmatmul.mubr.f32.gmra.mrb[0].mxu0 %v564
        %v636 = vpop.f32.mrb[0].mxu0
        %v637 = vadd.f32 0.0, %v636
        %v638 = vpop.f32.mrb[0].mxu0
        %v639 = vadd.f32 0.0, %v638
        %640 = vdwg.mxu0
        %v641 = vadd.f32 %v524, %v637
        %v642 = vadd.f32 %v526, %v639
        %643 = vrot.lane.b32.xlu0 %v326, 127
        %v644 = vpop.permute.xlu0 %643
        %645 = vrot.lane.b32.xlu0 %v330, 127
        %v646 = vpop.permute.xlu0 %645
        %vm647 = vcmask 1039360
        %v648 = vsel %vm647, %v644, %v646
        %v652 = vmul.f32 %v319, %v644
        %v653 = vmul.f32 %v320, %v648
        %v654 = vmul.f32 %v321, %v646
        %s655 = scalar_lea.vmem %s2, 24
        %v656 = vld [vmem:[%s655] sm:$0xff]
        %660 = vrot.lane.b32.xlu0 %v652, 1
        %v661 = vpop.permute.xlu0 %660
        %662 = vrot.lane.b32.xlu0 %v653, 1
        %v663 = vpop.permute.xlu0 %662
        %664 = vrot.lane.b32.xlu0 %v654, 1
        %v665 = vpop.permute.xlu0 %664
        %vm666 = vcmask 7168
        %v667 = vsel %vm666, %v661, %v663
        %v668 = vsel %vm666, %v663, %v665
        %v670 = vsel %vm358, %v656, 0
        %v672 = vsel %vm362, %v667, 0
        %v674 = vsel %vm362, %v668, 0
        %676 = vmatprep.subr.mxu0 %v674
        %677 = vmatpush1.msra.mxu0 %v672
        %678 = vmatprep.subr.mxu0 0.0
        %679 = vmatpush1.msra.mxu0 0.0
        %680 = vmatprep.subr.mxu0 0.0
        %681 = vmatpush1.msra.mxu0 0.0
        %682 = vmatprep.subr.mxu0 0.0
        %683 = vmatpush1.msra.mxu0 0.0
        %684 = vmatprep.subr.mxu0 0.0
        %685 = vmatpush1.msra.mxu0 0.0
        %686 = vmatprep.subr.mxu0 0.0
        %687 = vmatpush1.msra.mxu0 0.0
        %688 = vmatprep.subr.mxu0 0.0
        %689 = vmatpush1.msra.mxu0 0.0
        %690 = vmatprep.subr.mxu0 0.0
        %691 = vmatpush1.msra.mxu0 0.0
        %692 = vmatprep.subr.mxu0 0.0
        %693 = vmatpush1.msra.mxu0 0.0
        %694 = vmatprep.subr.mxu0 0.0
        %695 = vmatpush1.msra.mxu0 0.0
        %696 = vmatprep.subr.mxu0 0.0
        %697 = vmatpush1.msra.mxu0 0.0
        %698 = vmatprep.subr.mxu0 0.0
        %699 = vmatpush1.msra.mxu0 0.0
        %700 = vmatprep.subr.mxu0 0.0
        %701 = vmatpush1.msra.mxu0 0.0
        %702 = vmatprep.subr.mxu0 0.0
        %703 = vmatpush1.msra.mxu0 0.0
        %704 = vmatprep.subr.mxu0 0.0
        %705 = vmatpush1.msra.mxu0 0.0
        %706 = vmatprep.subr.mxu0 0.0
        %707 = vmatpush1.msra.mxu0 0.0
        %708 = vmatprep.subr.mxu0 0.0
        %709 = vmatpush1.msra.mxu0 0.0
        %710 = vmatprep.subr.mxu0 0.0
        %711 = vmatpush1.msra.mxu0 0.0
        %712 = vmatprep.subr.mxu0 0.0
        %713 = vmatpush1.msra.mxu0 0.0
        %714 = vmatprep.subr.mxu0 0.0
        %715 = vmatpush1.msra.mxu0 0.0
        %716 = vmatprep.subr.mxu0 0.0
        %717 = vmatpush1.msra.mxu0 0.0
        %718 = vmatprep.subr.mxu0 0.0
        %719 = vmatpush1.msra.mxu0 0.0
        %720 = vmatprep.subr.mxu0 0.0
        %721 = vmatpush1.msra.mxu0 0.0
        %722 = vmatprep.subr.mxu0 0.0
        %723 = vmatpush1.msra.mxu0 0.0
        %724 = vmatprep.subr.mxu0 0.0
        %725 = vmatpush1.msra.mxu0 0.0
        %726 = vmatprep.subr.mxu0 0.0
        %727 = vmatpush1.msra.mxu0 0.0
        %728 = vmatprep.subr.mxu0 0.0
        %729 = vmatpush1.msra.mxu0 0.0
        %730 = vmatprep.subr.mxu0 0.0
        %731 = vmatpush1.msra.mxu0 0.0
        %732 = vmatprep.subr.mxu0 0.0
        %733 = vmatpush1.msra.mxu0 0.0
        %734 = vmatprep.subr.mxu0 0.0
        %735 = vmatpush1.msra.mxu0 0.0
        %736 = vmatprep.subr.mxu0 0.0
        %737 = vmatpush1.msra.mxu0 0.0
        %738 = vmatprep.subr.mxu0 0.0
        %739 = vmatpush1.msra.mxu0 0.0
        %740 = vmatprep.mubr.f32.mxu0 0.0
        %741 = vmatmul.mubr.f32.gmra.mrb[0].mxu0 %v670
        %v742 = vpop.f32.mrb[0].mxu0
        %v743 = vadd.f32 0.0, %v742
        %v744 = vpop.f32.mrb[0].mxu0
        %v745 = vadd.f32 0.0, %v744
        %746 = vdwg.mxu0
        %v747 = vadd.f32 %v641, %v743
        %v748 = vadd.f32 %v642, %v745
        %s749 = scalar_lea.vmem %s2, 32
        %v750 = vld [vmem:[%s749] sm:$0xff]
        %v752 = vsel %vm358, %v750, 0
        %v754 = vsel %vm362, %v320, 0
        %v756 = vsel %vm362, %v321, 0
        %758 = vmatprep.subr.mxu0 %v756
        %759 = vmatpush1.msra.mxu0 %v754
        %760 = vmatprep.subr.mxu0 0.0
        %761 = vmatpush1.msra.mxu0 0.0
        %762 = vmatprep.subr.mxu0 0.0
        %763 = vmatpush1.msra.mxu0 0.0
        %764 = vmatprep.subr.mxu0 0.0
        %765 = vmatpush1.msra.mxu0 0.0
        %766 = vmatprep.subr.mxu0 0.0
        %767 = vmatpush1.msra.mxu0 0.0
        %768 = vmatprep.subr.mxu0 0.0
        %769 = vmatpush1.msra.mxu0 0.0
        %770 = vmatprep.subr.mxu0 0.0
        %771 = vmatpush1.msra.mxu0 0.0
        %772 = vmatprep.subr.mxu0 0.0
        %773 = vmatpush1.msra.mxu0 0.0
        %774 = vmatprep.subr.mxu0 0.0
        %775 = vmatpush1.msra.mxu0 0.0
        %776 = vmatprep.subr.mxu0 0.0
        %777 = vmatpush1.msra.mxu0 0.0
        %778 = vmatprep.subr.mxu0 0.0
        %779 = vmatpush1.msra.mxu0 0.0
        %780 = vmatprep.subr.mxu0 0.0
        %781 = vmatpush1.msra.mxu0 0.0
        %782 = vmatprep.subr.mxu0 0.0
        %783 = vmatpush1.msra.mxu0 0.0
        %784 = vmatprep.subr.mxu0 0.0
        %785 = vmatpush1.msra.mxu0 0.0
        %786 = vmatprep.subr.mxu0 0.0
        %787 = vmatpush1.msra.mxu0 0.0
        %788 = vmatprep.subr.mxu0 0.0
        %789 = vmatpush1.msra.mxu0 0.0
        %790 = vmatprep.subr.mxu0 0.0
        %791 = vmatpush1.msra.mxu0 0.0
        %792 = vmatprep.subr.mxu0 0.0
        %793 = vmatpush1.msra.mxu0 0.0
        %794 = vmatprep.subr.mxu0 0.0
        %795 = vmatpush1.msra.mxu0 0.0
        %796 = vmatprep.subr.mxu0 0.0
        %797 = vmatpush1.msra.mxu0 0.0
        %798 = vmatprep.subr.mxu0 0.0
        %799 = vmatpush1.msra.mxu0 0.0
        %800 = vmatprep.subr.mxu0 0.0
        %801 = vmatpush1.msra.mxu0 0.0
        %802 = vmatprep.subr.mxu0 0.0
        %803 = vmatpush1.msra.mxu0 0.0
        %804 = vmatprep.subr.mxu0 0.0
        %805 = vmatpush1.msra.mxu0 0.0
        %806 = vmatprep.subr.mxu0 0.0
        %807 = vmatpush1.msra.mxu0 0.0
        %808 = vmatprep.subr.mxu0 0.0
        %809 = vmatpush1.msra.mxu0 0.0
        %810 = vmatprep.subr.mxu0 0.0
        %811 = vmatpush1.msra.mxu0 0.0
        %812 = vmatprep.subr.mxu0 0.0
        %813 = vmatpush1.msra.mxu0 0.0
        %814 = vmatprep.subr.mxu0 0.0
        %815 = vmatpush1.msra.mxu0 0.0
        %816 = vmatprep.subr.mxu0 0.0
        %817 = vmatpush1.msra.mxu0 0.0
        %818 = vmatprep.subr.mxu0 0.0
        %819 = vmatpush1.msra.mxu0 0.0
        %820 = vmatprep.subr.mxu0 0.0
        %821 = vmatpush1.msra.mxu0 0.0
        %822 = vmatprep.mubr.f32.mxu0 0.0
        %823 = vmatmul.mubr.f32.gmra.mrb[0].mxu0 %v752
        %v824 = vpop.f32.mrb[0].mxu0
        %v825 = vadd.f32 0.0, %v824
        %v826 = vpop.f32.mrb[0].mxu0
        %v827 = vadd.f32 0.0, %v826
        %828 = vdwg.mxu0
        %v829 = vadd.f32 %v747, %v825
        %v830 = vadd.f32 %v748, %v827
        %v831 = vld [vmem:[#allocation2 + $0x8] sm:$0xf]
        %v832 = vld [vmem:[#allocation2 + $0x10] sm:$0xf]
        %v833 = vld [vmem:[#allocation2 + $0x18] sm:$0xf]
        %834 = vrot.lane.b32.xlu0 %v532, 1
        %v835 = vpop.permute.xlu0 %834
        %836 = vrot.lane.b32.xlu0 %v536, 1
        %v837 = vpop.permute.xlu0 %836
        %v838 = vsel %vm666, %v835, %v837
        %v842 = vmul.f32 %v831, %v835
        %v843 = vmul.f32 %v832, %v838
        %v844 = vmul.f32 %v833, %v837
        %s845 = scalar_lea.vmem %s2, 40
        %v846 = vld [vmem:[%s845] sm:$0xff]
        %850 = vrot.lane.b32.xlu0 %v842, 127
        %v851 = vpop.permute.xlu0 %850
        %852 = vrot.lane.b32.xlu0 %v843, 127
        %v853 = vpop.permute.xlu0 %852
        %854 = vrot.lane.b32.xlu0 %v844, 127
        %v855 = vpop.permute.xlu0 %854
        %v856 = vsel %vm647, %v851, %v853
        %v857 = vsel %vm647, %v853, %v855
        %v859 = vsel %vm358, %v846, 0
        %v861 = vsel %vm362, %v856, 0
        %v863 = vsel %vm362, %v857, 0
        %865 = vmatprep.subr.mxu0 %v863
        %866 = vmatpush1.msra.mxu0 %v861
        %867 = vmatprep.subr.mxu0 0.0
        %868 = vmatpush1.msra.mxu0 0.0
        %869 = vmatprep.subr.mxu0 0.0
        %870 = vmatpush1.msra.mxu0 0.0
        %871 = vmatprep.subr.mxu0 0.0
        %872 = vmatpush1.msra.mxu0 0.0
        %873 = vmatprep.subr.mxu0 0.0
        %874 = vmatpush1.msra.mxu0 0.0
        %875 = vmatprep.subr.mxu0 0.0
        %876 = vmatpush1.msra.mxu0 0.0
        %877 = vmatprep.subr.mxu0 0.0
        %878 = vmatpush1.msra.mxu0 0.0
        %879 = vmatprep.subr.mxu0 0.0
        %880 = vmatpush1.msra.mxu0 0.0
        %881 = vmatprep.subr.mxu0 0.0
        %882 = vmatpush1.msra.mxu0 0.0
        %883 = vmatprep.subr.mxu0 0.0
        %884 = vmatpush1.msra.mxu0 0.0
        %885 = vmatprep.subr.mxu0 0.0
        %886 = vmatpush1.msra.mxu0 0.0
        %887 = vmatprep.subr.mxu0 0.0
        %888 = vmatpush1.msra.mxu0 0.0
        %889 = vmatprep.subr.mxu0 0.0
        %890 = vmatpush1.msra.mxu0 0.0
        %891 = vmatprep.subr.mxu0 0.0
        %892 = vmatpush1.msra.mxu0 0.0
        %893 = vmatprep.subr.mxu0 0.0
        %894 = vmatpush1.msra.mxu0 0.0
        %895 = vmatprep.subr.mxu0 0.0
        %896 = vmatpush1.msra.mxu0 0.0
        %897 = vmatprep.subr.mxu0 0.0
        %898 = vmatpush1.msra.mxu0 0.0
        %899 = vmatprep.subr.mxu0 0.0
        %900 = vmatpush1.msra.mxu0 0.0
        %901 = vmatprep.subr.mxu0 0.0
        %902 = vmatpush1.msra.mxu0 0.0
        %903 = vmatprep.subr.mxu0 0.0
        %904 = vmatpush1.msra.mxu0 0.0
        %905 = vmatprep.subr.mxu0 0.0
        %906 = vmatpush1.msra.mxu0 0.0
        %907 = vmatprep.subr.mxu0 0.0
        %908 = vmatpush1.msra.mxu0 0.0
        %909 = vmatprep.subr.mxu0 0.0
        %910 = vmatpush1.msra.mxu0 0.0
        %911 = vmatprep.subr.mxu0 0.0
        %912 = vmatpush1.msra.mxu0 0.0
        %913 = vmatprep.subr.mxu0 0.0
        %914 = vmatpush1.msra.mxu0 0.0
        %915 = vmatprep.subr.mxu0 0.0
        %916 = vmatpush1.msra.mxu0 0.0
        %917 = vmatprep.subr.mxu0 0.0
        %918 = vmatpush1.msra.mxu0 0.0
        %919 = vmatprep.subr.mxu0 0.0
        %920 = vmatpush1.msra.mxu0 0.0
        %921 = vmatprep.subr.mxu0 0.0
        %922 = vmatpush1.msra.mxu0 0.0
        %923 = vmatprep.subr.mxu0 0.0
        %924 = vmatpush1.msra.mxu0 0.0
        %925 = vmatprep.subr.mxu0 0.0
        %926 = vmatpush1.msra.mxu0 0.0
        %927 = vmatprep.subr.mxu0 0.0
        %928 = vmatpush1.msra.mxu0 0.0
        %929 = vmatprep.mubr.f32.mxu0 0.0
        %930 = vmatmul.mubr.f32.gmra.mrb[0].mxu0 %v859
        %v931 = vpop.f32.mrb[0].mxu0
        %v932 = vadd.f32 0.0, %v931
        %v933 = vpop.f32.mrb[0].mxu0
        %v934 = vadd.f32 0.0, %v933
        %935 = vdwg.mxu0
        %v936 = vadd.f32 %v829, %v932
        %v937 = vadd.f32 %v830, %v934
        %938 = vrot.lane.b32.xlu0 %v326, 15
        %v939 = vpop.permute.xlu0 %938
        %940 = vrot.lane.b32.xlu0 %v330, 15
        %v941 = vpop.permute.xlu0 %940
        %v942 = vsel %vm560, %v939, %v941
        %v946 = vmul.f32 %v831, %v939
        %v947 = vmul.f32 %v832, %v942
        %v948 = vmul.f32 %v833, %v941
        %s949 = scalar_lea.vmem %s2, 48
        %v950 = vld [vmem:[%s949] sm:$0xff]
        %954 = vrot.lane.b32.xlu0 %v946, 113
        %v955 = vpop.permute.xlu0 %954
        %956 = vrot.lane.b32.xlu0 %v947, 113
        %v957 = vpop.permute.xlu0 %956
        %958 = vrot.lane.b32.xlu0 %v948, 113
        %v959 = vpop.permute.xlu0 %958
        %v960 = vsel %vm541, %v955, %v957
        %v961 = vsel %vm541, %v957, %v959
        %v963 = vsel %vm358, %v950, 0
        %v965 = vsel %vm362, %v960, 0
        %v967 = vsel %vm362, %v961, 0
        %969 = vmatprep.subr.mxu0 %v967
        %970 = vmatpush1.msra.mxu0 %v965
        %971 = vmatprep.subr.mxu0 0.0
        %972 = vmatpush1.msra.mxu0 0.0
        %973 = vmatprep.subr.mxu0 0.0
        %974 = vmatpush1.msra.mxu0 0.0
        %975 = vmatprep.subr.mxu0 0.0
        %976 = vmatpush1.msra.mxu0 0.0
        %977 = vmatprep.subr.mxu0 0.0
        %978 = vmatpush1.msra.mxu0 0.0
        %979 = vmatprep.subr.mxu0 0.0
        %980 = vmatpush1.msra.mxu0 0.0
        %981 = vmatprep.subr.mxu0 0.0
        %982 = vmatpush1.msra.mxu0 0.0
        %983 = vmatprep.subr.mxu0 0.0
        %984 = vmatpush1.msra.mxu0 0.0
        %985 = vmatprep.subr.mxu0 0.0
        %986 = vmatpush1.msra.mxu0 0.0
        %987 = vmatprep.subr.mxu0 0.0
        %988 = vmatpush1.msra.mxu0 0.0
        %989 = vmatprep.subr.mxu0 0.0
        %990 = vmatpush1.msra.mxu0 0.0
        %991 = vmatprep.subr.mxu0 0.0
        %992 = vmatpush1.msra.mxu0 0.0
        %993 = vmatprep.subr.mxu0 0.0
        %994 = vmatpush1.msra.mxu0 0.0
        %995 = vmatprep.subr.mxu0 0.0
        %996 = vmatpush1.msra.mxu0 0.0
        %997 = vmatprep.subr.mxu0 0.0
        %998 = vmatpush1.msra.mxu0 0.0
        %999 = vmatprep.subr.mxu0 0.0
        %1000 = vmatpush1.msra.mxu0 0.0
        %1001 = vmatprep.subr.mxu0 0.0
        %1002 = vmatpush1.msra.mxu0 0.0
        %1003 = vmatprep.subr.mxu0 0.0
        %1004 = vmatpush1.msra.mxu0 0.0
        %1005 = vmatprep.subr.mxu0 0.0
        %1006 = vmatpush1.msra.mxu0 0.0
        %1007 = vmatprep.subr.mxu0 0.0
        %1008 = vmatpush1.msra.mxu0 0.0
        %1009 = vmatprep.subr.mxu0 0.0
        %1010 = vmatpush1.msra.mxu0 0.0
        %1011 = vmatprep.subr.mxu0 0.0
        %1012 = vmatpush1.msra.mxu0 0.0
        %1013 = vmatprep.subr.mxu0 0.0
        %1014 = vmatpush1.msra.mxu0 0.0
        %1015 = vmatprep.subr.mxu0 0.0
        %1016 = vmatpush1.msra.mxu0 0.0
        %1017 = vmatprep.subr.mxu0 0.0
        %1018 = vmatpush1.msra.mxu0 0.0
        %1019 = vmatprep.subr.mxu0 0.0
        %1020 = vmatpush1.msra.mxu0 0.0
        %1021 = vmatprep.subr.mxu0 0.0
        %1022 = vmatpush1.msra.mxu0 0.0
        %1023 = vmatprep.subr.mxu0 0.0
        %1024 = vmatpush1.msra.mxu0 0.0
        %1025 = vmatprep.subr.mxu0 0.0
        %1026 = vmatpush1.msra.mxu0 0.0
        %1027 = vmatprep.subr.mxu0 0.0
        %1028 = vmatpush1.msra.mxu0 0.0
        %1029 = vmatprep.subr.mxu0 0.0
        %1030 = vmatpush1.msra.mxu0 0.0
        %1031 = vmatprep.subr.mxu0 0.0
        %1032 = vmatpush1.msra.mxu0 0.0
        %1033 = vmatprep.mubr.f32.mxu0 0.0
        %1034 = vmatmul.mubr.f32.gmra.mrb[0].mxu0 %v963
        %v1035 = vpop.f32.mrb[0].mxu0
        %v1036 = vadd.f32 0.0, %v1035
        %v1037 = vpop.f32.mrb[0].mxu0
        %v1038 = vadd.f32 0.0, %v1037
        %1039 = vdwg.mxu0
        %v1040 = vadd.f32 %v936, %v1036
        %v1041 = vadd.f32 %v937, %v1038
        %s1042 = scalar_lea.vmem %s2, 56
        %v1043 = vld [vmem:[%s1042] sm:$0xff]
        %1047 = vrot.lane.b32.xlu0 %v831, 112
        %v1048 = vpop.permute.xlu0 %1047
        %1049 = vrot.lane.b32.xlu0 %v832, 112
        %v1050 = vpop.permute.xlu0 %1049
        %1051 = vrot.lane.b32.xlu0 %v833, 112
        %v1052 = vpop.permute.xlu0 %1051
        %vm1053 = vcmask 916480
        %v1054 = vsel %vm1053, %v1048, %v1050
        %v1055 = vsel %vm1053, %v1050, %v1052
        %v1057 = vsel %vm358, %v1043, 0
        %v1059 = vsel %vm362, %v1054, 0
        %v1061 = vsel %vm362, %v1055, 0
        %1063 = vmatprep.subr.mxu0 %v1061
        %1064 = vmatpush1.msra.mxu0 %v1059
        %1065 = vmatprep.subr.mxu0 0.0
        %1066 = vmatpush1.msra.mxu0 0.0
        %1067 = vmatprep.subr.mxu0 0.0
        %1068 = vmatpush1.msra.mxu0 0.0
        %1069 = vmatprep.subr.mxu0 0.0
        %1070 = vmatpush1.msra.mxu0 0.0
        %1071 = vmatprep.subr.mxu0 0.0
        %1072 = vmatpush1.msra.mxu0 0.0
        %1073 = vmatprep.subr.mxu0 0.0
        %1074 = vmatpush1.msra.mxu0 0.0
        %1075 = vmatprep.subr.mxu0 0.0
        %1076 = vmatpush1.msra.mxu0 0.0
        %1077 = vmatprep.subr.mxu0 0.0
        %1078 = vmatpush1.msra.mxu0 0.0
        %1079 = vmatprep.subr.mxu0 0.0
        %1080 = vmatpush1.msra.mxu0 0.0
        %1081 = vmatprep.subr.mxu0 0.0
        %1082 = vmatpush1.msra.mxu0 0.0
        %1083 = vmatprep.subr.mxu0 0.0
        %1084 = vmatpush1.msra.mxu0 0.0
        %1085 = vmatprep.subr.mxu0 0.0
        %1086 = vmatpush1.msra.mxu0 0.0
        %1087 = vmatprep.subr.mxu0 0.0
        %1088 = vmatpush1.msra.mxu0 0.0
        %1089 = vmatprep.subr.mxu0 0.0
        %1090 = vmatpush1.msra.mxu0 0.0
        %1091 = vmatprep.subr.mxu0 0.0
        %1092 = vmatpush1.msra.mxu0 0.0
        %1093 = vmatprep.subr.mxu0 0.0
        %1094 = vmatpush1.msra.mxu0 0.0
        %1095 = vmatprep.subr.mxu0 0.0
        %1096 = vmatpush1.msra.mxu0 0.0
        %1097 = vmatprep.subr.mxu0 0.0
        %1098 = vmatpush1.msra.mxu0 0.0
        %1099 = vmatprep.subr.mxu0 0.0
        %1100 = vmatpush1.msra.mxu0 0.0
        %1101 = vmatprep.subr.mxu0 0.0
        %1102 = vmatpush1.msra.mxu0 0.0
        %1103 = vmatprep.subr.mxu0 0.0
        %1104 = vmatpush1.msra.mxu0 0.0
        %1105 = vmatprep.subr.mxu0 0.0
        %1106 = vmatpush1.msra.mxu0 0.0
        %1107 = vmatprep.subr.mxu0 0.0
        %1108 = vmatpush1.msra.mxu0 0.0
        %1109 = vmatprep.subr.mxu0 0.0
        %1110 = vmatpush1.msra.mxu0 0.0
        %1111 = vmatprep.subr.mxu0 0.0
        %1112 = vmatpush1.msra.mxu0 0.0
        %1113 = vmatprep.subr.mxu0 0.0
        %1114 = vmatpush1.msra.mxu0 0.0
        %1115 = vmatprep.subr.mxu0 0.0
        %1116 = vmatpush1.msra.mxu0 0.0
        %1117 = vmatprep.subr.mxu0 0.0
        %1118 = vmatpush1.msra.mxu0 0.0
        %1119 = vmatprep.subr.mxu0 0.0
        %1120 = vmatpush1.msra.mxu0 0.0
        %1121 = vmatprep.subr.mxu0 0.0
        %1122 = vmatpush1.msra.mxu0 0.0
        %1123 = vmatprep.subr.mxu0 0.0
        %1124 = vmatpush1.msra.mxu0 0.0
        %1125 = vmatprep.subr.mxu0 0.0
        %1126 = vmatpush1.msra.mxu0 0.0
        %1127 = vmatprep.mubr.f32.mxu0 0.0
        %1128 = vmatmul.mubr.f32.gmra.mrb[0].mxu0 %v1057
        %v1129 = vpop.f32.mrb[0].mxu0
        %v1130 = vadd.f32 0.0, %v1129
        %v1131 = vpop.f32.mrb[0].mxu0
        %v1132 = vadd.f32 0.0, %v1131
        %1133 = vdwg.mxu0
        %v1134 = vadd.f32 %v1040, %v1130
        %v1135 = vadd.f32 %v1041, %v1132
        %1136 = vrot.lane.b32.xlu0 %v532, 17
        %v1137 = vpop.permute.xlu0 %1136
        %1138 = vrot.lane.b32.xlu0 %v536, 17
        %v1139 = vpop.permute.xlu0 %1138
        %v1140 = vsel %vm447, %v1137, %v1139
        %v1144 = vmul.f32 %v831, %v1137
        %v1145 = vmul.f32 %v832, %v1140
        %v1146 = vmul.f32 %v833, %v1139
        %s1147 = scalar_lea.vmem %s2, 64
        %v1148 = vld [vmem:[%s1147] sm:$0xff]
        %1152 = vrot.lane.b32.xlu0 %v1144, 111
        %v1153 = vpop.permute.xlu0 %1152
        %1154 = vrot.lane.b32.xlu0 %v1145, 111
        %v1155 = vpop.permute.xlu0 %1154
        %1156 = vrot.lane.b32.xlu0 %v1146, 111
        %v1157 = vpop.permute.xlu0 %1156
        %v1158 = vsel %vm335, %v1153, %v1155
        %v1159 = vsel %vm335, %v1155, %v1157
        %v1161 = vsel %vm358, %v1148, 0
        %v1163 = vsel %vm362, %v1158, 0
        %v1165 = vsel %vm362, %v1159, 0
        %1167 = vmatprep.subr.mxu0 %v1165
        %1168 = vmatpush1.msra.mxu0 %v1163
        %1169 = vmatprep.subr.mxu0 0.0
        %1170 = vmatpush1.msra.mxu0 0.0
        %1171 = vmatprep.subr.mxu0 0.0
        %1172 = vmatpush1.msra.mxu0 0.0
        %1173 = vmatprep.subr.mxu0 0.0
        %1174 = vmatpush1.msra.mxu0 0.0
        %1175 = vmatprep.subr.mxu0 0.0
        %1176 = vmatpush1.msra.mxu0 0.0
        %1177 = vmatprep.subr.mxu0 0.0
        %1178 = vmatpush1.msra.mxu0 0.0
        %1179 = vmatprep.subr.mxu0 0.0
        %1180 = vmatpush1.msra.mxu0 0.0
        %1181 = vmatprep.subr.mxu0 0.0
        %1182 = vmatpush1.msra.mxu0 0.0
        %1183 = vmatprep.subr.mxu0 0.0
        %1184 = vmatpush1.msra.mxu0 0.0
        %1185 = vmatprep.subr.mxu0 0.0
        %1186 = vmatpush1.msra.mxu0 0.0
        %1187 = vmatprep.subr.mxu0 0.0
        %1188 = vmatpush1.msra.mxu0 0.0
        %1189 = vmatprep.subr.mxu0 0.0
        %1190 = vmatpush1.msra.mxu0 0.0
        %1191 = vmatprep.subr.mxu0 0.0
        %1192 = vmatpush1.msra.mxu0 0.0
        %1193 = vmatprep.subr.mxu0 0.0
        %1194 = vmatpush1.msra.mxu0 0.0
        %1195 = vmatprep.subr.mxu0 0.0
        %1196 = vmatpush1.msra.mxu0 0.0
        %1197 = vmatprep.subr.mxu0 0.0
        %1198 = vmatpush1.msra.mxu0 0.0
        %1199 = vmatprep.subr.mxu0 0.0
        %1200 = vmatpush1.msra.mxu0 0.0
        %1201 = vmatprep.subr.mxu0 0.0
        %1202 = vmatpush1.msra.mxu0 0.0
        %1203 = vmatprep.subr.mxu0 0.0
        %1204 = vmatpush1.msra.mxu0 0.0
        %1205 = vmatprep.subr.mxu0 0.0
        %1206 = vmatpush1.msra.mxu0 0.0
        %1207 = vmatprep.subr.mxu0 0.0
        %1208 = vmatpush1.msra.mxu0 0.0
        %1209 = vmatprep.subr.mxu0 0.0
        %1210 = vmatpush1.msra.mxu0 0.0
        %1211 = vmatprep.subr.mxu0 0.0
        %1212 = vmatpush1.msra.mxu0 0.0
        %1213 = vmatprep.subr.mxu0 0.0
        %1214 = vmatpush1.msra.mxu0 0.0
        %1215 = vmatprep.subr.mxu0 0.0
        %1216 = vmatpush1.msra.mxu0 0.0
        %1217 = vmatprep.subr.mxu0 0.0
        %1218 = vmatpush1.msra.mxu0 0.0
        %1219 = vmatprep.subr.mxu0 0.0
        %1220 = vmatpush1.msra.mxu0 0.0
        %1221 = vmatprep.subr.mxu0 0.0
        %1222 = vmatpush1.msra.mxu0 0.0
        %1223 = vmatprep.subr.mxu0 0.0
        %1224 = vmatpush1.msra.mxu0 0.0
        %1225 = vmatprep.subr.mxu0 0.0
        %1226 = vmatpush1.msra.mxu0 0.0
        %1227 = vmatprep.subr.mxu0 0.0
        %1228 = vmatpush1.msra.mxu0 0.0
        %1229 = vmatprep.subr.mxu0 0.0
        %1230 = vmatpush1.msra.mxu0 0.0
        %1231 = vmatprep.mubr.f32.mxu0 0.0
        %1232 = vmatmul.mubr.f32.gmra.mrb[0].mxu0 %v1161
        %v1233 = vpop.f32.mrb[0].mxu0
        %v1234 = vadd.f32 0.0, %v1233
        %v1235 = vpop.f32.mrb[0].mxu0
        %v1236 = vadd.f32 0.0, %v1235
        %1237 = vdwg.mxu0
        %v1238 = vadd.f32 %v1134, %v1234
        %v1239 = vadd.f32 %v1135, %v1236
        %v1240 = vld [vmem:[%s3] sm:$0xff]
        %1242 = vset.pattern.permute.xlu0 0
        %1243 = vperm.xlu0 %1242, %v1240
        %v1244 = vpop.permute.xlu0 %1243
        %v1246 = vadd.f32 %v1238, %v1244
        %v1247 = vadd.f32 %v1239, %v1244
        %v1248 = vmax.f32 %v1246, 0.0
        %v1249 = vmax.f32 %v1247, 0.0
        %1250 = vst [vmem:[#allocation2 + $0x8] sm:$0xff] %v1248
        %1251 = vst [vmem:[#allocation2 + $0x10] sm:$0xff] %v1249
        %v1252 = vld [vmem:[#allocation2] sm:$0xff]
        %v1253 = vld [vmem:[#allocation2 + $0x8] sm:$0xff]
        %v1254 = vld [vmem:[#allocation2 + $0x10] sm:$0xff]
        %v1255 = vmul.f32 %v1252, %v332
        %v1256 = vmul.f32 %v1253, %v336
        %v1257 = vmul.f32 %v1254, %v334
        %v1258 = vld [vmem:[%s4] sm:$0xff]
        %s1259 = scalar_lea.vmem %s4, 8
        %v1260 = vld [vmem:[%s1259] sm:$0xff]
        %1264 = vrot.lane.b32.xlu0 %v1252, 16
        %v1265 = vpop.permute.xlu0 %1264
        %1266 = vrot.lane.b32.xlu0 %v1253, 16
        %v1267 = vpop.permute.xlu0 %1266
        %1268 = vrot.lane.b32.xlu0 %v1254, 16
        %v1269 = vpop.permute.xlu0 %1268
        %v1270 = vsel %vm355, %v1265, %v1267
        %v1271 = vsel %vm355, %v1267, %v1269
        %vm1274 = vcmask 64512
        %v1276 = vsel %vm1274, %v1260, 0
        %1278 = vmatprep.subr.mxu0 %v1271
        %1279 = vmatpush1.msra.mxu0 %v1270
        %1280 = vmatprep.subr.mxu0 0.0
        %1281 = vmatpush1.msra.mxu0 0.0
        %1282 = vmatprep.subr.mxu0 0.0
        %1283 = vmatpush1.msra.mxu0 0.0
        %1284 = vmatprep.subr.mxu0 0.0
        %1285 = vmatpush1.msra.mxu0 0.0
        %1286 = vmatprep.subr.mxu0 0.0
        %1287 = vmatpush1.msra.mxu0 0.0
        %1288 = vmatprep.subr.mxu0 0.0
        %1289 = vmatpush1.msra.mxu0 0.0
        %1290 = vmatprep.subr.mxu0 0.0
        %1291 = vmatpush1.msra.mxu0 0.0
        %1292 = vmatprep.subr.mxu0 0.0
        %1293 = vmatpush1.msra.mxu0 0.0
        %1294 = vmatprep.subr.mxu0 0.0
        %1295 = vmatpush1.msra.mxu0 0.0
        %1296 = vmatprep.subr.mxu0 0.0
        %1297 = vmatpush1.msra.mxu0 0.0
        %1298 = vmatprep.subr.mxu0 0.0
        %1299 = vmatpush1.msra.mxu0 0.0
        %1300 = vmatprep.subr.mxu0 0.0
        %1301 = vmatpush1.msra.mxu0 0.0
        %1302 = vmatprep.subr.mxu0 0.0
        %1303 = vmatpush1.msra.mxu0 0.0
        %1304 = vmatprep.subr.mxu0 0.0
        %1305 = vmatpush1.msra.mxu0 0.0
        %1306 = vmatprep.subr.mxu0 0.0
        %1307 = vmatpush1.msra.mxu0 0.0
        %1308 = vmatprep.subr.mxu0 0.0
        %1309 = vmatpush1.msra.mxu0 0.0
        %1310 = vmatprep.subr.mxu0 0.0
        %1311 = vmatpush1.msra.mxu0 0.0
        %1312 = vmatprep.subr.mxu0 0.0
        %1313 = vmatpush1.msra.mxu0 0.0
        %1314 = vmatprep.subr.mxu0 0.0
        %1315 = vmatpush1.msra.mxu0 0.0
        %1316 = vmatprep.subr.mxu0 0.0
        %1317 = vmatpush1.msra.mxu0 0.0
        %1318 = vmatprep.subr.mxu0 0.0
        %1319 = vmatpush1.msra.mxu0 0.0
        %1320 = vmatprep.subr.mxu0 0.0
        %1321 = vmatpush1.msra.mxu0 0.0
        %1322 = vmatprep.subr.mxu0 0.0
        %1323 = vmatpush1.msra.mxu0 0.0
        %1324 = vmatprep.subr.mxu0 0.0
        %1325 = vmatpush1.msra.mxu0 0.0
        %1326 = vmatprep.subr.mxu0 0.0
        %1327 = vmatpush1.msra.mxu0 0.0
        %1328 = vmatprep.subr.mxu0 0.0
        %1329 = vmatpush1.msra.mxu0 0.0
        %1330 = vmatprep.subr.mxu0 0.0
        %1331 = vmatpush1.msra.mxu0 0.0
        %1332 = vmatprep.subr.mxu0 0.0
        %1333 = vmatpush1.msra.mxu0 0.0
        %1334 = vmatprep.subr.mxu0 0.0
        %1335 = vmatpush1.msra.mxu0 0.0
        %1336 = vmatprep.subr.mxu0 0.0
        %1337 = vmatpush1.msra.mxu0 0.0
        %1338 = vmatprep.subr.mxu0 0.0
        %1339 = vmatpush1.msra.mxu0 0.0
        %1340 = vmatprep.subr.mxu0 0.0
        %1341 = vmatpush1.msra.mxu0 0.0
        %1342 = vmatprep.mubr.f32.mxu0 0.0
        %1343 = vmatmul.mubr.f32.gmra.mrb[0].mxu0 %v1276
        %v1344 = vpop.f32.mrb[0].mxu0
        %v1345 = vadd.f32 0.0, %v1344
        %v1346 = vpop.f32.mrb[0].mxu0
        %v1347 = vadd.f32 0.0, %v1346
        %1348 = vdwg.mxu0
        %1352 = vrot.lane.b32.xlu0 %v1255, 17
        %v1353 = vpop.permute.xlu0 %1352
        %1354 = vrot.lane.b32.xlu0 %v1256, 17
        %v1355 = vpop.permute.xlu0 %1354
        %1356 = vrot.lane.b32.xlu0 %v1257, 17
        %v1357 = vpop.permute.xlu0 %1356
        %v1358 = vsel %vm447, %v1353, %v1355
        %v1359 = vsel %vm447, %v1355, %v1357
        %v1363 = vsel %vm1274, %v1258, 0
        %1365 = vmatprep.subr.mxu0 %v1359
        %1366 = vmatpush1.msra.mxu0 %v1358
        %1367 = vmatprep.subr.mxu0 0.0
        %1368 = vmatpush1.msra.mxu0 0.0
        %1369 = vmatprep.subr.mxu0 0.0
        %1370 = vmatpush1.msra.mxu0 0.0
        %1371 = vmatprep.subr.mxu0 0.0
        %1372 = vmatpush1.msra.mxu0 0.0
        %1373 = vmatprep.subr.mxu0 0.0
        %1374 = vmatpush1.msra.mxu0 0.0
        %1375 = vmatprep.subr.mxu0 0.0
        %1376 = vmatpush1.msra.mxu0 0.0
        %1377 = vmatprep.subr.mxu0 0.0
        %1378 = vmatpush1.msra.mxu0 0.0
        %1379 = vmatprep.subr.mxu0 0.0
        %1380 = vmatpush1.msra.mxu0 0.0
        %1381 = vmatprep.subr.mxu0 0.0
        %1382 = vmatpush1.msra.mxu0 0.0
        %1383 = vmatprep.subr.mxu0 0.0
        %1384 = vmatpush1.msra.mxu0 0.0
        %1385 = vmatprep.subr.mxu0 0.0
        %1386 = vmatpush1.msra.mxu0 0.0
        %1387 = vmatprep.subr.mxu0 0.0
        %1388 = vmatpush1.msra.mxu0 0.0
        %1389 = vmatprep.subr.mxu0 0.0
        %1390 = vmatpush1.msra.mxu0 0.0
        %1391 = vmatprep.subr.mxu0 0.0
        %1392 = vmatpush1.msra.mxu0 0.0
        %1393 = vmatprep.subr.mxu0 0.0
        %1394 = vmatpush1.msra.mxu0 0.0
        %1395 = vmatprep.subr.mxu0 0.0
        %1396 = vmatpush1.msra.mxu0 0.0
        %1397 = vmatprep.subr.mxu0 0.0
        %1398 = vmatpush1.msra.mxu0 0.0
        %1399 = vmatprep.subr.mxu0 0.0
        %1400 = vmatpush1.msra.mxu0 0.0
        %1401 = vmatprep.subr.mxu0 0.0
        %1402 = vmatpush1.msra.mxu0 0.0
        %1403 = vmatprep.subr.mxu0 0.0
        %1404 = vmatpush1.msra.mxu0 0.0
        %1405 = vmatprep.subr.mxu0 0.0
        %1406 = vmatpush1.msra.mxu0 0.0
        %1407 = vmatprep.subr.mxu0 0.0
        %1408 = vmatpush1.msra.mxu0 0.0
        %1409 = vmatprep.subr.mxu0 0.0
        %1410 = vmatpush1.msra.mxu0 0.0
        %1411 = vmatprep.subr.mxu0 0.0
        %1412 = vmatpush1.msra.mxu0 0.0
        %1413 = vmatprep.subr.mxu0 0.0
        %1414 = vmatpush1.msra.mxu0 0.0
        %1415 = vmatprep.subr.mxu0 0.0
        %1416 = vmatpush1.msra.mxu0 0.0
        %1417 = vmatprep.subr.mxu0 0.0
        %1418 = vmatpush1.msra.mxu0 0.0
        %1419 = vmatprep.subr.mxu0 0.0
        %1420 = vmatpush1.msra.mxu0 0.0
        %1421 = vmatprep.subr.mxu0 0.0
        %1422 = vmatpush1.msra.mxu0 0.0
        %1423 = vmatprep.subr.mxu0 0.0
        %1424 = vmatpush1.msra.mxu0 0.0
        %1425 = vmatprep.subr.mxu0 0.0
        %1426 = vmatpush1.msra.mxu0 0.0
        %1427 = vmatprep.subr.mxu0 0.0
        %1428 = vmatpush1.msra.mxu0 0.0
        %1429 = vmatprep.mubr.f32.mxu0 0.0
        %1430 = vmatmul.mubr.f32.gmra.mrb[0].mxu0 %v1363
        %v1431 = vpop.f32.mrb[0].mxu0
        %v1432 = vadd.f32 %v1345, %v1431
        %v1433 = vpop.f32.mrb[0].mxu0
        %v1434 = vadd.f32 %v1347, %v1433
        %1435 = vdwg.mxu0
        %v1436 = vmul.f32 %v1252, %v538
        %v1437 = vmul.f32 %v1253, %v542
        %v1438 = vmul.f32 %v1254, %v540
        %s1439 = scalar_lea.vmem %s4, 16
        %v1440 = vld [vmem:[%s1439] sm:$0xff]
        %1444 = vrot.lane.b32.xlu0 %v1436, 15
        %v1445 = vpop.permute.xlu0 %1444
        %1446 = vrot.lane.b32.xlu0 %v1437, 15
        %v1447 = vpop.permute.xlu0 %1446
        %1448 = vrot.lane.b32.xlu0 %v1438, 15
        %v1449 = vpop.permute.xlu0 %1448
        %v1450 = vsel %vm560, %v1445, %v1447
        %v1451 = vsel %vm560, %v1447, %v1449
        %v1455 = vsel %vm1274, %v1440, 0
        %1457 = vmatprep.subr.mxu0 %v1451
        %1458 = vmatpush1.msra.mxu0 %v1450
        %1459 = vmatprep.subr.mxu0 0.0
        %1460 = vmatpush1.msra.mxu0 0.0
        %1461 = vmatprep.subr.mxu0 0.0
        %1462 = vmatpush1.msra.mxu0 0.0
        %1463 = vmatprep.subr.mxu0 0.0
        %1464 = vmatpush1.msra.mxu0 0.0
        %1465 = vmatprep.subr.mxu0 0.0
        %1466 = vmatpush1.msra.mxu0 0.0
        %1467 = vmatprep.subr.mxu0 0.0
        %1468 = vmatpush1.msra.mxu0 0.0
        %1469 = vmatprep.subr.mxu0 0.0
        %1470 = vmatpush1.msra.mxu0 0.0
        %1471 = vmatprep.subr.mxu0 0.0
        %1472 = vmatpush1.msra.mxu0 0.0
        %1473 = vmatprep.subr.mxu0 0.0
        %1474 = vmatpush1.msra.mxu0 0.0
        %1475 = vmatprep.subr.mxu0 0.0
        %1476 = vmatpush1.msra.mxu0 0.0
        %1477 = vmatprep.subr.mxu0 0.0
        %1478 = vmatpush1.msra.mxu0 0.0
        %1479 = vmatprep.subr.mxu0 0.0
        %1480 = vmatpush1.msra.mxu0 0.0
        %1481 = vmatprep.subr.mxu0 0.0
        %1482 = vmatpush1.msra.mxu0 0.0
        %1483 = vmatprep.subr.mxu0 0.0
        %1484 = vmatpush1.msra.mxu0 0.0
        %1485 = vmatprep.subr.mxu0 0.0
        %1486 = vmatpush1.msra.mxu0 0.0
        %1487 = vmatprep.subr.mxu0 0.0
        %1488 = vmatpush1.msra.mxu0 0.0
        %1489 = vmatprep.subr.mxu0 0.0
        %1490 = vmatpush1.msra.mxu0 0.0
        %1491 = vmatprep.subr.mxu0 0.0
        %1492 = vmatpush1.msra.mxu0 0.0
        %1493 = vmatprep.subr.mxu0 0.0
        %1494 = vmatpush1.msra.mxu0 0.0
        %1495 = vmatprep.subr.mxu0 0.0
        %1496 = vmatpush1.msra.mxu0 0.0
        %1497 = vmatprep.subr.mxu0 0.0
        %1498 = vmatpush1.msra.mxu0 0.0
        %1499 = vmatprep.subr.mxu0 0.0
        %1500 = vmatpush1.msra.mxu0 0.0
        %1501 = vmatprep.subr.mxu0 0.0
        %1502 = vmatpush1.msra.mxu0 0.0
        %1503 = vmatprep.subr.mxu0 0.0
        %1504 = vmatpush1.msra.mxu0 0.0
        %1505 = vmatprep.subr.mxu0 0.0
        %1506 = vmatpush1.msra.mxu0 0.0
        %1507 = vmatprep.subr.mxu0 0.0
        %1508 = vmatpush1.msra.mxu0 0.0
        %1509 = vmatprep.subr.mxu0 0.0
        %1510 = vmatpush1.msra.mxu0 0.0
        %1511 = vmatprep.subr.mxu0 0.0
        %1512 = vmatpush1.msra.mxu0 0.0
        %1513 = vmatprep.subr.mxu0 0.0
        %1514 = vmatpush1.msra.mxu0 0.0
        %1515 = vmatprep.subr.mxu0 0.0
        %1516 = vmatpush1.msra.mxu0 0.0
        %1517 = vmatprep.subr.mxu0 0.0
        %1518 = vmatpush1.msra.mxu0 0.0
        %1519 = vmatprep.subr.mxu0 0.0
        %1520 = vmatpush1.msra.mxu0 0.0
        %1521 = vmatprep.mubr.f32.mxu0 0.0
        %1522 = vmatmul.mubr.f32.gmra.mrb[0].mxu0 %v1455
        %v1523 = vpop.f32.mrb[0].mxu0
        %v1524 = vadd.f32 0.0, %v1523
        %v1525 = vpop.f32.mrb[0].mxu0
        %v1526 = vadd.f32 0.0, %v1525
        %1527 = vdwg.mxu0
        %v1528 = vadd.f32 %v1432, %v1524
        %v1529 = vadd.f32 %v1434, %v1526
        %v1530 = vmul.f32 %v1252, %v644
        %v1531 = vmul.f32 %v1253, %v648
        %v1532 = vmul.f32 %v1254, %v646
        %s1533 = scalar_lea.vmem %s4, 24
        %v1534 = vld [vmem:[%s1533] sm:$0xff]
        %1538 = vrot.lane.b32.xlu0 %v1530, 1
        %v1539 = vpop.permute.xlu0 %1538
        %1540 = vrot.lane.b32.xlu0 %v1531, 1
        %v1541 = vpop.permute.xlu0 %1540
        %1542 = vrot.lane.b32.xlu0 %v1532, 1
        %v1543 = vpop.permute.xlu0 %1542
        %v1544 = vsel %vm666, %v1539, %v1541
        %v1545 = vsel %vm666, %v1541, %v1543
        %v1549 = vsel %vm1274, %v1534, 0
        %1551 = vmatprep.subr.mxu0 %v1545
        %1552 = vmatpush1.msra.mxu0 %v1544
        %1553 = vmatprep.subr.mxu0 0.0
        %1554 = vmatpush1.msra.mxu0 0.0
        %1555 = vmatprep.subr.mxu0 0.0
        %1556 = vmatpush1.msra.mxu0 0.0
        %1557 = vmatprep.subr.mxu0 0.0
        %1558 = vmatpush1.msra.mxu0 0.0
        %1559 = vmatprep.subr.mxu0 0.0
        %1560 = vmatpush1.msra.mxu0 0.0
        %1561 = vmatprep.subr.mxu0 0.0
        %1562 = vmatpush1.msra.mxu0 0.0
        %1563 = vmatprep.subr.mxu0 0.0
        %1564 = vmatpush1.msra.mxu0 0.0
        %1565 = vmatprep.subr.mxu0 0.0
        %1566 = vmatpush1.msra.mxu0 0.0
        %1567 = vmatprep.subr.mxu0 0.0
        %1568 = vmatpush1.msra.mxu0 0.0
        %1569 = vmatprep.subr.mxu0 0.0
        %1570 = vmatpush1.msra.mxu0 0.0
        %1571 = vmatprep.subr.mxu0 0.0
        %1572 = vmatpush1.msra.mxu0 0.0
        %1573 = vmatprep.subr.mxu0 0.0
        %1574 = vmatpush1.msra.mxu0 0.0
        %1575 = vmatprep.subr.mxu0 0.0
        %1576 = vmatpush1.msra.mxu0 0.0
        %1577 = vmatprep.subr.mxu0 0.0
        %1578 = vmatpush1.msra.mxu0 0.0
        %1579 = vmatprep.subr.mxu0 0.0
        %1580 = vmatpush1.msra.mxu0 0.0
        %1581 = vmatprep.subr.mxu0 0.0
        %1582 = vmatpush1.msra.mxu0 0.0
        %1583 = vmatprep.subr.mxu0 0.0
        %1584 = vmatpush1.msra.mxu0 0.0
        %1585 = vmatprep.subr.mxu0 0.0
        %1586 = vmatpush1.msra.mxu0 0.0
        %1587 = vmatprep.subr.mxu0 0.0
        %1588 = vmatpush1.msra.mxu0 0.0
        %1589 = vmatprep.subr.mxu0 0.0
        %1590 = vmatpush1.msra.mxu0 0.0
        %1591 = vmatprep.subr.mxu0 0.0
        %1592 = vmatpush1.msra.mxu0 0.0
        %1593 = vmatprep.subr.mxu0 0.0
        %1594 = vmatpush1.msra.mxu0 0.0
        %1595 = vmatprep.subr.mxu0 0.0
        %1596 = vmatpush1.msra.mxu0 0.0
        %1597 = vmatprep.subr.mxu0 0.0
        %1598 = vmatpush1.msra.mxu0 0.0
        %1599 = vmatprep.subr.mxu0 0.0
        %1600 = vmatpush1.msra.mxu0 0.0
        %1601 = vmatprep.subr.mxu0 0.0
        %1602 = vmatpush1.msra.mxu0 0.0
        %1603 = vmatprep.subr.mxu0 0.0
        %1604 = vmatpush1.msra.mxu0 0.0
        %1605 = vmatprep.subr.mxu0 0.0
        %1606 = vmatpush1.msra.mxu0 0.0
        %1607 = vmatprep.subr.mxu0 0.0
        %1608 = vmatpush1.msra.mxu0 0.0
        %1609 = vmatprep.subr.mxu0 0.0
        %1610 = vmatpush1.msra.mxu0 0.0
        %1611 = vmatprep.subr.mxu0 0.0
        %1612 = vmatpush1.msra.mxu0 0.0
        %1613 = vmatprep.subr.mxu0 0.0
        %1614 = vmatpush1.msra.mxu0 0.0
        %1615 = vmatprep.mubr.f32.mxu0 0.0
        %1616 = vmatmul.mubr.f32.gmra.mrb[0].mxu0 %v1549
        %v1617 = vpop.f32.mrb[0].mxu0
        %v1618 = vadd.f32 0.0, %v1617
        %v1619 = vpop.f32.mrb[0].mxu0
        %v1620 = vadd.f32 0.0, %v1619
        %1621 = vdwg.mxu0
        %v1622 = vadd.f32 %v1528, %v1618
        %v1623 = vadd.f32 %v1529, %v1620
        %s1624 = scalar_lea.vmem %s4, 32
        %v1625 = vld [vmem:[%s1624] sm:$0xff]
        %v1627 = vsel %vm1274, %v1625, 0
        %1629 = vmatprep.subr.mxu0 %v1254
        %1630 = vmatpush1.msra.mxu0 %v1253
        %1631 = vmatprep.subr.mxu0 0.0
        %1632 = vmatpush1.msra.mxu0 0.0
        %1633 = vmatprep.subr.mxu0 0.0
        %1634 = vmatpush1.msra.mxu0 0.0
        %1635 = vmatprep.subr.mxu0 0.0
        %1636 = vmatpush1.msra.mxu0 0.0
        %1637 = vmatprep.subr.mxu0 0.0
        %1638 = vmatpush1.msra.mxu0 0.0
        %1639 = vmatprep.subr.mxu0 0.0
        %1640 = vmatpush1.msra.mxu0 0.0
        %1641 = vmatprep.subr.mxu0 0.0
        %1642 = vmatpush1.msra.mxu0 0.0
        %1643 = vmatprep.subr.mxu0 0.0
        %1644 = vmatpush1.msra.mxu0 0.0
        %1645 = vmatprep.subr.mxu0 0.0
        %1646 = vmatpush1.msra.mxu0 0.0
        %1647 = vmatprep.subr.mxu0 0.0
        %1648 = vmatpush1.msra.mxu0 0.0
        %1649 = vmatprep.subr.mxu0 0.0
        %1650 = vmatpush1.msra.mxu0 0.0
        %1651 = vmatprep.subr.mxu0 0.0
        %1652 = vmatpush1.msra.mxu0 0.0
        %1653 = vmatprep.subr.mxu0 0.0
        %1654 = vmatpush1.msra.mxu0 0.0
        %1655 = vmatprep.subr.mxu0 0.0
        %1656 = vmatpush1.msra.mxu0 0.0
        %1657 = vmatprep.subr.mxu0 0.0
        %1658 = vmatpush1.msra.mxu0 0.0
        %1659 = vmatprep.subr.mxu0 0.0
        %1660 = vmatpush1.msra.mxu0 0.0
        %1661 = vmatprep.subr.mxu0 0.0
        %1662 = vmatpush1.msra.mxu0 0.0
        %1663 = vmatprep.subr.mxu0 0.0
        %1664 = vmatpush1.msra.mxu0 0.0
        %1665 = vmatprep.subr.mxu0 0.0
        %1666 = vmatpush1.msra.mxu0 0.0
        %1667 = vmatprep.subr.mxu0 0.0
        %1668 = vmatpush1.msra.mxu0 0.0
        %1669 = vmatprep.subr.mxu0 0.0
        %1670 = vmatpush1.msra.mxu0 0.0
        %1671 = vmatprep.subr.mxu0 0.0
        %1672 = vmatpush1.msra.mxu0 0.0
        %1673 = vmatprep.subr.mxu0 0.0
        %1674 = vmatpush1.msra.mxu0 0.0
        %1675 = vmatprep.subr.mxu0 0.0
        %1676 = vmatpush1.msra.mxu0 0.0
        %1677 = vmatprep.subr.mxu0 0.0
        %1678 = vmatpush1.msra.mxu0 0.0
        %1679 = vmatprep.subr.mxu0 0.0
        %1680 = vmatpush1.msra.mxu0 0.0
        %1681 = vmatprep.subr.mxu0 0.0
        %1682 = vmatpush1.msra.mxu0 0.0
        %1683 = vmatprep.subr.mxu0 0.0
        %1684 = vmatpush1.msra.mxu0 0.0
        %1685 = vmatprep.subr.mxu0 0.0
        %1686 = vmatpush1.msra.mxu0 0.0
        %1687 = vmatprep.subr.mxu0 0.0
        %1688 = vmatpush1.msra.mxu0 0.0
        %1689 = vmatprep.subr.mxu0 0.0
        %1690 = vmatpush1.msra.mxu0 0.0
        %1691 = vmatprep.subr.mxu0 0.0
        %1692 = vmatpush1.msra.mxu0 0.0
        %1693 = vmatprep.mubr.f32.mxu0 0.0
        %1694 = vmatmul.mubr.f32.gmra.mrb[0].mxu0 %v1627
        %v1695 = vpop.f32.mrb[0].mxu0
        %v1696 = vadd.f32 0.0, %v1695
        %v1697 = vpop.f32.mrb[0].mxu0
        %v1698 = vadd.f32 0.0, %v1697
        %1699 = vdwg.mxu0
        %v1700 = vadd.f32 %v1622, %v1696
        %v1701 = vadd.f32 %v1623, %v1698
        %v1702 = vld [vmem:[#allocation2 + $0x8] sm:$0xff]
        %v1703 = vld [vmem:[#allocation2 + $0x10] sm:$0xff]
        %v1704 = vld [vmem:[#allocation2 + $0x18] sm:$0xff]
        %v1705 = vmul.f32 %v1702, %v835
        %v1706 = vmul.f32 %v1703, %v838
        %v1707 = vmul.f32 %v1704, %v837
        %s1708 = scalar_lea.vmem %s4, 40
        %v1709 = vld [vmem:[%s1708] sm:$0xff]
        %1713 = vrot.lane.b32.xlu0 %v1705, 127
        %v1714 = vpop.permute.xlu0 %1713
        %1715 = vrot.lane.b32.xlu0 %v1706, 127
        %v1716 = vpop.permute.xlu0 %1715
        %1717 = vrot.lane.b32.xlu0 %v1707, 127
        %v1718 = vpop.permute.xlu0 %1717
        %v1719 = vsel %vm647, %v1714, %v1716
        %v1720 = vsel %vm647, %v1716, %v1718
        %v1724 = vsel %vm1274, %v1709, 0
        %1726 = vmatprep.subr.mxu0 %v1720
        %1727 = vmatpush1.msra.mxu0 %v1719
        %1728 = vmatprep.subr.mxu0 0.0
        %1729 = vmatpush1.msra.mxu0 0.0
        %1730 = vmatprep.subr.mxu0 0.0
        %1731 = vmatpush1.msra.mxu0 0.0
        %1732 = vmatprep.subr.mxu0 0.0
        %1733 = vmatpush1.msra.mxu0 0.0
        %1734 = vmatprep.subr.mxu0 0.0
        %1735 = vmatpush1.msra.mxu0 0.0
        %1736 = vmatprep.subr.mxu0 0.0
        %1737 = vmatpush1.msra.mxu0 0.0
        %1738 = vmatprep.subr.mxu0 0.0
        %1739 = vmatpush1.msra.mxu0 0.0
        %1740 = vmatprep.subr.mxu0 0.0
        %1741 = vmatpush1.msra.mxu0 0.0
        %1742 = vmatprep.subr.mxu0 0.0
        %1743 = vmatpush1.msra.mxu0 0.0
        %1744 = vmatprep.subr.mxu0 0.0
        %1745 = vmatpush1.msra.mxu0 0.0
        %1746 = vmatprep.subr.mxu0 0.0
        %1747 = vmatpush1.msra.mxu0 0.0
        %1748 = vmatprep.subr.mxu0 0.0
        %1749 = vmatpush1.msra.mxu0 0.0
        %1750 = vmatprep.subr.mxu0 0.0
        %1751 = vmatpush1.msra.mxu0 0.0
        %1752 = vmatprep.subr.mxu0 0.0
        %1753 = vmatpush1.msra.mxu0 0.0
        %1754 = vmatprep.subr.mxu0 0.0
        %1755 = vmatpush1.msra.mxu0 0.0
        %1756 = vmatprep.subr.mxu0 0.0
        %1757 = vmatpush1.msra.mxu0 0.0
        %1758 = vmatprep.subr.mxu0 0.0
        %1759 = vmatpush1.msra.mxu0 0.0
        %1760 = vmatprep.subr.mxu0 0.0
        %1761 = vmatpush1.msra.mxu0 0.0
        %1762 = vmatprep.subr.mxu0 0.0
        %1763 = vmatpush1.msra.mxu0 0.0
        %1764 = vmatprep.subr.mxu0 0.0
        %1765 = vmatpush1.msra.mxu0 0.0
        %1766 = vmatprep.subr.mxu0 0.0
        %1767 = vmatpush1.msra.mxu0 0.0
        %1768 = vmatprep.subr.mxu0 0.0
        %1769 = vmatpush1.msra.mxu0 0.0
        %1770 = vmatprep.subr.mxu0 0.0
        %1771 = vmatpush1.msra.mxu0 0.0
        %1772 = vmatprep.subr.mxu0 0.0
        %1773 = vmatpush1.msra.mxu0 0.0
        %1774 = vmatprep.subr.mxu0 0.0
        %1775 = vmatpush1.msra.mxu0 0.0
        %1776 = vmatprep.subr.mxu0 0.0
        %1777 = vmatpush1.msra.mxu0 0.0
        %1778 = vmatprep.subr.mxu0 0.0
        %1779 = vmatpush1.msra.mxu0 0.0
        %1780 = vmatprep.subr.mxu0 0.0
        %1781 = vmatpush1.msra.mxu0 0.0
        %1782 = vmatprep.subr.mxu0 0.0
        %1783 = vmatpush1.msra.mxu0 0.0
        %1784 = vmatprep.subr.mxu0 0.0
        %1785 = vmatpush1.msra.mxu0 0.0
        %1786 = vmatprep.subr.mxu0 0.0
        %1787 = vmatpush1.msra.mxu0 0.0
        %1788 = vmatprep.subr.mxu0 0.0
        %1789 = vmatpush1.msra.mxu0 0.0
        %1790 = vmatprep.mubr.f32.mxu0 0.0
        %1791 = vmatmul.mubr.f32.gmra.mrb[0].mxu0 %v1724
        %v1792 = vpop.f32.mrb[0].mxu0
        %v1793 = vadd.f32 0.0, %v1792
        %v1794 = vpop.f32.mrb[0].mxu0
        %v1795 = vadd.f32 0.0, %v1794
        %1796 = vdwg.mxu0
        %v1797 = vadd.f32 %v1700, %v1793
        %v1798 = vadd.f32 %v1701, %v1795
        %v1799 = vmul.f32 %v1702, %v939
        %v1800 = vmul.f32 %v1703, %v942
        %v1801 = vmul.f32 %v1704, %v941
        %s1802 = scalar_lea.vmem %s4, 48
        %v1803 = vld [vmem:[%s1802] sm:$0xff]
        %1807 = vrot.lane.b32.xlu0 %v1799, 113
        %v1808 = vpop.permute.xlu0 %1807
        %1809 = vrot.lane.b32.xlu0 %v1800, 113
        %v1810 = vpop.permute.xlu0 %1809
        %1811 = vrot.lane.b32.xlu0 %v1801, 113
        %v1812 = vpop.permute.xlu0 %1811
        %v1813 = vsel %vm541, %v1808, %v1810
        %v1814 = vsel %vm541, %v1810, %v1812
        %v1818 = vsel %vm1274, %v1803, 0
        %1820 = vmatprep.subr.mxu0 %v1814
        %1821 = vmatpush1.msra.mxu0 %v1813
        %1822 = vmatprep.subr.mxu0 0.0
        %1823 = vmatpush1.msra.mxu0 0.0
        %1824 = vmatprep.subr.mxu0 0.0
        %1825 = vmatpush1.msra.mxu0 0.0
        %1826 = vmatprep.subr.mxu0 0.0
        %1827 = vmatpush1.msra.mxu0 0.0
        %1828 = vmatprep.subr.mxu0 0.0
        %1829 = vmatpush1.msra.mxu0 0.0
        %1830 = vmatprep.subr.mxu0 0.0
        %1831 = vmatpush1.msra.mxu0 0.0
        %1832 = vmatprep.subr.mxu0 0.0
        %1833 = vmatpush1.msra.mxu0 0.0
        %1834 = vmatprep.subr.mxu0 0.0
        %1835 = vmatpush1.msra.mxu0 0.0
        %1836 = vmatprep.subr.mxu0 0.0
        %1837 = vmatpush1.msra.mxu0 0.0
        %1838 = vmatprep.subr.mxu0 0.0
        %1839 = vmatpush1.msra.mxu0 0.0
        %1840 = vmatprep.subr.mxu0 0.0
        %1841 = vmatpush1.msra.mxu0 0.0
        %1842 = vmatprep.subr.mxu0 0.0
        %1843 = vmatpush1.msra.mxu0 0.0
        %1844 = vmatprep.subr.mxu0 0.0
        %1845 = vmatpush1.msra.mxu0 0.0
        %1846 = vmatprep.subr.mxu0 0.0
        %1847 = vmatpush1.msra.mxu0 0.0
        %1848 = vmatprep.subr.mxu0 0.0
        %1849 = vmatpush1.msra.mxu0 0.0
        %1850 = vmatprep.subr.mxu0 0.0
        %1851 = vmatpush1.msra.mxu0 0.0
        %1852 = vmatprep.subr.mxu0 0.0
        %1853 = vmatpush1.msra.mxu0 0.0
        %1854 = vmatprep.subr.mxu0 0.0
        %1855 = vmatpush1.msra.mxu0 0.0
        %1856 = vmatprep.subr.mxu0 0.0
        %1857 = vmatpush1.msra.mxu0 0.0
        %1858 = vmatprep.subr.mxu0 0.0
        %1859 = vmatpush1.msra.mxu0 0.0
        %1860 = vmatprep.subr.mxu0 0.0
        %1861 = vmatpush1.msra.mxu0 0.0
        %1862 = vmatprep.subr.mxu0 0.0
        %1863 = vmatpush1.msra.mxu0 0.0
        %1864 = vmatprep.subr.mxu0 0.0
        %1865 = vmatpush1.msra.mxu0 0.0
        %1866 = vmatprep.subr.mxu0 0.0
        %1867 = vmatpush1.msra.mxu0 0.0
        %1868 = vmatprep.subr.mxu0 0.0
        %1869 = vmatpush1.msra.mxu0 0.0
        %1870 = vmatprep.subr.mxu0 0.0
        %1871 = vmatpush1.msra.mxu0 0.0
        %1872 = vmatprep.subr.mxu0 0.0
        %1873 = vmatpush1.msra.mxu0 0.0
        %1874 = vmatprep.subr.mxu0 0.0
        %1875 = vmatpush1.msra.mxu0 0.0
        %1876 = vmatprep.subr.mxu0 0.0
        %1877 = vmatpush1.msra.mxu0 0.0
        %1878 = vmatprep.subr.mxu0 0.0
        %1879 = vmatpush1.msra.mxu0 0.0
        %1880 = vmatprep.subr.mxu0 0.0
        %1881 = vmatpush1.msra.mxu0 0.0
        %1882 = vmatprep.subr.mxu0 0.0
        %1883 = vmatpush1.msra.mxu0 0.0
        %1884 = vmatprep.mubr.f32.mxu0 0.0
        %1885 = vmatmul.mubr.f32.gmra.mrb[0].mxu0 %v1818
        %v1886 = vpop.f32.mrb[0].mxu0
        %v1887 = vadd.f32 0.0, %v1886
        %v1888 = vpop.f32.mrb[0].mxu0
        %v1889 = vadd.f32 0.0, %v1888
        %1890 = vdwg.mxu0
        %v1891 = vadd.f32 %v1797, %v1887
        %v1892 = vadd.f32 %v1798, %v1889
        %s1893 = scalar_lea.vmem %s4, 56
        %v1894 = vld [vmem:[%s1893] sm:$0xff]
        %1898 = vrot.lane.b32.xlu0 %v1702, 112
        %v1899 = vpop.permute.xlu0 %1898
        %1900 = vrot.lane.b32.xlu0 %v1703, 112
        %v1901 = vpop.permute.xlu0 %1900
        %1902 = vrot.lane.b32.xlu0 %v1704, 112
        %v1903 = vpop.permute.xlu0 %1902
        %v1904 = vsel %vm1053, %v1899, %v1901
        %v1905 = vsel %vm1053, %v1901, %v1903
        %v1909 = vsel %vm1274, %v1894, 0
        %1911 = vmatprep.subr.mxu0 %v1905
        %1912 = vmatpush1.msra.mxu0 %v1904
        %1913 = vmatprep.subr.mxu0 0.0
        %1914 = vmatpush1.msra.mxu0 0.0
        %1915 = vmatprep.subr.mxu0 0.0
        %1916 = vmatpush1.msra.mxu0 0.0
        %1917 = vmatprep.subr.mxu0 0.0
        %1918 = vmatpush1.msra.mxu0 0.0
        %1919 = vmatprep.subr.mxu0 0.0
        %1920 = vmatpush1.msra.mxu0 0.0
        %1921 = vmatprep.subr.mxu0 0.0
        %1922 = vmatpush1.msra.mxu0 0.0
        %1923 = vmatprep.subr.mxu0 0.0
        %1924 = vmatpush1.msra.mxu0 0.0
        %1925 = vmatprep.subr.mxu0 0.0
        %1926 = vmatpush1.msra.mxu0 0.0
        %1927 = vmatprep.subr.mxu0 0.0
        %1928 = vmatpush1.msra.mxu0 0.0
        %1929 = vmatprep.subr.mxu0 0.0
        %1930 = vmatpush1.msra.mxu0 0.0
        %1931 = vmatprep.subr.mxu0 0.0
        %1932 = vmatpush1.msra.mxu0 0.0
        %1933 = vmatprep.subr.mxu0 0.0
        %1934 = vmatpush1.msra.mxu0 0.0
        %1935 = vmatprep.subr.mxu0 0.0
        %1936 = vmatpush1.msra.mxu0 0.0
        %1937 = vmatprep.subr.mxu0 0.0
        %1938 = vmatpush1.msra.mxu0 0.0
        %1939 = vmatprep.subr.mxu0 0.0
        %1940 = vmatpush1.msra.mxu0 0.0
        %1941 = vmatprep.subr.mxu0 0.0
        %1942 = vmatpush1.msra.mxu0 0.0
        %1943 = vmatprep.subr.mxu0 0.0
        %1944 = vmatpush1.msra.mxu0 0.0
        %1945 = vmatprep.subr.mxu0 0.0
        %1946 = vmatpush1.msra.mxu0 0.0
        %1947 = vmatprep.subr.mxu0 0.0
        %1948 = vmatpush1.msra.mxu0 0.0
        %1949 = vmatprep.subr.mxu0 0.0
        %1950 = vmatpush1.msra.mxu0 0.0
        %1951 = vmatprep.subr.mxu0 0.0
        %1952 = vmatpush1.msra.mxu0 0.0
        %1953 = vmatprep.subr.mxu0 0.0
        %1954 = vmatpush1.msra.mxu0 0.0
        %1955 = vmatprep.subr.mxu0 0.0
        %1956 = vmatpush1.msra.mxu0 0.0
        %1957 = vmatprep.subr.mxu0 0.0
        %1958 = vmatpush1.msra.mxu0 0.0
        %1959 = vmatprep.subr.mxu0 0.0
        %1960 = vmatpush1.msra.mxu0 0.0
        %1961 = vmatprep.subr.mxu0 0.0
        %1962 = vmatpush1.msra.mxu0 0.0
        %1963 = vmatprep.subr.mxu0 0.0
        %1964 = vmatpush1.msra.mxu0 0.0
        %1965 = vmatprep.subr.mxu0 0.0
        %1966 = vmatpush1.msra.mxu0 0.0
        %1967 = vmatprep.subr.mxu0 0.0
        %1968 = vmatpush1.msra.mxu0 0.0
        %1969 = vmatprep.subr.mxu0 0.0
        %1970 = vmatpush1.msra.mxu0 0.0
        %1971 = vmatprep.subr.mxu0 0.0
        %1972 = vmatpush1.msra.mxu0 0.0
        %1973 = vmatprep.subr.mxu0 0.0
        %1974 = vmatpush1.msra.mxu0 0.0
        %1975 = vmatprep.mubr.f32.mxu0 0.0
        %1976 = vmatmul.mubr.f32.gmra.mrb[0].mxu0 %v1909
        %v1977 = vpop.f32.mrb[0].mxu0
        %v1978 = vadd.f32 0.0, %v1977
        %v1979 = vpop.f32.mrb[0].mxu0
        %v1980 = vadd.f32 0.0, %v1979
        %1981 = vdwg.mxu0
        %v1982 = vadd.f32 %v1891, %v1978
        %v1983 = vadd.f32 %v1892, %v1980
        %v1984 = vmul.f32 %v1702, %v1137
        %v1985 = vmul.f32 %v1703, %v1140
        %v1986 = vmul.f32 %v1704, %v1139
        %s1987 = scalar_lea.vmem %s4, 64
        %v1988 = vld [vmem:[%s1987] sm:$0xff]
        %1992 = vrot.lane.b32.xlu0 %v1984, 111
        %v1993 = vpop.permute.xlu0 %1992
        %1994 = vrot.lane.b32.xlu0 %v1985, 111
        %v1995 = vpop.permute.xlu0 %1994
        %1996 = vrot.lane.b32.xlu0 %v1986, 111
        %v1997 = vpop.permute.xlu0 %1996
        %v1998 = vsel %vm335, %v1993, %v1995
        %v1999 = vsel %vm335, %v1995, %v1997
        %v2003 = vsel %vm1274, %v1988, 0
        %2005 = vmatprep.subr.mxu0 %v1999
        %2006 = vmatpush1.msra.mxu0 %v1998
        %2007 = vmatprep.subr.mxu0 0.0
        %2008 = vmatpush1.msra.mxu0 0.0
        %2009 = vmatprep.subr.mxu0 0.0
        %2010 = vmatpush1.msra.mxu0 0.0
        %2011 = vmatprep.subr.mxu0 0.0
        %2012 = vmatpush1.msra.mxu0 0.0
        %2013 = vmatprep.subr.mxu0 0.0
        %2014 = vmatpush1.msra.mxu0 0.0
        %2015 = vmatprep.subr.mxu0 0.0
        %2016 = vmatpush1.msra.mxu0 0.0
        %2017 = vmatprep.subr.mxu0 0.0
        %2018 = vmatpush1.msra.mxu0 0.0
        %2019 = vmatprep.subr.mxu0 0.0
        %2020 = vmatpush1.msra.mxu0 0.0
        %2021 = vmatprep.subr.mxu0 0.0
        %2022 = vmatpush1.msra.mxu0 0.0
        %2023 = vmatprep.subr.mxu0 0.0
        %2024 = vmatpush1.msra.mxu0 0.0
        %2025 = vmatprep.subr.mxu0 0.0
        %2026 = vmatpush1.msra.mxu0 0.0
        %2027 = vmatprep.subr.mxu0 0.0
        %2028 = vmatpush1.msra.mxu0 0.0
        %2029 = vmatprep.subr.mxu0 0.0
        %2030 = vmatpush1.msra.mxu0 0.0
        %2031 = vmatprep.subr.mxu0 0.0
        %2032 = vmatpush1.msra.mxu0 0.0
        %2033 = vmatprep.subr.mxu0 0.0
        %2034 = vmatpush1.msra.mxu0 0.0
        %2035 = vmatprep.subr.mxu0 0.0
        %2036 = vmatpush1.msra.mxu0 0.0
        %2037 = vmatprep.subr.mxu0 0.0
        %2038 = vmatpush1.msra.mxu0 0.0
        %2039 = vmatprep.subr.mxu0 0.0
        %2040 = vmatpush1.msra.mxu0 0.0
        %2041 = vmatprep.subr.mxu0 0.0
        %2042 = vmatpush1.msra.mxu0 0.0
        %2043 = vmatprep.subr.mxu0 0.0
        %2044 = vmatpush1.msra.mxu0 0.0
        %2045 = vmatprep.subr.mxu0 0.0
        %2046 = vmatpush1.msra.mxu0 0.0
        %2047 = vmatprep.subr.mxu0 0.0
        %2048 = vmatpush1.msra.mxu0 0.0
        %2049 = vmatprep.subr.mxu0 0.0
        %2050 = vmatpush1.msra.mxu0 0.0
        %2051 = vmatprep.subr.mxu0 0.0
        %2052 = vmatpush1.msra.mxu0 0.0
        %2053 = vmatprep.subr.mxu0 0.0
        %2054 = vmatpush1.msra.mxu0 0.0
        %2055 = vmatprep.subr.mxu0 0.0
        %2056 = vmatpush1.msra.mxu0 0.0
        %2057 = vmatprep.subr.mxu0 0.0
        %2058 = vmatpush1.msra.mxu0 0.0
        %2059 = vmatprep.subr.mxu0 0.0
        %2060 = vmatpush1.msra.mxu0 0.0
        %2061 = vmatprep.subr.mxu0 0.0
        %2062 = vmatpush1.msra.mxu0 0.0
        %2063 = vmatprep.subr.mxu0 0.0
        %2064 = vmatpush1.msra.mxu0 0.0
        %2065 = vmatprep.subr.mxu0 0.0
        %2066 = vmatpush1.msra.mxu0 0.0
        %2067 = vmatprep.subr.mxu0 0.0
        %2068 = vmatpush1.msra.mxu0 0.0
        %2069 = vmatprep.mubr.f32.mxu0 0.0
        %2070 = vmatmul.mubr.f32.gmra.mrb[0].mxu0 %v2003
        %v2071 = vpop.f32.mrb[0].mxu0
        %v2072 = vadd.f32 0.0, %v2071
        %v2073 = vpop.f32.mrb[0].mxu0
        %v2074 = vadd.f32 0.0, %v2073
        %2075 = vdwg.mxu0
        %v2076 = vadd.f32 %v1982, %v2072
        %v2077 = vadd.f32 %v1983, %v2074
        %v2078 = vld [vmem:[%s5] sm:$0xff]
        %2080 = vset.pattern.permute.xlu0 0
        %2081 = vperm.xlu0 %2080, %v2078
        %v2082 = vpop.permute.xlu0 %2081
        %v2084 = vadd.f32 %v2076, %v2082
        %v2085 = vadd.f32 %v2077, %v2082
        %v2086 = vmax.f32 %v2084, 0.0
        %v2087 = vmax.f32 %v2085, 0.0
        %2088 = vst [vmem:[#allocation2 + $0x8] sm:$0xff] %v2086
        %2089 = vst [vmem:[#allocation2 + $0x10] sm:$0xff] %v2087
        %v2090 = vld [vmem:[#allocation2] sm:$0xff]
        %v2091 = vld [vmem:[#allocation2 + $0x8] sm:$0xff]
        %v2092 = vld [vmem:[#allocation2 + $0x10] sm:$0xff]
        %v2093 = vmul.f32 %v2090, %v332
        %v2094 = vmul.f32 %v2091, %v336
        %v2095 = vmul.f32 %v2092, %v334
        %v2096 = vld [vmem:[%s6] sm:$0x1]
        %s2097 = scalar_lea.vmem %s6, 1
        %v2098 = vld [vmem:[%s2097] sm:$0x1]
        %2102 = vrot.lane.b32.xlu0 %v2090, 16
        %v2103 = vpop.permute.xlu0 %2102
        %2104 = vrot.lane.b32.xlu0 %v2091, 16
        %v2105 = vpop.permute.xlu0 %2104
        %2106 = vrot.lane.b32.xlu0 %v2092, 16
        %v2107 = vpop.permute.xlu0 %2106
        %v2108 = vsel %vm355, %v2103, %v2105
        %v2109 = vsel %vm355, %v2105, %v2107
        %v2113 = vsel %vm1274, %v2098, 0
        %2115 = vmatprep.subr.mxu0 %v2109
        %2116 = vmatpush1.msra.mxu0 %v2108
        %2117 = vmatprep.subr.mxu0 0.0
        %2118 = vmatpush1.msra.mxu0 0.0
        %2119 = vmatprep.subr.mxu0 0.0
        %2120 = vmatpush1.msra.mxu0 0.0
        %2121 = vmatprep.subr.mxu0 0.0
        %2122 = vmatpush1.msra.mxu0 0.0
        %2123 = vmatprep.subr.mxu0 0.0
        %2124 = vmatpush1.msra.mxu0 0.0
        %2125 = vmatprep.subr.mxu0 0.0
        %2126 = vmatpush1.msra.mxu0 0.0
        %2127 = vmatprep.subr.mxu0 0.0
        %2128 = vmatpush1.msra.mxu0 0.0
        %2129 = vmatprep.subr.mxu0 0.0
        %2130 = vmatpush1.msra.mxu0 0.0
        %2131 = vmatprep.subr.mxu0 0.0
        %2132 = vmatpush1.msra.mxu0 0.0
        %2133 = vmatprep.subr.mxu0 0.0
        %2134 = vmatpush1.msra.mxu0 0.0
        %2135 = vmatprep.subr.mxu0 0.0
        %2136 = vmatpush1.msra.mxu0 0.0
        %2137 = vmatprep.subr.mxu0 0.0
        %2138 = vmatpush1.msra.mxu0 0.0
        %2139 = vmatprep.subr.mxu0 0.0
        %2140 = vmatpush1.msra.mxu0 0.0
        %2141 = vmatprep.subr.mxu0 0.0
        %2142 = vmatpush1.msra.mxu0 0.0
        %2143 = vmatprep.subr.mxu0 0.0
        %2144 = vmatpush1.msra.mxu0 0.0
        %2145 = vmatprep.subr.mxu0 0.0
        %2146 = vmatpush1.msra.mxu0 0.0
        %2147 = vmatprep.subr.mxu0 0.0
        %2148 = vmatpush1.msra.mxu0 0.0
        %2149 = vmatprep.subr.mxu0 0.0
        %2150 = vmatpush1.msra.mxu0 0.0
        %2151 = vmatprep.subr.mxu0 0.0
        %2152 = vmatpush1.msra.mxu0 0.0
        %2153 = vmatprep.subr.mxu0 0.0
        %2154 = vmatpush1.msra.mxu0 0.0
        %2155 = vmatprep.subr.mxu0 0.0
        %2156 = vmatpush1.msra.mxu0 0.0
        %2157 = vmatprep.subr.mxu0 0.0
        %2158 = vmatpush1.msra.mxu0 0.0
        %2159 = vmatprep.subr.mxu0 0.0
        %2160 = vmatpush1.msra.mxu0 0.0
        %2161 = vmatprep.subr.mxu0 0.0
        %2162 = vmatpush1.msra.mxu0 0.0
        %2163 = vmatprep.subr.mxu0 0.0
        %2164 = vmatpush1.msra.mxu0 0.0
        %2165 = vmatprep.subr.mxu0 0.0
        %2166 = vmatpush1.msra.mxu0 0.0
        %2167 = vmatprep.subr.mxu0 0.0
        %2168 = vmatpush1.msra.mxu0 0.0
        %2169 = vmatprep.subr.mxu0 0.0
        %2170 = vmatpush1.msra.mxu0 0.0
        %2171 = vmatprep.subr.mxu0 0.0
        %2172 = vmatpush1.msra.mxu0 0.0
        %2173 = vmatprep.subr.mxu0 0.0
        %2174 = vmatpush1.msra.mxu0 0.0
        %2175 = vmatprep.subr.mxu0 0.0
        %2176 = vmatpush1.msra.mxu0 0.0
        %2177 = vmatprep.subr.mxu0 0.0
        %2178 = vmatpush1.msra.mxu0 0.0
        %2179 = vmatprep.mubr.f32.mxu0 0.0
        %2180 = vmatmul.mubr.f32.gmra.mrb[0].mxu0 %v2113
        %v2181 = vpop.f32.mrb[0].mxu0
        %v2182 = vadd.f32 0.0, %v2181
        %v2183 = vpop.f32.mrb[0].mxu0
        %v2184 = vadd.f32 0.0, %v2183
        %2185 = vdwg.mxu0
        %2189 = vrot.lane.b32.xlu0 %v2093, 17
        %v2190 = vpop.permute.xlu0 %2189
        %2191 = vrot.lane.b32.xlu0 %v2094, 17
        %v2192 = vpop.permute.xlu0 %2191
        %2193 = vrot.lane.b32.xlu0 %v2095, 17
        %v2194 = vpop.permute.xlu0 %2193
        %v2195 = vsel %vm447, %v2190, %v2192
        %v2196 = vsel %vm447, %v2192, %v2194
        %v2200 = vsel %vm1274, %v2096, 0
        %2202 = vmatprep.subr.mxu0 %v2196
        %2203 = vmatpush1.msra.mxu0 %v2195
        %2204 = vmatprep.subr.mxu0 0.0
        %2205 = vmatpush1.msra.mxu0 0.0
        %2206 = vmatprep.subr.mxu0 0.0
        %2207 = vmatpush1.msra.mxu0 0.0
        %2208 = vmatprep.subr.mxu0 0.0
        %2209 = vmatpush1.msra.mxu0 0.0
        %2210 = vmatprep.subr.mxu0 0.0
        %2211 = vmatpush1.msra.mxu0 0.0
        %2212 = vmatprep.subr.mxu0 0.0
        %2213 = vmatpush1.msra.mxu0 0.0
        %2214 = vmatprep.subr.mxu0 0.0
        %2215 = vmatpush1.msra.mxu0 0.0
        %2216 = vmatprep.subr.mxu0 0.0
        %2217 = vmatpush1.msra.mxu0 0.0
        %2218 = vmatprep.subr.mxu0 0.0
        %2219 = vmatpush1.msra.mxu0 0.0
        %2220 = vmatprep.subr.mxu0 0.0
        %2221 = vmatpush1.msra.mxu0 0.0
        %2222 = vmatprep.subr.mxu0 0.0
        %2223 = vmatpush1.msra.mxu0 0.0
        %2224 = vmatprep.subr.mxu0 0.0
        %2225 = vmatpush1.msra.mxu0 0.0
        %2226 = vmatprep.subr.mxu0 0.0
        %2227 = vmatpush1.msra.mxu0 0.0
        %2228 = vmatprep.subr.mxu0 0.0
        %2229 = vmatpush1.msra.mxu0 0.0
        %2230 = vmatprep.subr.mxu0 0.0
        %2231 = vmatpush1.msra.mxu0 0.0
        %2232 = vmatprep.subr.mxu0 0.0
        %2233 = vmatpush1.msra.mxu0 0.0
        %2234 = vmatprep.subr.mxu0 0.0
        %2235 = vmatpush1.msra.mxu0 0.0
        %2236 = vmatprep.subr.mxu0 0.0
        %2237 = vmatpush1.msra.mxu0 0.0
        %2238 = vmatprep.subr.mxu0 0.0
        %2239 = vmatpush1.msra.mxu0 0.0
        %2240 = vmatprep.subr.mxu0 0.0
        %2241 = vmatpush1.msra.mxu0 0.0
        %2242 = vmatprep.subr.mxu0 0.0
        %2243 = vmatpush1.msra.mxu0 0.0
        %2244 = vmatprep.subr.mxu0 0.0
        %2245 = vmatpush1.msra.mxu0 0.0
        %2246 = vmatprep.subr.mxu0 0.0
        %2247 = vmatpush1.msra.mxu0 0.0
        %2248 = vmatprep.subr.mxu0 0.0
        %2249 = vmatpush1.msra.mxu0 0.0
        %2250 = vmatprep.subr.mxu0 0.0
        %2251 = vmatpush1.msra.mxu0 0.0
        %2252 = vmatprep.subr.mxu0 0.0
        %2253 = vmatpush1.msra.mxu0 0.0
        %2254 = vmatprep.subr.mxu0 0.0
        %2255 = vmatpush1.msra.mxu0 0.0
        %2256 = vmatprep.subr.mxu0 0.0
        %2257 = vmatpush1.msra.mxu0 0.0
        %2258 = vmatprep.subr.mxu0 0.0
        %2259 = vmatpush1.msra.mxu0 0.0
        %2260 = vmatprep.subr.mxu0 0.0
        %2261 = vmatpush1.msra.mxu0 0.0
        %2262 = vmatprep.subr.mxu0 0.0
        %2263 = vmatpush1.msra.mxu0 0.0
        %2264 = vmatprep.subr.mxu0 0.0
        %2265 = vmatpush1.msra.mxu0 0.0
        %2266 = vmatprep.mubr.f32.mxu0 0.0
        %2267 = vmatmul.mubr.f32.gmra.mrb[0].mxu0 %v2200
        %v2268 = vpop.f32.mrb[0].mxu0
        %v2269 = vadd.f32 %v2182, %v2268
        %v2270 = vpop.f32.mrb[0].mxu0
        %v2271 = vadd.f32 %v2184, %v2270
        %2272 = vdwg.mxu0
        %v2273 = vmul.f32 %v2090, %v538
        %v2274 = vmul.f32 %v2091, %v542
        %v2275 = vmul.f32 %v2092, %v540
        %s2276 = scalar_lea.vmem %s6, 2
        %v2277 = vld [vmem:[%s2276] sm:$0x1]
        %2281 = vrot.lane.b32.xlu0 %v2273, 15
        %v2282 = vpop.permute.xlu0 %2281
        %2283 = vrot.lane.b32.xlu0 %v2274, 15
        %v2284 = vpop.permute.xlu0 %2283
        %2285 = vrot.lane.b32.xlu0 %v2275, 15
        %v2286 = vpop.permute.xlu0 %2285
        %v2287 = vsel %vm560, %v2282, %v2284
        %v2288 = vsel %vm560, %v2284, %v2286
        %v2292 = vsel %vm1274, %v2277, 0
        %2294 = vmatprep.subr.mxu0 %v2288
        %2295 = vmatpush1.msra.mxu0 %v2287
        %2296 = vmatprep.subr.mxu0 0.0
        %2297 = vmatpush1.msra.mxu0 0.0
        %2298 = vmatprep.subr.mxu0 0.0
        %2299 = vmatpush1.msra.mxu0 0.0
        %2300 = vmatprep.subr.mxu0 0.0
        %2301 = vmatpush1.msra.mxu0 0.0
        %2302 = vmatprep.subr.mxu0 0.0
        %2303 = vmatpush1.msra.mxu0 0.0
        %2304 = vmatprep.subr.mxu0 0.0
        %2305 = vmatpush1.msra.mxu0 0.0
        %2306 = vmatprep.subr.mxu0 0.0
        %2307 = vmatpush1.msra.mxu0 0.0
        %2308 = vmatprep.subr.mxu0 0.0
        %2309 = vmatpush1.msra.mxu0 0.0
        %2310 = vmatprep.subr.mxu0 0.0
        %2311 = vmatpush1.msra.mxu0 0.0
        %2312 = vmatprep.subr.mxu0 0.0
        %2313 = vmatpush1.msra.mxu0 0.0
        %2314 = vmatprep.subr.mxu0 0.0
        %2315 = vmatpush1.msra.mxu0 0.0
        %2316 = vmatprep.subr.mxu0 0.0
        %2317 = vmatpush1.msra.mxu0 0.0
        %2318 = vmatprep.subr.mxu0 0.0
        %2319 = vmatpush1.msra.mxu0 0.0
        %2320 = vmatprep.subr.mxu0 0.0
        %2321 = vmatpush1.msra.mxu0 0.0
        %2322 = vmatprep.subr.mxu0 0.0
        %2323 = vmatpush1.msra.mxu0 0.0
        %2324 = vmatprep.subr.mxu0 0.0
        %2325 = vmatpush1.msra.mxu0 0.0
        %2326 = vmatprep.subr.mxu0 0.0
        %2327 = vmatpush1.msra.mxu0 0.0
        %2328 = vmatprep.subr.mxu0 0.0
        %2329 = vmatpush1.msra.mxu0 0.0
        %2330 = vmatprep.subr.mxu0 0.0
        %2331 = vmatpush1.msra.mxu0 0.0
        %2332 = vmatprep.subr.mxu0 0.0
        %2333 = vmatpush1.msra.mxu0 0.0
        %2334 = vmatprep.subr.mxu0 0.0
        %2335 = vmatpush1.msra.mxu0 0.0
        %2336 = vmatprep.subr.mxu0 0.0
        %2337 = vmatpush1.msra.mxu0 0.0
        %2338 = vmatprep.subr.mxu0 0.0
        %2339 = vmatpush1.msra.mxu0 0.0
        %2340 = vmatprep.subr.mxu0 0.0
        %2341 = vmatpush1.msra.mxu0 0.0
        %2342 = vmatprep.subr.mxu0 0.0
        %2343 = vmatpush1.msra.mxu0 0.0
        %2344 = vmatprep.subr.mxu0 0.0
        %2345 = vmatpush1.msra.mxu0 0.0
        %2346 = vmatprep.subr.mxu0 0.0
        %2347 = vmatpush1.msra.mxu0 0.0
        %2348 = vmatprep.subr.mxu0 0.0
        %2349 = vmatpush1.msra.mxu0 0.0
        %2350 = vmatprep.subr.mxu0 0.0
        %2351 = vmatpush1.msra.mxu0 0.0
        %2352 = vmatprep.subr.mxu0 0.0
        %2353 = vmatpush1.msra.mxu0 0.0
        %2354 = vmatprep.subr.mxu0 0.0
        %2355 = vmatpush1.msra.mxu0 0.0
        %2356 = vmatprep.subr.mxu0 0.0
        %2357 = vmatpush1.msra.mxu0 0.0
        %2358 = vmatprep.mubr.f32.mxu0 0.0
        %2359 = vmatmul.mubr.f32.gmra.mrb[0].mxu0 %v2292
        %v2360 = vpop.f32.mrb[0].mxu0
        %v2361 = vadd.f32 0.0, %v2360
        %v2362 = vpop.f32.mrb[0].mxu0
        %v2363 = vadd.f32 0.0, %v2362
        %2364 = vdwg.mxu0
        %v2365 = vadd.f32 %v2269, %v2361
        %v2366 = vadd.f32 %v2271, %v2363
        %v2367 = vmul.f32 %v2090, %v644
        %v2368 = vmul.f32 %v2091, %v648
        %v2369 = vmul.f32 %v2092, %v646
        %s2370 = scalar_lea.vmem %s6, 3
        %v2371 = vld [vmem:[%s2370] sm:$0x1]
        %2375 = vrot.lane.b32.xlu0 %v2367, 1
        %v2376 = vpop.permute.xlu0 %2375
        %2377 = vrot.lane.b32.xlu0 %v2368, 1
        %v2378 = vpop.permute.xlu0 %2377
        %2379 = vrot.lane.b32.xlu0 %v2369, 1
        %v2380 = vpop.permute.xlu0 %2379
        %v2381 = vsel %vm666, %v2376, %v2378
        %v2382 = vsel %vm666, %v2378, %v2380
        %v2386 = vsel %vm1274, %v2371, 0
        %2388 = vmatprep.subr.mxu0 %v2382
        %2389 = vmatpush1.msra.mxu0 %v2381
        %2390 = vmatprep.subr.mxu0 0.0
        %2391 = vmatpush1.msra.mxu0 0.0
        %2392 = vmatprep.subr.mxu0 0.0
        %2393 = vmatpush1.msra.mxu0 0.0
        %2394 = vmatprep.subr.mxu0 0.0
        %2395 = vmatpush1.msra.mxu0 0.0
        %2396 = vmatprep.subr.mxu0 0.0
        %2397 = vmatpush1.msra.mxu0 0.0
        %2398 = vmatprep.subr.mxu0 0.0
        %2399 = vmatpush1.msra.mxu0 0.0
        %2400 = vmatprep.subr.mxu0 0.0
        %2401 = vmatpush1.msra.mxu0 0.0
        %2402 = vmatprep.subr.mxu0 0.0
        %2403 = vmatpush1.msra.mxu0 0.0
        %2404 = vmatprep.subr.mxu0 0.0
        %2405 = vmatpush1.msra.mxu0 0.0
        %2406 = vmatprep.subr.mxu0 0.0
        %2407 = vmatpush1.msra.mxu0 0.0
        %2408 = vmatprep.subr.mxu0 0.0
        %2409 = vmatpush1.msra.mxu0 0.0
        %2410 = vmatprep.subr.mxu0 0.0
        %2411 = vmatpush1.msra.mxu0 0.0
        %2412 = vmatprep.subr.mxu0 0.0
        %2413 = vmatpush1.msra.mxu0 0.0
        %2414 = vmatprep.subr.mxu0 0.0
        %2415 = vmatpush1.msra.mxu0 0.0
        %2416 = vmatprep.subr.mxu0 0.0
        %2417 = vmatpush1.msra.mxu0 0.0
        %2418 = vmatprep.subr.mxu0 0.0
        %2419 = vmatpush1.msra.mxu0 0.0
        %2420 = vmatprep.subr.mxu0 0.0
        %2421 = vmatpush1.msra.mxu0 0.0
        %2422 = vmatprep.subr.mxu0 0.0
        %2423 = vmatpush1.msra.mxu0 0.0
        %2424 = vmatprep.subr.mxu0 0.0
        %2425 = vmatpush1.msra.mxu0 0.0
        %2426 = vmatprep.subr.mxu0 0.0
        %2427 = vmatpush1.msra.mxu0 0.0
        %2428 = vmatprep.subr.mxu0 0.0
        %2429 = vmatpush1.msra.mxu0 0.0
        %2430 = vmatprep.subr.mxu0 0.0
        %2431 = vmatpush1.msra.mxu0 0.0
        %2432 = vmatprep.subr.mxu0 0.0
        %2433 = vmatpush1.msra.mxu0 0.0
        %2434 = vmatprep.subr.mxu0 0.0
        %2435 = vmatpush1.msra.mxu0 0.0
        %2436 = vmatprep.subr.mxu0 0.0
        %2437 = vmatpush1.msra.mxu0 0.0
        %2438 = vmatprep.subr.mxu0 0.0
        %2439 = vmatpush1.msra.mxu0 0.0
        %2440 = vmatprep.subr.mxu0 0.0
        %2441 = vmatpush1.msra.mxu0 0.0
        %2442 = vmatprep.subr.mxu0 0.0
        %2443 = vmatpush1.msra.mxu0 0.0
        %2444 = vmatprep.subr.mxu0 0.0
        %2445 = vmatpush1.msra.mxu0 0.0
        %2446 = vmatprep.subr.mxu0 0.0
        %2447 = vmatpush1.msra.mxu0 0.0
        %2448 = vmatprep.subr.mxu0 0.0
        %2449 = vmatpush1.msra.mxu0 0.0
        %2450 = vmatprep.subr.mxu0 0.0
        %2451 = vmatpush1.msra.mxu0 0.0
        %2452 = vmatprep.mubr.f32.mxu0 0.0
        %2453 = vmatmul.mubr.f32.gmra.mrb[0].mxu0 %v2386
        %v2454 = vpop.f32.mrb[0].mxu0
        %v2455 = vadd.f32 0.0, %v2454
        %v2456 = vpop.f32.mrb[0].mxu0
        %v2457 = vadd.f32 0.0, %v2456
        %2458 = vdwg.mxu0
        %v2459 = vadd.f32 %v2365, %v2455
        %v2460 = vadd.f32 %v2366, %v2457
        %s2461 = scalar_lea.vmem %s6, 4
        %v2462 = vld [vmem:[%s2461] sm:$0x1]
        %v2464 = vsel %vm1274, %v2462, 0
        %2466 = vmatprep.subr.mxu0 %v2092
        %2467 = vmatpush1.msra.mxu0 %v2091
        %2468 = vmatprep.subr.mxu0 0.0
        %2469 = vmatpush1.msra.mxu0 0.0
        %2470 = vmatprep.subr.mxu0 0.0
        %2471 = vmatpush1.msra.mxu0 0.0
        %2472 = vmatprep.subr.mxu0 0.0
        %2473 = vmatpush1.msra.mxu0 0.0
        %2474 = vmatprep.subr.mxu0 0.0
        %2475 = vmatpush1.msra.mxu0 0.0
        %2476 = vmatprep.subr.mxu0 0.0
        %2477 = vmatpush1.msra.mxu0 0.0
        %2478 = vmatprep.subr.mxu0 0.0
        %2479 = vmatpush1.msra.mxu0 0.0
        %2480 = vmatprep.subr.mxu0 0.0
        %2481 = vmatpush1.msra.mxu0 0.0
        %2482 = vmatprep.subr.mxu0 0.0
        %2483 = vmatpush1.msra.mxu0 0.0
        %2484 = vmatprep.subr.mxu0 0.0
        %2485 = vmatpush1.msra.mxu0 0.0
        %2486 = vmatprep.subr.mxu0 0.0
        %2487 = vmatpush1.msra.mxu0 0.0
        %2488 = vmatprep.subr.mxu0 0.0
        %2489 = vmatpush1.msra.mxu0 0.0
        %2490 = vmatprep.subr.mxu0 0.0
        %2491 = vmatpush1.msra.mxu0 0.0
        %2492 = vmatprep.subr.mxu0 0.0
        %2493 = vmatpush1.msra.mxu0 0.0
        %2494 = vmatprep.subr.mxu0 0.0
        %2495 = vmatpush1.msra.mxu0 0.0
        %2496 = vmatprep.subr.mxu0 0.0
        %2497 = vmatpush1.msra.mxu0 0.0
        %2498 = vmatprep.subr.mxu0 0.0
        %2499 = vmatpush1.msra.mxu0 0.0
        %2500 = vmatprep.subr.mxu0 0.0
        %2501 = vmatpush1.msra.mxu0 0.0
        %2502 = vmatprep.subr.mxu0 0.0
        %2503 = vmatpush1.msra.mxu0 0.0
        %2504 = vmatprep.subr.mxu0 0.0
        %2505 = vmatpush1.msra.mxu0 0.0
        %2506 = vmatprep.subr.mxu0 0.0
        %2507 = vmatpush1.msra.mxu0 0.0
        %2508 = vmatprep.subr.mxu0 0.0
        %2509 = vmatpush1.msra.mxu0 0.0
        %2510 = vmatprep.subr.mxu0 0.0
        %2511 = vmatpush1.msra.mxu0 0.0
        %2512 = vmatprep.subr.mxu0 0.0
        %2513 = vmatpush1.msra.mxu0 0.0
        %2514 = vmatprep.subr.mxu0 0.0
        %2515 = vmatpush1.msra.mxu0 0.0
        %2516 = vmatprep.subr.mxu0 0.0
        %2517 = vmatpush1.msra.mxu0 0.0
        %2518 = vmatprep.subr.mxu0 0.0
        %2519 = vmatpush1.msra.mxu0 0.0
        %2520 = vmatprep.subr.mxu0 0.0
        %2521 = vmatpush1.msra.mxu0 0.0
        %2522 = vmatprep.subr.mxu0 0.0
        %2523 = vmatpush1.msra.mxu0 0.0
        %2524 = vmatprep.subr.mxu0 0.0
        %2525 = vmatpush1.msra.mxu0 0.0
        %2526 = vmatprep.subr.mxu0 0.0
        %2527 = vmatpush1.msra.mxu0 0.0
        %2528 = vmatprep.subr.mxu0 0.0
        %2529 = vmatpush1.msra.mxu0 0.0
        %2530 = vmatprep.mubr.f32.mxu0 0.0
        %2531 = vmatmul.mubr.f32.gmra.mrb[0].mxu0 %v2464
        %v2532 = vpop.f32.mrb[0].mxu0
        %v2533 = vadd.f32 0.0, %v2532
        %v2534 = vpop.f32.mrb[0].mxu0
        %v2535 = vadd.f32 0.0, %v2534
        %2536 = vdwg.mxu0
        %v2537 = vadd.f32 %v2459, %v2533
        %v2538 = vadd.f32 %v2460, %v2535
        %v2539 = vld [vmem:[#allocation2 + $0x8] sm:$0xff]
        %v2540 = vld [vmem:[#allocation2 + $0x10] sm:$0xff]
        %v2541 = vld [vmem:[#allocation2 + $0x18] sm:$0xff]
        %v2542 = vmul.f32 %v2539, %v835
        %v2543 = vmul.f32 %v2540, %v838
        %v2544 = vmul.f32 %v2541, %v837
        %s2545 = scalar_lea.vmem %s6, 5
        %v2546 = vld [vmem:[%s2545] sm:$0x1]
        %2550 = vrot.lane.b32.xlu0 %v2542, 127
        %v2551 = vpop.permute.xlu0 %2550
        %2552 = vrot.lane.b32.xlu0 %v2543, 127
        %v2553 = vpop.permute.xlu0 %2552
        %2554 = vrot.lane.b32.xlu0 %v2544, 127
        %v2555 = vpop.permute.xlu0 %2554
        %v2556 = vsel %vm647, %v2551, %v2553
        %v2557 = vsel %vm647, %v2553, %v2555
        %v2561 = vsel %vm1274, %v2546, 0
        %2563 = vmatprep.subr.mxu0 %v2557
        %2564 = vmatpush1.msra.mxu0 %v2556
        %2565 = vmatprep.subr.mxu0 0.0
        %2566 = vmatpush1.msra.mxu0 0.0
        %2567 = vmatprep.subr.mxu0 0.0
        %2568 = vmatpush1.msra.mxu0 0.0
        %2569 = vmatprep.subr.mxu0 0.0
        %2570 = vmatpush1.msra.mxu0 0.0
        %2571 = vmatprep.subr.mxu0 0.0
        %2572 = vmatpush1.msra.mxu0 0.0
        %2573 = vmatprep.subr.mxu0 0.0
        %2574 = vmatpush1.msra.mxu0 0.0
        %2575 = vmatprep.subr.mxu0 0.0
        %2576 = vmatpush1.msra.mxu0 0.0
        %2577 = vmatprep.subr.mxu0 0.0
        %2578 = vmatpush1.msra.mxu0 0.0
        %2579 = vmatprep.subr.mxu0 0.0
        %2580 = vmatpush1.msra.mxu0 0.0
        %2581 = vmatprep.subr.mxu0 0.0
        %2582 = vmatpush1.msra.mxu0 0.0
        %2583 = vmatprep.subr.mxu0 0.0
        %2584 = vmatpush1.msra.mxu0 0.0
        %2585 = vmatprep.subr.mxu0 0.0
        %2586 = vmatpush1.msra.mxu0 0.0
        %2587 = vmatprep.subr.mxu0 0.0
        %2588 = vmatpush1.msra.mxu0 0.0
        %2589 = vmatprep.subr.mxu0 0.0
        %2590 = vmatpush1.msra.mxu0 0.0
        %2591 = vmatprep.subr.mxu0 0.0
        %2592 = vmatpush1.msra.mxu0 0.0
        %2593 = vmatprep.subr.mxu0 0.0
        %2594 = vmatpush1.msra.mxu0 0.0
        %2595 = vmatprep.subr.mxu0 0.0
        %2596 = vmatpush1.msra.mxu0 0.0
        %2597 = vmatprep.subr.mxu0 0.0
        %2598 = vmatpush1.msra.mxu0 0.0
        %2599 = vmatprep.subr.mxu0 0.0
        %2600 = vmatpush1.msra.mxu0 0.0
        %2601 = vmatprep.subr.mxu0 0.0
        %2602 = vmatpush1.msra.mxu0 0.0
        %2603 = vmatprep.subr.mxu0 0.0
        %2604 = vmatpush1.msra.mxu0 0.0
        %2605 = vmatprep.subr.mxu0 0.0
        %2606 = vmatpush1.msra.mxu0 0.0
        %2607 = vmatprep.subr.mxu0 0.0
        %2608 = vmatpush1.msra.mxu0 0.0
        %2609 = vmatprep.subr.mxu0 0.0
        %2610 = vmatpush1.msra.mxu0 0.0
        %2611 = vmatprep.subr.mxu0 0.0
        %2612 = vmatpush1.msra.mxu0 0.0
        %2613 = vmatprep.subr.mxu0 0.0
        %2614 = vmatpush1.msra.mxu0 0.0
        %2615 = vmatprep.subr.mxu0 0.0
        %2616 = vmatpush1.msra.mxu0 0.0
        %2617 = vmatprep.subr.mxu0 0.0
        %2618 = vmatpush1.msra.mxu0 0.0
        %2619 = vmatprep.subr.mxu0 0.0
        %2620 = vmatpush1.msra.mxu0 0.0
        %2621 = vmatprep.subr.mxu0 0.0
        %2622 = vmatpush1.msra.mxu0 0.0
        %2623 = vmatprep.subr.mxu0 0.0
        %2624 = vmatpush1.msra.mxu0 0.0
        %2625 = vmatprep.subr.mxu0 0.0
        %2626 = vmatpush1.msra.mxu0 0.0
        %2627 = vmatprep.mubr.f32.mxu0 0.0
        %2628 = vmatmul.mubr.f32.gmra.mrb[0].mxu0 %v2561
        %v2629 = vpop.f32.mrb[0].mxu0
        %v2630 = vadd.f32 0.0, %v2629
        %v2631 = vpop.f32.mrb[0].mxu0
        %v2632 = vadd.f32 0.0, %v2631
        %2633 = vdwg.mxu0
        %v2634 = vadd.f32 %v2537, %v2630
        %v2635 = vadd.f32 %v2538, %v2632
        %v2636 = vmul.f32 %v2539, %v939
        %v2637 = vmul.f32 %v2540, %v942
        %v2638 = vmul.f32 %v2541, %v941
        %s2639 = scalar_lea.vmem %s6, 6
        %v2640 = vld [vmem:[%s2639] sm:$0x1]
        %2644 = vrot.lane.b32.xlu0 %v2636, 113
        %v2645 = vpop.permute.xlu0 %2644
        %2646 = vrot.lane.b32.xlu0 %v2637, 113
        %v2647 = vpop.permute.xlu0 %2646
        %2648 = vrot.lane.b32.xlu0 %v2638, 113
        %v2649 = vpop.permute.xlu0 %2648
        %v2650 = vsel %vm541, %v2645, %v2647
        %v2651 = vsel %vm541, %v2647, %v2649
        %v2655 = vsel %vm1274, %v2640, 0
        %2657 = vmatprep.subr.mxu0 %v2651
        %2658 = vmatpush1.msra.mxu0 %v2650
        %2659 = vmatprep.subr.mxu0 0.0
        %2660 = vmatpush1.msra.mxu0 0.0
        %2661 = vmatprep.subr.mxu0 0.0
        %2662 = vmatpush1.msra.mxu0 0.0
        %2663 = vmatprep.subr.mxu0 0.0
        %2664 = vmatpush1.msra.mxu0 0.0
        %2665 = vmatprep.subr.mxu0 0.0
        %2666 = vmatpush1.msra.mxu0 0.0
        %2667 = vmatprep.subr.mxu0 0.0
        %2668 = vmatpush1.msra.mxu0 0.0
        %2669 = vmatprep.subr.mxu0 0.0
        %2670 = vmatpush1.msra.mxu0 0.0
        %2671 = vmatprep.subr.mxu0 0.0
        %2672 = vmatpush1.msra.mxu0 0.0
        %2673 = vmatprep.subr.mxu0 0.0
        %2674 = vmatpush1.msra.mxu0 0.0
        %2675 = vmatprep.subr.mxu0 0.0
        %2676 = vmatpush1.msra.mxu0 0.0
        %2677 = vmatprep.subr.mxu0 0.0
        %2678 = vmatpush1.msra.mxu0 0.0
        %2679 = vmatprep.subr.mxu0 0.0
        %2680 = vmatpush1.msra.mxu0 0.0
        %2681 = vmatprep.subr.mxu0 0.0
        %2682 = vmatpush1.msra.mxu0 0.0
        %2683 = vmatprep.subr.mxu0 0.0
        %2684 = vmatpush1.msra.mxu0 0.0
        %2685 = vmatprep.subr.mxu0 0.0
        %2686 = vmatpush1.msra.mxu0 0.0
        %2687 = vmatprep.subr.mxu0 0.0
        %2688 = vmatpush1.msra.mxu0 0.0
        %2689 = vmatprep.subr.mxu0 0.0
        %2690 = vmatpush1.msra.mxu0 0.0
        %2691 = vmatprep.subr.mxu0 0.0
        %2692 = vmatpush1.msra.mxu0 0.0
        %2693 = vmatprep.subr.mxu0 0.0
        %2694 = vmatpush1.msra.mxu0 0.0
        %2695 = vmatprep.subr.mxu0 0.0
        %2696 = vmatpush1.msra.mxu0 0.0
        %2697 = vmatprep.subr.mxu0 0.0
        %2698 = vmatpush1.msra.mxu0 0.0
        %2699 = vmatprep.subr.mxu0 0.0
        %2700 = vmatpush1.msra.mxu0 0.0
        %2701 = vmatprep.subr.mxu0 0.0
        %2702 = vmatpush1.msra.mxu0 0.0
        %2703 = vmatprep.subr.mxu0 0.0
        %2704 = vmatpush1.msra.mxu0 0.0
        %2705 = vmatprep.subr.mxu0 0.0
        %2706 = vmatpush1.msra.mxu0 0.0
        %2707 = vmatprep.subr.mxu0 0.0
        %2708 = vmatpush1.msra.mxu0 0.0
        %2709 = vmatprep.subr.mxu0 0.0
        %2710 = vmatpush1.msra.mxu0 0.0
        %2711 = vmatprep.subr.mxu0 0.0
        %2712 = vmatpush1.msra.mxu0 0.0
        %2713 = vmatprep.subr.mxu0 0.0
        %2714 = vmatpush1.msra.mxu0 0.0
        %2715 = vmatprep.subr.mxu0 0.0
        %2716 = vmatpush1.msra.mxu0 0.0
        %2717 = vmatprep.subr.mxu0 0.0
        %2718 = vmatpush1.msra.mxu0 0.0
        %2719 = vmatprep.subr.mxu0 0.0
        %2720 = vmatpush1.msra.mxu0 0.0
        %2721 = vmatprep.mubr.f32.mxu0 0.0
        %2722 = vmatmul.mubr.f32.gmra.mrb[0].mxu0 %v2655
        %v2723 = vpop.f32.mrb[0].mxu0
        %v2724 = vadd.f32 0.0, %v2723
        %v2725 = vpop.f32.mrb[0].mxu0
        %v2726 = vadd.f32 0.0, %v2725
        %2727 = vdwg.mxu0
        %v2728 = vadd.f32 %v2634, %v2724
        %v2729 = vadd.f32 %v2635, %v2726
        %s2730 = scalar_lea.vmem %s6, 7
        %v2731 = vld [vmem:[%s2730] sm:$0x1]
        %2735 = vrot.lane.b32.xlu0 %v2539, 112
        %v2736 = vpop.permute.xlu0 %2735
        %2737 = vrot.lane.b32.xlu0 %v2540, 112
        %v2738 = vpop.permute.xlu0 %2737
        %2739 = vrot.lane.b32.xlu0 %v2541, 112
        %v2740 = vpop.permute.xlu0 %2739
        %v2741 = vsel %vm1053, %v2736, %v2738
        %v2742 = vsel %vm1053, %v2738, %v2740
        %v2746 = vsel %vm1274, %v2731, 0
        %2748 = vmatprep.subr.mxu0 %v2742
        %2749 = vmatpush1.msra.mxu0 %v2741
        %2750 = vmatprep.subr.mxu0 0.0
        %2751 = vmatpush1.msra.mxu0 0.0
        %2752 = vmatprep.subr.mxu0 0.0
        %2753 = vmatpush1.msra.mxu0 0.0
        %2754 = vmatprep.subr.mxu0 0.0
        %2755 = vmatpush1.msra.mxu0 0.0
        %2756 = vmatprep.subr.mxu0 0.0
        %2757 = vmatpush1.msra.mxu0 0.0
        %2758 = vmatprep.subr.mxu0 0.0
        %2759 = vmatpush1.msra.mxu0 0.0
        %2760 = vmatprep.subr.mxu0 0.0
        %2761 = vmatpush1.msra.mxu0 0.0
        %2762 = vmatprep.subr.mxu0 0.0
        %2763 = vmatpush1.msra.mxu0 0.0
        %2764 = vmatprep.subr.mxu0 0.0
        %2765 = vmatpush1.msra.mxu0 0.0
        %2766 = vmatprep.subr.mxu0 0.0
        %2767 = vmatpush1.msra.mxu0 0.0
        %2768 = vmatprep.subr.mxu0 0.0
        %2769 = vmatpush1.msra.mxu0 0.0
        %2770 = vmatprep.subr.mxu0 0.0
        %2771 = vmatpush1.msra.mxu0 0.0
        %2772 = vmatprep.subr.mxu0 0.0
        %2773 = vmatpush1.msra.mxu0 0.0
        %2774 = vmatprep.subr.mxu0 0.0
        %2775 = vmatpush1.msra.mxu0 0.0
        %2776 = vmatprep.subr.mxu0 0.0
        %2777 = vmatpush1.msra.mxu0 0.0
        %2778 = vmatprep.subr.mxu0 0.0
        %2779 = vmatpush1.msra.mxu0 0.0
        %2780 = vmatprep.subr.mxu0 0.0
        %2781 = vmatpush1.msra.mxu0 0.0
        %2782 = vmatprep.subr.mxu0 0.0
        %2783 = vmatpush1.msra.mxu0 0.0
        %2784 = vmatprep.subr.mxu0 0.0
        %2785 = vmatpush1.msra.mxu0 0.0
        %2786 = vmatprep.subr.mxu0 0.0
        %2787 = vmatpush1.msra.mxu0 0.0
        %2788 = vmatprep.subr.mxu0 0.0
        %2789 = vmatpush1.msra.mxu0 0.0
        %2790 = vmatprep.subr.mxu0 0.0
        %2791 = vmatpush1.msra.mxu0 0.0
        %2792 = vmatprep.subr.mxu0 0.0
        %2793 = vmatpush1.msra.mxu0 0.0
        %2794 = vmatprep.subr.mxu0 0.0
        %2795 = vmatpush1.msra.mxu0 0.0
        %2796 = vmatprep.subr.mxu0 0.0
        %2797 = vmatpush1.msra.mxu0 0.0
        %2798 = vmatprep.subr.mxu0 0.0
        %2799 = vmatpush1.msra.mxu0 0.0
        %2800 = vmatprep.subr.mxu0 0.0
        %2801 = vmatpush1.msra.mxu0 0.0
        %2802 = vmatprep.subr.mxu0 0.0
        %2803 = vmatpush1.msra.mxu0 0.0
        %2804 = vmatprep.subr.mxu0 0.0
        %2805 = vmatpush1.msra.mxu0 0.0
        %2806 = vmatprep.subr.mxu0 0.0
        %2807 = vmatpush1.msra.mxu0 0.0
        %2808 = vmatprep.subr.mxu0 0.0
        %2809 = vmatpush1.msra.mxu0 0.0
        %2810 = vmatprep.subr.mxu0 0.0
        %2811 = vmatpush1.msra.mxu0 0.0
        %2812 = vmatprep.mubr.f32.mxu0 0.0
        %2813 = vmatmul.mubr.f32.gmra.mrb[0].mxu0 %v2746
        %v2814 = vpop.f32.mrb[0].mxu0
        %v2815 = vadd.f32 0.0, %v2814
        %v2816 = vpop.f32.mrb[0].mxu0
        %v2817 = vadd.f32 0.0, %v2816
        %2818 = vdwg.mxu0
        %v2819 = vadd.f32 %v2728, %v2815
        %v2820 = vadd.f32 %v2729, %v2817
        %v2821 = vmul.f32 %v2539, %v1137
        %v2822 = vmul.f32 %v2540, %v1140
        %v2823 = vmul.f32 %v2541, %v1139
        %s2824 = scalar_lea.vmem %s6, 8
        %v2825 = vld [vmem:[%s2824] sm:$0x1]
        %2829 = vrot.lane.b32.xlu0 %v2821, 111
        %v2830 = vpop.permute.xlu0 %2829
        %2831 = vrot.lane.b32.xlu0 %v2822, 111
        %v2832 = vpop.permute.xlu0 %2831
        %2833 = vrot.lane.b32.xlu0 %v2823, 111
        %v2834 = vpop.permute.xlu0 %2833
        %v2835 = vsel %vm335, %v2830, %v2832
        %v2836 = vsel %vm335, %v2832, %v2834
        %v2840 = vsel %vm1274, %v2825, 0
        %2842 = vmatprep.subr.mxu0 %v2836
        %2843 = vmatpush1.msra.mxu0 %v2835
        %2844 = vmatprep.subr.mxu0 0.0
        %2845 = vmatpush1.msra.mxu0 0.0
        %2846 = vmatprep.subr.mxu0 0.0
        %2847 = vmatpush1.msra.mxu0 0.0
        %2848 = vmatprep.subr.mxu0 0.0
        %2849 = vmatpush1.msra.mxu0 0.0
        %2850 = vmatprep.subr.mxu0 0.0
        %2851 = vmatpush1.msra.mxu0 0.0
        %2852 = vmatprep.subr.mxu0 0.0
        %2853 = vmatpush1.msra.mxu0 0.0
        %2854 = vmatprep.subr.mxu0 0.0
        %2855 = vmatpush1.msra.mxu0 0.0
        %2856 = vmatprep.subr.mxu0 0.0
        %2857 = vmatpush1.msra.mxu0 0.0
        %2858 = vmatprep.subr.mxu0 0.0
        %2859 = vmatpush1.msra.mxu0 0.0
        %2860 = vmatprep.subr.mxu0 0.0
        %2861 = vmatpush1.msra.mxu0 0.0
        %2862 = vmatprep.subr.mxu0 0.0
        %2863 = vmatpush1.msra.mxu0 0.0
        %2864 = vmatprep.subr.mxu0 0.0
        %2865 = vmatpush1.msra.mxu0 0.0
        %2866 = vmatprep.subr.mxu0 0.0
        %2867 = vmatpush1.msra.mxu0 0.0
        %2868 = vmatprep.subr.mxu0 0.0
        %2869 = vmatpush1.msra.mxu0 0.0
        %2870 = vmatprep.subr.mxu0 0.0
        %2871 = vmatpush1.msra.mxu0 0.0
        %2872 = vmatprep.subr.mxu0 0.0
        %2873 = vmatpush1.msra.mxu0 0.0
        %2874 = vmatprep.subr.mxu0 0.0
        %2875 = vmatpush1.msra.mxu0 0.0
        %2876 = vmatprep.subr.mxu0 0.0
        %2877 = vmatpush1.msra.mxu0 0.0
        %2878 = vmatprep.subr.mxu0 0.0
        %2879 = vmatpush1.msra.mxu0 0.0
        %2880 = vmatprep.subr.mxu0 0.0
        %2881 = vmatpush1.msra.mxu0 0.0
        %2882 = vmatprep.subr.mxu0 0.0
        %2883 = vmatpush1.msra.mxu0 0.0
        %2884 = vmatprep.subr.mxu0 0.0
        %2885 = vmatpush1.msra.mxu0 0.0
        %2886 = vmatprep.subr.mxu0 0.0
        %2887 = vmatpush1.msra.mxu0 0.0
        %2888 = vmatprep.subr.mxu0 0.0
        %2889 = vmatpush1.msra.mxu0 0.0
        %2890 = vmatprep.subr.mxu0 0.0
        %2891 = vmatpush1.msra.mxu0 0.0
        %2892 = vmatprep.subr.mxu0 0.0
        %2893 = vmatpush1.msra.mxu0 0.0
        %2894 = vmatprep.subr.mxu0 0.0
        %2895 = vmatpush1.msra.mxu0 0.0
        %2896 = vmatprep.subr.mxu0 0.0
        %2897 = vmatpush1.msra.mxu0 0.0
        %2898 = vmatprep.subr.mxu0 0.0
        %2899 = vmatpush1.msra.mxu0 0.0
        %2900 = vmatprep.subr.mxu0 0.0
        %2901 = vmatpush1.msra.mxu0 0.0
        %2902 = vmatprep.subr.mxu0 0.0
        %2903 = vmatpush1.msra.mxu0 0.0
        %2904 = vmatprep.subr.mxu0 0.0
        %2905 = vmatpush1.msra.mxu0 0.0
        %2906 = vmatprep.mubr.f32.mxu0 0.0
        %2907 = vmatmul.mubr.f32.gmra.mrb[0].mxu0 %v2840
        %v2908 = vpop.f32.mrb[0].mxu0
        %v2909 = vadd.f32 0.0, %v2908
        %v2910 = vpop.f32.mrb[0].mxu0
        %v2911 = vadd.f32 0.0, %v2910
        %2912 = vdwg.mxu0
        %v2913 = vadd.f32 %v2819, %v2909
        %v2914 = vadd.f32 %v2820, %v2911
        %v2915 = vld [vmem:[#allocation3] sm:$0x1]
        %2917 = vset.pattern.permute.xlu0 0
        %2918 = vperm.xlu0 %2917, %v2915
        %v2919 = vpop.permute.xlu0 %2918
        %v2921 = vlaneseq
        %v2922 = vshrl.u32 %v2921, 7
        %v2923 = vsub.s32 0, %v2922
        %v2924 = vrot.slane %v2919, %v2923
        %v2925 = vadd.f32 %v2913, %v2924
        %v2926 = vadd.f32 %v2914, %v2924
        %v2927 = vxor.u32 %v2925, 2147483648
        %v2928 = vxor.u32 %v2926, 2147483648
        %v2929 = vmul.f32 %v2927, 1.442695
        %v2930 = vpow.pop %v2929
        %v2931 = vmul.f32 %v2928, 1.442695
        %v2932 = vpow.pop %v2931
        %v2933 = vadd.f32 %v2930, 1.0
        %v2934 = vadd.f32 %v2932, 1.0
        %v2935 = vrcp.pop %v2933
        %v2936 = vmul.f32 1.0, %v2935
        %v2937 = vrcp.pop %v2934
        %v2938 = vmul.f32 1.0, %v2937
        %v2941 = vcombine.low %v2936, %v2938
        %v2943 = vunpack.c.l.s4 1966171168
        %v2944 = vunpack.c.0.s8 %v2943
        %v2945 = vlaneseq
        %v2946 = vshrl.u32 %v2945, 7
        %v2947 = vsub.s32 %v2944, %v2946
        %v2948 = vrot.slane %v2941, %v2947
        %v2950 = vunpack.c.l.s4 1966171168
        %v2951 = vunpack.c.0.s8 %v2950
        %v2952 = vlaneseq
        %v2953 = vshrl.u32 %v2952, 7
        %v2954 = vsub.s32 %v2951, %v2953
        %v2955 = vrot.slane %v2948, %v2954
        %v2957 = vlaneseq
        %vm2958 = vcmp.ge.s32.totalorder %v2957, 0
        %vm2959 = vcmp.lt.s32.totalorder %v2957, 256
        %vm2960 = vmand %vm2958, %vm2959
        %2961 = vst.msk [vmem:[%s300] sm:$0x3] %vm2960, %v2955
        %s2962 = sand.u32 %s205, 1
        %s2963 = scalar_lea.sflag [#allocation5], %s2962
        %s2964 = sand.u32 %s205, 1
        %s2965 = smul.addr %s2964, 2
        %s2966 = scalar_lea.vmem [#allocation4], %s2965
        // Predicated region
        $region53: #{tpu_custom_call.1} parent=51 // pred_check
          %p2967 = pneg %p215
        $region54: #{tpu_custom_call.1} parent=51 // pred_check_branch
          %2969 = sbr.rel (%p2967) target = $region56
        $region55: #{tpu_custom_call.1} parent=51 // pred_region
          %s2971 = ssub.s32 32, 32
          %2972 = vsyncadd %s2963, %s2971
          %s2973 = smul.addr %s24, 2
          %s2974 = smul.addr %s2973, 16
          %s2975 = scalar_lea.hbm %s8, %s2974
          %s2977 = sshll.u32 %s2966, 4
          %s2978 = int_to_ptr.vmem [resolvable:$true] %s2977
          %2980 = dma.vmem_to_hbm [thread:$0]  %s2978, 32, %s2975, %s2963
        $region56: #{tpu_custom_call.1} parent=51 // pred_fallthru
          _
      $region52: #{tpu_custom_call.1} parent=5 // pred_fallthru
        _
      %p2981 = scmp.le.s32.totalorder 2, %s19
      // Predicated region
      $region57: #{tpu_custom_call.1} parent=5 // pred_check
        %p2982 = pneg %p2981
      $region58: #{tpu_custom_call.1} parent=5 // pred_check_branch
        %2984 = sbr.rel (%p2982) target = $region60
      $region59: #{tpu_custom_call.1} parent=5 // pred_region
        %s2985 = ssub.s32 %s19, 2
        // Predicated region
        $region61: #{tpu_custom_call.1} parent=59 // pred_check
          %p2986 = pneg %p221
        $region62: #{tpu_custom_call.1} parent=59 // pred_check_branch
          %2988 = sbr.rel (%p2986) target = $region64
        $region63: #{tpu_custom_call.1} parent=59 // pred_region
          %s2989 = sand.u32 %s206, 1
          %s2990 = scalar_lea.sflag [#allocation5], %s2989
          %s2991 = sand.u32 %s206, 1
          %s2992 = smul.addr %s2991, 2
          %s2993 = scalar_lea.vmem [#allocation4], %s2992
          %2994 = dma.done %s2990, 32
        $region64: #{tpu_custom_call.1} parent=59 // pred_fallthru
          _
      $region60: #{tpu_custom_call.1} parent=5 // pred_fallthru
        _
    $region6: #{tpu_custom_call.1} parent=1 // loop_footer
      %s23 = sadd.s32 1, %s19
    $region7: #{tpu_custom_call.1} parent=1 // loop_footer_branch
      %18 = sbr.rel target = $region3
    $region8: #{tpu_custom_call.1} parent=1 // loop_exit
      _
    %2995 = vsyncpa [#allocation5], 1
    %s2996 = scalar_lea.sflag [#allocation5], 1
    %2997 = vsyncpa %s2996, 1

</llo_original>
